<compile_context>
chip_gen: v5e
topology: v5e:2x2
jax: 0.10.0
libtpu: 0.0.40
codegen_flags: <defaults>
</compile_context>

<pallas_src>
import functools

import jax
import jax.numpy as jnp
import numpy as np
from jax.experimental import pallas as pl
from jax.experimental.pallas import tpu as pltpu


def _conv_out(n, k, s):
    return (n - (k - 1) - 1) // s + 1


# ----------------------------------------------------------------------------
# Fused whole-network kernel.  One grid step == one batch sample.
# ----------------------------------------------------------------------------
def _simple_cnn_kernel(x_ref, w1_ref, sh1_ref, w2_ref, sh2_ref, w3_ref, sh3_ref,
                       lw1_ref, lb1_ref, lw2_ref, lb2_ref, o_ref, *, dims):
    f32, bf16 = jnp.float32, jnp.bfloat16
    k1, st1, oh1, ow1 = dims["k1"], dims["st1"], dims["oh1"], dims["ow1"]
    k2, st2, oh2, ow2 = dims["k2"], dims["st2"], dims["oh2"], dims["ow2"]
    k3, st3, oh3, ow3 = dims["k3"], dims["st3"], dims["oh3"], dims["ow3"]

    def gather_rows(mat, idxs):
        # Static single-row (sublane) slices + one concat; unit-stride only.
        if len(idxs) == 1:
            return mat[idxs[0]:idxs[0] + 1, :]
        return jnp.concatenate([mat[i:i + 1, :] for i in idxs], axis=0)

    def conv_layer(act, iw, k, st, oh, ow, w_ref, sh_ref):
        # act: (ih*iw, cin) f32, channels-last, spatial raster order.
        slabs = []
        for ki in range(k):
            for kj in range(k):
                idxs = [iw * (st * oy + ki) + st * ox + kj
                        for oy in range(oh) for ox in range(ow)]
                slabs.append(gather_rows(act, idxs))            # (oh*ow, cin)
        patches = jnp.concatenate(slabs, axis=1)                # (oh*ow, k*k*cin)
        y = jnp.dot(patches.astype(bf16), w_ref[...],           # bf16 MXU, f32 acc
                    preferred_element_type=f32)
        return jnp.maximum(y + sh_ref[...], 0.0)                # folded BN shift + ReLU

    # ---- conv1 + bn1 + relu: in-kernel im2col from the space-to-batch input
    # x_ref: (st1*st1 phases, H//st1, W//st1, Cin)
    cin = x_ref.shape[-1]
    pieces = []
    for ki in range(k1):
        kbi, pyi = divmod(ki, st1)
        for kj in range(k1):
            kbj, pxj = divmod(kj, st1)
            slab = x_ref[pyi * st1 + pxj, kbi:kbi + oh1, kbj:kbj + ow1, :]
            pieces.append(slab.reshape(oh1 * ow1, cin))         # (oh1*ow1, cin)
    patches1 = jnp.concatenate(pieces, axis=1)                  # (oh1*ow1, k1*k1*cin)
    a1 = jnp.dot(patches1.astype(bf16), w1_ref[...], preferred_element_type=f32)
    a1 = jnp.maximum(a1 + sh1_ref[...], 0.0)                    # (oh1*ow1, 32) f32

    # ---- conv2 / conv3 (+ folded BN + ReLU); activations never leave the chip
    a2 = conv_layer(a1, ow1, k2, st2, oh2, ow2, w2_ref, sh2_ref)    # (oh2*ow2, 64)
    a3 = conv_layer(a2, ow2, k3, st3, oh3, ow3, w3_ref, sh3_ref)    # (oh3*ow3, 64)

    # ---- flatten (y, x, c) + linear1 + leaky_relu + linear2 (128-lane slab)
    if oh3 * ow3 == 1:
        flat = a3
    else:
        flat = jnp.concatenate([a3[r:r + 1, :] for r in range(oh3 * ow3)], axis=1)
    h = jnp.dot(flat.astype(bf16), lw1_ref[...], preferred_element_type=f32)
    h = h + lb1_ref[...]
    h = jnp.where(h > 0.0, h, 0.01 * h)                         # PyTorch leaky_relu default
    out = jnp.dot(h.astype(bf16), lw2_ref[...], preferred_element_type=f32)
    out = out + lb2_ref[...]
    o_ref[...] = out.astype(o_ref.dtype)                        # lane-dense (1, 128) store


# ----------------------------------------------------------------------------
# Wrapper: weight folding / relayout (one-time glue) + single pallas_call.
# ----------------------------------------------------------------------------
@jax.jit
def simple_cnn_forward(params, x, eps=1e-5):
    p = params
    n, cin, hh, ww = x.shape
    c1, _, k1, _ = p["w1"].shape
    c2, _, k2, _ = p["w2"].shape
    c3, _, k3, _ = p["w3"].shape
    st1, st2, st3 = 4, 2, 1
    oh1, ow1 = _conv_out(hh, k1, st1), _conv_out(ww, k1, st1)
    oh2, ow2 = _conv_out(oh1, k2, st2), _conv_out(ow1, k2, st2)
    oh3, ow3 = _conv_out(oh2, k3, st3), _conv_out(ow2, k3, st3)
    hidden = p["lw1"].shape[0]
    act_n = p["lw2"].shape[0]
    npad = 128                                   # lane-dense output slab width

    assert hh % st1 == 0 and ww % st1 == 0 and k1 % st1 == 0, \
        "space-to-batch input relayout needs stride-aligned H/W and kernel"
    assert act_n <= npad

    # ---- input: NCHW -> NHWC -> stride-st1 space-to-batch (pure relayout, f32)
    x_nhwc = jnp.transpose(x, (0, 2, 3, 1))
    x_s2b = x_nhwc.reshape(n, hh // st1, st1, ww // st1, st1, cin)
    x_s2b = jnp.transpose(x_s2b, (0, 2, 4, 1, 3, 5))
    x_s2b = x_s2b.reshape(n, st1 * st1, hh // st1, ww // st1, cin)

    # ---- fold eval-mode BN (+ conv bias) into the weights / a per-channel shift
    def fold(w, b, g, bt, m, v):
        sc = g / jnp.sqrt(v + eps)                               # (Cout,)
        wk = jnp.transpose(w * sc[:, None, None, None], (2, 3, 1, 0))  # (kh,kw,cin,cout)
        kh, kw, ci, co = wk.shape
        wk = wk.reshape(kh * kw * ci, co).astype(jnp.bfloat16)   # rows in (ki,kj,ci) order
        sh = (bt + sc * (b - m)).reshape(1, co).astype(jnp.float32)
        return wk, sh

    w1k, sh1 = fold(p["w1"], p["b1"], p["bn1_gamma"], p["bn1_beta"], p["bn1_mean"], p["bn1_var"])
    w2k, sh2 = fold(p["w2"], p["b2"], p["bn2_gamma"], p["bn2_beta"], p["bn2_mean"], p["bn2_var"])
    w3k, sh3 = fold(p["w3"], p["b3"], p["bn3_gamma"], p["bn3_beta"], p["bn3_mean"], p["bn3_var"])

    # ---- linear1: reorder input features from NCHW flatten (c,y,x) to the
    #      kernel's channels-last flatten (y,x,c); transpose to (in, out)
    lw1k = (p["lw1"].reshape(hidden, c3, oh3, ow3)
            .transpose(2, 3, 1, 0)
            .reshape(oh3 * ow3 * c3, hidden).astype(jnp.bfloat16))
    lb1 = p["lb1"].reshape(1, hidden).astype(jnp.float32)

    # ---- linear2: transpose + zero-pad the action dim to a 128-lane slab
    lw2k = jnp.zeros((hidden, npad), jnp.bfloat16).at[:, :act_n].set(
        p["lw2"].T.astype(jnp.bfloat16))
    lb2 = jnp.zeros((1, npad), jnp.float32).at[0, :act_n].set(p["lb2"].astype(jnp.float32))

    dims = dict(k1=k1, st1=st1, oh1=oh1, ow1=ow1,
                k2=k2, st2=st2, oh2=oh2, ow2=ow2,
                k3=k3, st3=st3, oh3=oh3, ow3=ow3)
    kernel = functools.partial(_simple_cnn_kernel, dims=dims)

    operands = (x_s2b, w1k, sh1, w2k, sh2, w3k, sh3, lw1k, lb1, lw2k, lb2)
    flops = 2 * n * ((oh1 * ow1) * w1k.shape[0] * w1k.shape[1]
                     + (oh2 * ow2) * w2k.shape[0] * w2k.shape[1]
                     + (oh3 * ow3) * w3k.shape[0] * w3k.shape[1]
                     + lw1k.shape[0] * lw1k.shape[1]
                     + lw2k.shape[0] * lw2k.shape[1])
    bytes_acc = sum(a.size * a.dtype.itemsize for a in operands) + n * npad * 4

    out = pl.pallas_call(
        kernel,
        out_shape=jax.ShapeDtypeStruct((n, 1, npad), jnp.float32),
        grid=(n,),
        in_specs=[
            # per-sample block of the space-to-batch input
            pl.BlockSpec((None, st1 * st1, hh // st1, ww // st1, cin),
                         lambda b: (b, 0, 0, 0, 0)),
            # weights / shifts: full arrays, fetched once (block index constant)
            pl.BlockSpec(w1k.shape, lambda b: (0, 0)),
            pl.BlockSpec(sh1.shape, lambda b: (0, 0)),
            pl.BlockSpec(w2k.shape, lambda b: (0, 0)),
            pl.BlockSpec(sh2.shape, lambda b: (0, 0)),
            pl.BlockSpec(w3k.shape, lambda b: (0, 0)),
            pl.BlockSpec(sh3.shape, lambda b: (0, 0)),
            pl.BlockSpec(lw1k.shape, lambda b: (0, 0)),
            pl.BlockSpec(lb1.shape, lambda b: (0, 0)),
            pl.BlockSpec(lw2k.shape, lambda b: (0, 0)),
            pl.BlockSpec(lb2.shape, lambda b: (0, 0)),
        ],
        out_specs=pl.BlockSpec((None, 1, npad), lambda b: (b, 0, 0)),
        compiler_params=pltpu.CompilerParams(
            dimension_semantics=("parallel",),       # batch across v7x TensorCores
            vmem_limit_bytes=32 * 1024 * 1024),
        cost_estimate=pl.CostEstimate(flops=flops, transcendentals=0,
                                      bytes_accessed=bytes_acc),
    )(*operands)

    return out[:, 0, :act_n]


# ----------------------------------------------------------------------------
# Parameters (BN stats randomized so the eval-mode BN fold is actually tested).
# ----------------------------------------------------------------------------
def init_params(key, action_num, state_w, state_h):
    convw, convh = _conv_out(state_w, 8, 4), _conv_out(state_h, 8, 4)
    convw, convh = _conv_out(convw, 4, 2), _conv_out(convh, 4, 2)
    convw, convh = _conv_out(convw, 3, 1), _conv_out(convh, 3, 1)
    lin_in = convw * convh * 64

    ks = iter(jax.random.split(key, 24))
    p = {}
    p["w1"] = 0.05 * jax.random.normal(next(ks), (32, 4, 8, 8), jnp.float32)
    p["b1"] = 0.05 * jax.random.normal(next(ks), (32,), jnp.float32)
    p["w2"] = 0.05 * jax.random.normal(next(ks), (64, 32, 4, 4), jnp.float32)
    p["b2"] = 0.05 * jax.random.normal(next(ks), (64,), jnp.float32)
    p["w3"] = 0.05 * jax.random.normal(next(ks), (64, 64, 3, 3), jnp.float32)
    p["b3"] = 0.05 * jax.random.normal(next(ks), (64,), jnp.float32)
    for i, c in zip((1, 2, 3), (32, 64, 64)):
        p[f"bn{i}_gamma"] = 1.0 + 0.2 * jax.random.normal(next(ks), (c,), jnp.float32)
        p[f"bn{i}_beta"] = 0.1 * jax.random.normal(next(ks), (c,), jnp.float32)
        p[f"bn{i}_mean"] = 0.1 * jax.random.normal(next(ks), (c,), jnp.float32)
        p[f"bn{i}_var"] = 1.0 + 0.5 * jax.random.uniform(next(ks), (c,), jnp.float32)
    p["lw1"] = 0.05 * jax.random.normal(next(ks), (128, lin_in), jnp.float32)
    p["lb1"] = 0.05 * jax.random.normal(next(ks), (128,), jnp.float32)
    p["lw2"] = 0.05 * jax.random.normal(next(ks), (action_num, 128), jnp.float32)
    p["lb2"] = 0.05 * jax.random.normal(next(ks), (action_num,), jnp.float32)
    return p


# ----------------------------------------------------------------------------
# Pure-JAX f32 reference (PyTorch eval-mode semantics) for correctness check.
# ----------------------------------------------------------------------------
def reference_forward(params, x, eps=1e-5):
    p = params

    def conv(x, w, b, s):
        y = jax.lax.conv_general_dilated(
            x, w, window_strides=(s, s), padding="VALID",
            dimension_numbers=("NCHW", "OIHW", "NCHW"))
        return y + b[None, :, None, None]

    def bn(x, g, bt, m, v):
        return g[None, :, None, None] * (x - m[None, :, None, None]) / \
            jnp.sqrt(v[None, :, None, None] + eps) + bt[None, :, None, None]

    x = jax.nn.relu(bn(conv(x, p["w1"], p["b1"], 4),
                       p["bn1_gamma"], p["bn1_beta"], p["bn1_mean"], p["bn1_var"]))
    x = jax.nn.relu(bn(conv(x, p["w2"], p["b2"], 2),
                       p["bn2_gamma"], p["bn2_beta"], p["bn2_mean"], p["bn2_var"]))
    x = jax.nn.relu(bn(conv(x, p["w3"], p["b3"], 1),
                       p["bn3_gamma"], p["bn3_beta"], p["bn3_mean"], p["bn3_var"]))
    x = x.reshape(x.shape[0], -1)
    x = jax.nn.leaky_relu(x @ p["lw1"].T + p["lb1"], negative_slope=0.01)
    x = x @ p["lw2"].T + p["lb2"]
    return x


if __name__ == "__main__":
    # Small config: 36x36x4 input -> 8x8 -> 3x3 -> 1x1 feature maps.
    ACTION_NUM, STATE_W, STATE_H, BATCH = 6, 36, 36, 2

    key = jax.random.PRNGKey(0)
    k_params, k_x = jax.random.split(key)
    params = init_params(k_params, ACTION_NUM, STATE_W, STATE_H)
    x = jax.random.normal(k_x, (BATCH, 4, STATE_H, STATE_W), jnp.float32)  # NCHW

    out = jax.block_until_ready(simple_cnn_forward(params, x))
    ref = jax.block_until_ready(reference_forward(params, x))

    assert out.shape == (BATCH, ACTION_NUM), out.shape
    # bf16 MXU operands (f32 accumulation) vs an all-f32 reference -> loose tolerance.
    np.testing.assert_allclose(np.asarray(out), np.asarray(ref), rtol=2e-2, atol=2e-2)
    print("KERNEL_OK")
</pallas_src>

<mosaic_0001>
module attributes {stable_mosaic.version = 11 : i64} {
  func.func @_simple_cnn_kernel(%arg0: i32, %arg1: memref<1x16x9x9x4xf32, #tpu.memory_space<vmem>>, %arg2: memref<256x32xbf16, #tpu.memory_space<vmem>>, %arg3: memref<1x32xf32, #tpu.memory_space<vmem>>, %arg4: memref<512x64xbf16, #tpu.memory_space<vmem>>, %arg5: memref<1x64xf32, #tpu.memory_space<vmem>>, %arg6: memref<576x64xbf16, #tpu.memory_space<vmem>>, %arg7: memref<1x64xf32, #tpu.memory_space<vmem>>, %arg8: memref<64x128xbf16, #tpu.memory_space<vmem>>, %arg9: memref<1x128xf32, #tpu.memory_space<vmem>>, %arg10: memref<128x128xbf16, #tpu.memory_space<vmem>>, %arg11: memref<1x128xf32, #tpu.memory_space<vmem>>, %arg12: memref<1x1x128xf32, #tpu.memory_space<vmem>>) attributes {dimension_semantics = [#tpu.dimension_semantics<parallel>], iteration_bounds = array<i64: 2>, scalar_prefetch = 0 : i64, scratch_operands = 0 : i64, tpu.core_type = #tpu.core_type<tc>, window_params = [{transform_indices = @transform_0, window_bounds = array<i64: 1, 16, 9, 9, 4>}, {pipeline_mode = #tpu.pipeline_mode<synchronous>, transform_indices = @transform_1, window_bounds = array<i64: 256, 32>}, {pipeline_mode = #tpu.pipeline_mode<synchronous>, transform_indices = @transform_2, window_bounds = array<i64: 1, 32>}, {pipeline_mode = #tpu.pipeline_mode<synchronous>, transform_indices = @transform_3, window_bounds = array<i64: 512, 64>}, {pipeline_mode = #tpu.pipeline_mode<synchronous>, transform_indices = @transform_4, window_bounds = array<i64: 1, 64>}, {pipeline_mode = #tpu.pipeline_mode<synchronous>, transform_indices = @transform_5, window_bounds = array<i64: 576, 64>}, {pipeline_mode = #tpu.pipeline_mode<synchronous>, transform_indices = @transform_6, window_bounds = array<i64: 1, 64>}, {pipeline_mode = #tpu.pipeline_mode<synchronous>, transform_indices = @transform_7, window_bounds = array<i64: 64, 128>}, {pipeline_mode = #tpu.pipeline_mode<synchronous>, transform_indices = @transform_8, window_bounds = array<i64: 1, 128>}, {pipeline_mode = #tpu.pipeline_mode<synchronous>, transform_indices = @transform_9, window_bounds = array<i64: 128, 128>}, {pipeline_mode = #tpu.pipeline_mode<synchronous>, transform_indices = @transform_10, window_bounds = array<i64: 1, 128>}, {transform_indices = @transform_11, window_bounds = array<i64: 1, 1, 128>}]} {
    %c0 = arith.constant 0 : index
    %c0_0 = arith.constant 0 : index
    %c0_1 = arith.constant 0 : index
    %c0_2 = arith.constant 0 : index
    %c0_3 = arith.constant 0 : index
    %0 = vector.load %arg1[%c0, %c0_0, %c0_1, %c0_2, %c0_3] : memref<1x16x9x9x4xf32, #tpu.memory_space<vmem>>, vector<1x1x8x8x4xf32>
    %1 = vector.shape_cast %0 : vector<1x1x8x8x4xf32> to vector<8x8x4xf32>
    %2 = vector.shape_cast %1 : vector<8x8x4xf32> to vector<64x4xf32>
    %c0_4 = arith.constant 0 : index
    %c1 = arith.constant 1 : index
    %c0_5 = arith.constant 0 : index
    %c0_6 = arith.constant 0 : index
    %c0_7 = arith.constant 0 : index
    %3 = vector.load %arg1[%c0_4, %c1, %c0_5, %c0_6, %c0_7] : memref<1x16x9x9x4xf32, #tpu.memory_space<vmem>>, vector<1x1x8x8x4xf32>
    %4 = vector.shape_cast %3 : vector<1x1x8x8x4xf32> to vector<8x8x4xf32>
    %5 = vector.shape_cast %4 : vector<8x8x4xf32> to vector<64x4xf32>
    %c0_8 = arith.constant 0 : index
    %c2 = arith.constant 2 : index
    %c0_9 = arith.constant 0 : index
    %c0_10 = arith.constant 0 : index
    %c0_11 = arith.constant 0 : index
    %6 = vector.load %arg1[%c0_8, %c2, %c0_9, %c0_10, %c0_11] : memref<1x16x9x9x4xf32, #tpu.memory_space<vmem>>, vector<1x1x8x8x4xf32>
    %7 = vector.shape_cast %6 : vector<1x1x8x8x4xf32> to vector<8x8x4xf32>
    %8 = vector.shape_cast %7 : vector<8x8x4xf32> to vector<64x4xf32>
    %c0_12 = arith.constant 0 : index
    %c3 = arith.constant 3 : index
    %c0_13 = arith.constant 0 : index
    %c0_14 = arith.constant 0 : index
    %c0_15 = arith.constant 0 : index
    %9 = vector.load %arg1[%c0_12, %c3, %c0_13, %c0_14, %c0_15] : memref<1x16x9x9x4xf32, #tpu.memory_space<vmem>>, vector<1x1x8x8x4xf32>
    %10 = vector.shape_cast %9 : vector<1x1x8x8x4xf32> to vector<8x8x4xf32>
    %11 = vector.shape_cast %10 : vector<8x8x4xf32> to vector<64x4xf32>
    %c0_16 = arith.constant 0 : index
    %c0_17 = arith.constant 0 : index
    %c0_18 = arith.constant 0 : index
    %c1_19 = arith.constant 1 : index
    %c0_20 = arith.constant 0 : index
    %12 = vector.load %arg1[%c0_16, %c0_17, %c0_18, %c1_19, %c0_20] : memref<1x16x9x9x4xf32, #tpu.memory_space<vmem>>, vector<1x1x8x8x4xf32>
    %13 = vector.shape_cast %12 : vector<1x1x8x8x4xf32> to vector<8x8x4xf32>
    %14 = vector.shape_cast %13 : vector<8x8x4xf32> to vector<64x4xf32>
    %c0_21 = arith.constant 0 : index
    %c1_22 = arith.constant 1 : index
    %c0_23 = arith.constant 0 : index
    %c1_24 = arith.constant 1 : index
    %c0_25 = arith.constant 0 : index
    %15 = vector.load %arg1[%c0_21, %c1_22, %c0_23, %c1_24, %c0_25] : memref<1x16x9x9x4xf32, #tpu.memory_space<vmem>>, vector<1x1x8x8x4xf32>
    %16 = vector.shape_cast %15 : vector<1x1x8x8x4xf32> to vector<8x8x4xf32>
    %17 = vector.shape_cast %16 : vector<8x8x4xf32> to vector<64x4xf32>
    %c0_26 = arith.constant 0 : index
    %c2_27 = arith.constant 2 : index
    %c0_28 = arith.constant 0 : index
    %c1_29 = arith.constant 1 : index
    %c0_30 = arith.constant 0 : index
    %18 = vector.load %arg1[%c0_26, %c2_27, %c0_28, %c1_29, %c0_30] : memref<1x16x9x9x4xf32, #tpu.memory_space<vmem>>, vector<1x1x8x8x4xf32>
    %19 = vector.shape_cast %18 : vector<1x1x8x8x4xf32> to vector<8x8x4xf32>
    %20 = vector.shape_cast %19 : vector<8x8x4xf32> to vector<64x4xf32>
    %c0_31 = arith.constant 0 : index
    %c3_32 = arith.constant 3 : index
    %c0_33 = arith.constant 0 : index
    %c1_34 = arith.constant 1 : index
    %c0_35 = arith.constant 0 : index
    %21 = vector.load %arg1[%c0_31, %c3_32, %c0_33, %c1_34, %c0_35] : memref<1x16x9x9x4xf32, #tpu.memory_space<vmem>>, vector<1x1x8x8x4xf32>
    %22 = vector.shape_cast %21 : vector<1x1x8x8x4xf32> to vector<8x8x4xf32>
    %23 = vector.shape_cast %22 : vector<8x8x4xf32> to vector<64x4xf32>
    %c0_36 = arith.constant 0 : index
    %c4 = arith.constant 4 : index
    %c0_37 = arith.constant 0 : index
    %c0_38 = arith.constant 0 : index
    %c0_39 = arith.constant 0 : index
    %24 = vector.load %arg1[%c0_36, %c4, %c0_37, %c0_38, %c0_39] : memref<1x16x9x9x4xf32, #tpu.memory_space<vmem>>, vector<1x1x8x8x4xf32>
    %25 = vector.shape_cast %24 : vector<1x1x8x8x4xf32> to vector<8x8x4xf32>
    %26 = vector.shape_cast %25 : vector<8x8x4xf32> to vector<64x4xf32>
    %c0_40 = arith.constant 0 : index
    %c5 = arith.constant 5 : index
    %c0_41 = arith.constant 0 : index
    %c0_42 = arith.constant 0 : index
    %c0_43 = arith.constant 0 : index
    %27 = vector.load %arg1[%c0_40, %c5, %c0_41, %c0_42, %c0_43] : memref<1x16x9x9x4xf32, #tpu.memory_space<vmem>>, vector<1x1x8x8x4xf32>
    %28 = vector.shape_cast %27 : vector<1x1x8x8x4xf32> to vector<8x8x4xf32>
    %29 = vector.shape_cast %28 : vector<8x8x4xf32> to vector<64x4xf32>
    %c0_44 = arith.constant 0 : index
    %c6 = arith.constant 6 : index
    %c0_45 = arith.constant 0 : index
    %c0_46 = arith.constant 0 : index
    %c0_47 = arith.constant 0 : index
    %30 = vector.load %arg1[%c0_44, %c6, %c0_45, %c0_46, %c0_47] : memref<1x16x9x9x4xf32, #tpu.memory_space<vmem>>, vector<1x1x8x8x4xf32>
    %31 = vector.shape_cast %30 : vector<1x1x8x8x4xf32> to vector<8x8x4xf32>
    %32 = vector.shape_cast %31 : vector<8x8x4xf32> to vector<64x4xf32>
    %c0_48 = arith.constant 0 : index
    %c7 = arith.constant 7 : index
    %c0_49 = arith.constant 0 : index
    %c0_50 = arith.constant 0 : index
    %c0_51 = arith.constant 0 : index
    %33 = vector.load %arg1[%c0_48, %c7, %c0_49, %c0_50, %c0_51] : memref<1x16x9x9x4xf32, #tpu.memory_space<vmem>>, vector<1x1x8x8x4xf32>
    %34 = vector.shape_cast %33 : vector<1x1x8x8x4xf32> to vector<8x8x4xf32>
    %35 = vector.shape_cast %34 : vector<8x8x4xf32> to vector<64x4xf32>
    %c0_52 = arith.constant 0 : index
    %c4_53 = arith.constant 4 : index
    %c0_54 = arith.constant 0 : index
    %c1_55 = arith.constant 1 : index
    %c0_56 = arith.constant 0 : index
    %36 = vector.load %arg1[%c0_52, %c4_53, %c0_54, %c1_55, %c0_56] : memref<1x16x9x9x4xf32, #tpu.memory_space<vmem>>, vector<1x1x8x8x4xf32>
    %37 = vector.shape_cast %36 : vector<1x1x8x8x4xf32> to vector<8x8x4xf32>
    %38 = vector.shape_cast %37 : vector<8x8x4xf32> to vector<64x4xf32>
    %c0_57 = arith.constant 0 : index
    %c5_58 = arith.constant 5 : index
    %c0_59 = arith.constant 0 : index
    %c1_60 = arith.constant 1 : index
    %c0_61 = arith.constant 0 : index
    %39 = vector.load %arg1[%c0_57, %c5_58, %c0_59, %c1_60, %c0_61] : memref<1x16x9x9x4xf32, #tpu.memory_space<vmem>>, vector<1x1x8x8x4xf32>
    %40 = vector.shape_cast %39 : vector<1x1x8x8x4xf32> to vector<8x8x4xf32>
    %41 = vector.shape_cast %40 : vector<8x8x4xf32> to vector<64x4xf32>
    %c0_62 = arith.constant 0 : index
    %c6_63 = arith.constant 6 : index
    %c0_64 = arith.constant 0 : index
    %c1_65 = arith.constant 1 : index
    %c0_66 = arith.constant 0 : index
    %42 = vector.load %arg1[%c0_62, %c6_63, %c0_64, %c1_65, %c0_66] : memref<1x16x9x9x4xf32, #tpu.memory_space<vmem>>, vector<1x1x8x8x4xf32>
    %43 = vector.shape_cast %42 : vector<1x1x8x8x4xf32> to vector<8x8x4xf32>
    %44 = vector.shape_cast %43 : vector<8x8x4xf32> to vector<64x4xf32>
    %c0_67 = arith.constant 0 : index
    %c7_68 = arith.constant 7 : index
    %c0_69 = arith.constant 0 : index
    %c1_70 = arith.constant 1 : index
    %c0_71 = arith.constant 0 : index
    %45 = vector.load %arg1[%c0_67, %c7_68, %c0_69, %c1_70, %c0_71] : memref<1x16x9x9x4xf32, #tpu.memory_space<vmem>>, vector<1x1x8x8x4xf32>
    %46 = vector.shape_cast %45 : vector<1x1x8x8x4xf32> to vector<8x8x4xf32>
    %47 = vector.shape_cast %46 : vector<8x8x4xf32> to vector<64x4xf32>
    %c0_72 = arith.constant 0 : index
    %c8 = arith.constant 8 : index
    %c0_73 = arith.constant 0 : index
    %c0_74 = arith.constant 0 : index
    %c0_75 = arith.constant 0 : index
    %48 = vector.load %arg1[%c0_72, %c8, %c0_73, %c0_74, %c0_75] : memref<1x16x9x9x4xf32, #tpu.memory_space<vmem>>, vector<1x1x8x8x4xf32>
    %49 = vector.shape_cast %48 : vector<1x1x8x8x4xf32> to vector<8x8x4xf32>
    %50 = vector.shape_cast %49 : vector<8x8x4xf32> to vector<64x4xf32>
    %c0_76 = arith.constant 0 : index
    %c9 = arith.constant 9 : index
    %c0_77 = arith.constant 0 : index
    %c0_78 = arith.constant 0 : index
    %c0_79 = arith.constant 0 : index
    %51 = vector.load %arg1[%c0_76, %c9, %c0_77, %c0_78, %c0_79] : memref<1x16x9x9x4xf32, #tpu.memory_space<vmem>>, vector<1x1x8x8x4xf32>
    %52 = vector.shape_cast %51 : vector<1x1x8x8x4xf32> to vector<8x8x4xf32>
    %53 = vector.shape_cast %52 : vector<8x8x4xf32> to vector<64x4xf32>
    %c0_80 = arith.constant 0 : index
    %c10 = arith.constant 10 : index
    %c0_81 = arith.constant 0 : index
    %c0_82 = arith.constant 0 : index
    %c0_83 = arith.constant 0 : index
    %54 = vector.load %arg1[%c0_80, %c10, %c0_81, %c0_82, %c0_83] : memref<1x16x9x9x4xf32, #tpu.memory_space<vmem>>, vector<1x1x8x8x4xf32>
    %55 = vector.shape_cast %54 : vector<1x1x8x8x4xf32> to vector<8x8x4xf32>
    %56 = vector.shape_cast %55 : vector<8x8x4xf32> to vector<64x4xf32>
    %c0_84 = arith.constant 0 : index
    %c11 = arith.constant 11 : index
    %c0_85 = arith.constant 0 : index
    %c0_86 = arith.constant 0 : index
    %c0_87 = arith.constant 0 : index
    %57 = vector.load %arg1[%c0_84, %c11, %c0_85, %c0_86, %c0_87] : memref<1x16x9x9x4xf32, #tpu.memory_space<vmem>>, vector<1x1x8x8x4xf32>
    %58 = vector.shape_cast %57 : vector<1x1x8x8x4xf32> to vector<8x8x4xf32>
    %59 = vector.shape_cast %58 : vector<8x8x4xf32> to vector<64x4xf32>
    %c0_88 = arith.constant 0 : index
    %c8_89 = arith.constant 8 : index
    %c0_90 = arith.constant 0 : index
    %c1_91 = arith.constant 1 : index
    %c0_92 = arith.constant 0 : index
    %60 = vector.load %arg1[%c0_88, %c8_89, %c0_90, %c1_91, %c0_92] : memref<1x16x9x9x4xf32, #tpu.memory_space<vmem>>, vector<1x1x8x8x4xf32>
    %61 = vector.shape_cast %60 : vector<1x1x8x8x4xf32> to vector<8x8x4xf32>
    %62 = vector.shape_cast %61 : vector<8x8x4xf32> to vector<64x4xf32>
    %c0_93 = arith.constant 0 : index
    %c9_94 = arith.constant 9 : index
    %c0_95 = arith.constant 0 : index
    %c1_96 = arith.constant 1 : index
    %c0_97 = arith.constant 0 : index
    %63 = vector.load %arg1[%c0_93, %c9_94, %c0_95, %c1_96, %c0_97] : memref<1x16x9x9x4xf32, #tpu.memory_space<vmem>>, vector<1x1x8x8x4xf32>
    %64 = vector.shape_cast %63 : vector<1x1x8x8x4xf32> to vector<8x8x4xf32>
    %65 = vector.shape_cast %64 : vector<8x8x4xf32> to vector<64x4xf32>
    %c0_98 = arith.constant 0 : index
    %c10_99 = arith.constant 10 : index
    %c0_100 = arith.constant 0 : index
    %c1_101 = arith.constant 1 : index
    %c0_102 = arith.constant 0 : index
    %66 = vector.load %arg1[%c0_98, %c10_99, %c0_100, %c1_101, %c0_102] : memref<1x16x9x9x4xf32, #tpu.memory_space<vmem>>, vector<1x1x8x8x4xf32>
    %67 = vector.shape_cast %66 : vector<1x1x8x8x4xf32> to vector<8x8x4xf32>
    %68 = vector.shape_cast %67 : vector<8x8x4xf32> to vector<64x4xf32>
    %c0_103 = arith.constant 0 : index
    %c11_104 = arith.constant 11 : index
    %c0_105 = arith.constant 0 : index
    %c1_106 = arith.constant 1 : index
    %c0_107 = arith.constant 0 : index
    %69 = vector.load %arg1[%c0_103, %c11_104, %c0_105, %c1_106, %c0_107] : memref<1x16x9x9x4xf32, #tpu.memory_space<vmem>>, vector<1x1x8x8x4xf32>
    %70 = vector.shape_cast %69 : vector<1x1x8x8x4xf32> to vector<8x8x4xf32>
    %71 = vector.shape_cast %70 : vector<8x8x4xf32> to vector<64x4xf32>
    %c0_108 = arith.constant 0 : index
    %c12 = arith.constant 12 : index
    %c0_109 = arith.constant 0 : index
    %c0_110 = arith.constant 0 : index
    %c0_111 = arith.constant 0 : index
    %72 = vector.load %arg1[%c0_108, %c12, %c0_109, %c0_110, %c0_111] : memref<1x16x9x9x4xf32, #tpu.memory_space<vmem>>, vector<1x1x8x8x4xf32>
    %73 = vector.shape_cast %72 : vector<1x1x8x8x4xf32> to vector<8x8x4xf32>
    %74 = vector.shape_cast %73 : vector<8x8x4xf32> to vector<64x4xf32>
    %c0_112 = arith.constant 0 : index
    %c13 = arith.constant 13 : index
    %c0_113 = arith.constant 0 : index
    %c0_114 = arith.constant 0 : index
    %c0_115 = arith.constant 0 : index
    %75 = vector.load %arg1[%c0_112, %c13, %c0_113, %c0_114, %c0_115] : memref<1x16x9x9x4xf32, #tpu.memory_space<vmem>>, vector<1x1x8x8x4xf32>
    %76 = vector.shape_cast %75 : vector<1x1x8x8x4xf32> to vector<8x8x4xf32>
    %77 = vector.shape_cast %76 : vector<8x8x4xf32> to vector<64x4xf32>
    %c0_116 = arith.constant 0 : index
    %c14 = arith.constant 14 : index
    %c0_117 = arith.constant 0 : index
    %c0_118 = arith.constant 0 : index
    %c0_119 = arith.constant 0 : index
    %78 = vector.load %arg1[%c0_116, %c14, %c0_117, %c0_118, %c0_119] : memref<1x16x9x9x4xf32, #tpu.memory_space<vmem>>, vector<1x1x8x8x4xf32>
    %79 = vector.shape_cast %78 : vector<1x1x8x8x4xf32> to vector<8x8x4xf32>
    %80 = vector.shape_cast %79 : vector<8x8x4xf32> to vector<64x4xf32>
    %c0_120 = arith.constant 0 : index
    %c15 = arith.constant 15 : index
    %c0_121 = arith.constant 0 : index
    %c0_122 = arith.constant 0 : index
    %c0_123 = arith.constant 0 : index
    %81 = vector.load %arg1[%c0_120, %c15, %c0_121, %c0_122, %c0_123] : memref<1x16x9x9x4xf32, #tpu.memory_space<vmem>>, vector<1x1x8x8x4xf32>
    %82 = vector.shape_cast %81 : vector<1x1x8x8x4xf32> to vector<8x8x4xf32>
    %83 = vector.shape_cast %82 : vector<8x8x4xf32> to vector<64x4xf32>
    %c0_124 = arith.constant 0 : index
    %c12_125 = arith.constant 12 : index
    %c0_126 = arith.constant 0 : index
    %c1_127 = arith.constant 1 : index
    %c0_128 = arith.constant 0 : index
    %84 = vector.load %arg1[%c0_124, %c12_125, %c0_126, %c1_127, %c0_128] : memref<1x16x9x9x4xf32, #tpu.memory_space<vmem>>, vector<1x1x8x8x4xf32>
    %85 = vector.shape_cast %84 : vector<1x1x8x8x4xf32> to vector<8x8x4xf32>
    %86 = vector.shape_cast %85 : vector<8x8x4xf32> to vector<64x4xf32>
    %c0_129 = arith.constant 0 : index
    %c13_130 = arith.constant 13 : index
    %c0_131 = arith.constant 0 : index
    %c1_132 = arith.constant 1 : index
    %c0_133 = arith.constant 0 : index
    %87 = vector.load %arg1[%c0_129, %c13_130, %c0_131, %c1_132, %c0_133] : memref<1x16x9x9x4xf32, #tpu.memory_space<vmem>>, vector<1x1x8x8x4xf32>
    %88 = vector.shape_cast %87 : vector<1x1x8x8x4xf32> to vector<8x8x4xf32>
    %89 = vector.shape_cast %88 : vector<8x8x4xf32> to vector<64x4xf32>
    %c0_134 = arith.constant 0 : index
    %c14_135 = arith.constant 14 : index
    %c0_136 = arith.constant 0 : index
    %c1_137 = arith.constant 1 : index
    %c0_138 = arith.constant 0 : index
    %90 = vector.load %arg1[%c0_134, %c14_135, %c0_136, %c1_137, %c0_138] : memref<1x16x9x9x4xf32, #tpu.memory_space<vmem>>, vector<1x1x8x8x4xf32>
    %91 = vector.shape_cast %90 : vector<1x1x8x8x4xf32> to vector<8x8x4xf32>
    %92 = vector.shape_cast %91 : vector<8x8x4xf32> to vector<64x4xf32>
    %c0_139 = arith.constant 0 : index
    %c15_140 = arith.constant 15 : index
    %c0_141 = arith.constant 0 : index
    %c1_142 = arith.constant 1 : index
    %c0_143 = arith.constant 0 : index
    %93 = vector.load %arg1[%c0_139, %c15_140, %c0_141, %c1_142, %c0_143] : memref<1x16x9x9x4xf32, #tpu.memory_space<vmem>>, vector<1x1x8x8x4xf32>
    %94 = vector.shape_cast %93 : vector<1x1x8x8x4xf32> to vector<8x8x4xf32>
    %95 = vector.shape_cast %94 : vector<8x8x4xf32> to vector<64x4xf32>
    %c0_144 = arith.constant 0 : index
    %c0_145 = arith.constant 0 : index
    %c1_146 = arith.constant 1 : index
    %c0_147 = arith.constant 0 : index
    %c0_148 = arith.constant 0 : index
    %96 = vector.load %arg1[%c0_144, %c0_145, %c1_146, %c0_147, %c0_148] : memref<1x16x9x9x4xf32, #tpu.memory_space<vmem>>, vector<1x1x8x8x4xf32>
    %97 = vector.shape_cast %96 : vector<1x1x8x8x4xf32> to vector<8x8x4xf32>
    %98 = vector.shape_cast %97 : vector<8x8x4xf32> to vector<64x4xf32>
    %c0_149 = arith.constant 0 : index
    %c1_150 = arith.constant 1 : index
    %c1_151 = arith.constant 1 : index
    %c0_152 = arith.constant 0 : index
    %c0_153 = arith.constant 0 : index
    %99 = vector.load %arg1[%c0_149, %c1_150, %c1_151, %c0_152, %c0_153] : memref<1x16x9x9x4xf32, #tpu.memory_space<vmem>>, vector<1x1x8x8x4xf32>
    %100 = vector.shape_cast %99 : vector<1x1x8x8x4xf32> to vector<8x8x4xf32>
    %101 = vector.shape_cast %100 : vector<8x8x4xf32> to vector<64x4xf32>
    %c0_154 = arith.constant 0 : index
    %c2_155 = arith.constant 2 : index
    %c1_156 = arith.constant 1 : index
    %c0_157 = arith.constant 0 : index
    %c0_158 = arith.constant 0 : index
    %102 = vector.load %arg1[%c0_154, %c2_155, %c1_156, %c0_157, %c0_158] : memref<1x16x9x9x4xf32, #tpu.memory_space<vmem>>, vector<1x1x8x8x4xf32>
    %103 = vector.shape_cast %102 : vector<1x1x8x8x4xf32> to vector<8x8x4xf32>
    %104 = vector.shape_cast %103 : vector<8x8x4xf32> to vector<64x4xf32>
    %c0_159 = arith.constant 0 : index
    %c3_160 = arith.constant 3 : index
    %c1_161 = arith.constant 1 : index
    %c0_162 = arith.constant 0 : index
    %c0_163 = arith.constant 0 : index
    %105 = vector.load %arg1[%c0_159, %c3_160, %c1_161, %c0_162, %c0_163] : memref<1x16x9x9x4xf32, #tpu.memory_space<vmem>>, vector<1x1x8x8x4xf32>
    %106 = vector.shape_cast %105 : vector<1x1x8x8x4xf32> to vector<8x8x4xf32>
    %107 = vector.shape_cast %106 : vector<8x8x4xf32> to vector<64x4xf32>
    %c0_164 = arith.constant 0 : index
    %c0_165 = arith.constant 0 : index
    %c1_166 = arith.constant 1 : index
    %c1_167 = arith.constant 1 : index
    %c0_168 = arith.constant 0 : index
    %108 = vector.load %arg1[%c0_164, %c0_165, %c1_166, %c1_167, %c0_168] : memref<1x16x9x9x4xf32, #tpu.memory_space<vmem>>, vector<1x1x8x8x4xf32>
    %109 = vector.shape_cast %108 : vector<1x1x8x8x4xf32> to vector<8x8x4xf32>
    %110 = vector.shape_cast %109 : vector<8x8x4xf32> to vector<64x4xf32>
    %c0_169 = arith.constant 0 : index
    %c1_170 = arith.constant 1 : index
    %c1_171 = arith.constant 1 : index
    %c1_172 = arith.constant 1 : index
    %c0_173 = arith.constant 0 : index
    %111 = vector.load %arg1[%c0_169, %c1_170, %c1_171, %c1_172, %c0_173] : memref<1x16x9x9x4xf32, #tpu.memory_space<vmem>>, vector<1x1x8x8x4xf32>
    %112 = vector.shape_cast %111 : vector<1x1x8x8x4xf32> to vector<8x8x4xf32>
    %113 = vector.shape_cast %112 : vector<8x8x4xf32> to vector<64x4xf32>
    %c0_174 = arith.constant 0 : index
    %c2_175 = arith.constant 2 : index
    %c1_176 = arith.constant 1 : index
    %c1_177 = arith.constant 1 : index
    %c0_178 = arith.constant 0 : index
    %114 = vector.load %arg1[%c0_174, %c2_175, %c1_176, %c1_177, %c0_178] : memref<1x16x9x9x4xf32, #tpu.memory_space<vmem>>, vector<1x1x8x8x4xf32>
    %115 = vector.shape_cast %114 : vector<1x1x8x8x4xf32> to vector<8x8x4xf32>
    %116 = vector.shape_cast %115 : vector<8x8x4xf32> to vector<64x4xf32>
    %c0_179 = arith.constant 0 : index
    %c3_180 = arith.constant 3 : index
    %c1_181 = arith.constant 1 : index
    %c1_182 = arith.constant 1 : index
    %c0_183 = arith.constant 0 : index
    %117 = vector.load %arg1[%c0_179, %c3_180, %c1_181, %c1_182, %c0_183] : memref<1x16x9x9x4xf32, #tpu.memory_space<vmem>>, vector<1x1x8x8x4xf32>
    %118 = vector.shape_cast %117 : vector<1x1x8x8x4xf32> to vector<8x8x4xf32>
    %119 = vector.shape_cast %118 : vector<8x8x4xf32> to vector<64x4xf32>
    %c0_184 = arith.constant 0 : index
    %c4_185 = arith.constant 4 : index
    %c1_186 = arith.constant 1 : index
    %c0_187 = arith.constant 0 : index
    %c0_188 = arith.constant 0 : index
    %120 = vector.load %arg1[%c0_184, %c4_185, %c1_186, %c0_187, %c0_188] : memref<1x16x9x9x4xf32, #tpu.memory_space<vmem>>, vector<1x1x8x8x4xf32>
    %121 = vector.shape_cast %120 : vector<1x1x8x8x4xf32> to vector<8x8x4xf32>
    %122 = vector.shape_cast %121 : vector<8x8x4xf32> to vector<64x4xf32>
    %c0_189 = arith.constant 0 : index
    %c5_190 = arith.constant 5 : index
    %c1_191 = arith.constant 1 : index
    %c0_192 = arith.constant 0 : index
    %c0_193 = arith.constant 0 : index
    %123 = vector.load %arg1[%c0_189, %c5_190, %c1_191, %c0_192, %c0_193] : memref<1x16x9x9x4xf32, #tpu.memory_space<vmem>>, vector<1x1x8x8x4xf32>
    %124 = vector.shape_cast %123 : vector<1x1x8x8x4xf32> to vector<8x8x4xf32>
    %125 = vector.shape_cast %124 : vector<8x8x4xf32> to vector<64x4xf32>
    %c0_194 = arith.constant 0 : index
    %c6_195 = arith.constant 6 : index
    %c1_196 = arith.constant 1 : index
    %c0_197 = arith.constant 0 : index
    %c0_198 = arith.constant 0 : index
    %126 = vector.load %arg1[%c0_194, %c6_195, %c1_196, %c0_197, %c0_198] : memref<1x16x9x9x4xf32, #tpu.memory_space<vmem>>, vector<1x1x8x8x4xf32>
    %127 = vector.shape_cast %126 : vector<1x1x8x8x4xf32> to vector<8x8x4xf32>
    %128 = vector.shape_cast %127 : vector<8x8x4xf32> to vector<64x4xf32>
    %c0_199 = arith.constant 0 : index
    %c7_200 = arith.constant 7 : index
    %c1_201 = arith.constant 1 : index
    %c0_202 = arith.constant 0 : index
    %c0_203 = arith.constant 0 : index
    %129 = vector.load %arg1[%c0_199, %c7_200, %c1_201, %c0_202, %c0_203] : memref<1x16x9x9x4xf32, #tpu.memory_space<vmem>>, vector<1x1x8x8x4xf32>
    %130 = vector.shape_cast %129 : vector<1x1x8x8x4xf32> to vector<8x8x4xf32>
    %131 = vector.shape_cast %130 : vector<8x8x4xf32> to vector<64x4xf32>
    %c0_204 = arith.constant 0 : index
    %c4_205 = arith.constant 4 : index
    %c1_206 = arith.constant 1 : index
    %c1_207 = arith.constant 1 : index
    %c0_208 = arith.constant 0 : index
    %132 = vector.load %arg1[%c0_204, %c4_205, %c1_206, %c1_207, %c0_208] : memref<1x16x9x9x4xf32, #tpu.memory_space<vmem>>, vector<1x1x8x8x4xf32>
    %133 = vector.shape_cast %132 : vector<1x1x8x8x4xf32> to vector<8x8x4xf32>
    %134 = vector.shape_cast %133 : vector<8x8x4xf32> to vector<64x4xf32>
    %c0_209 = arith.constant 0 : index
    %c5_210 = arith.constant 5 : index
    %c1_211 = arith.constant 1 : index
    %c1_212 = arith.constant 1 : index
    %c0_213 = arith.constant 0 : index
    %135 = vector.load %arg1[%c0_209, %c5_210, %c1_211, %c1_212, %c0_213] : memref<1x16x9x9x4xf32, #tpu.memory_space<vmem>>, vector<1x1x8x8x4xf32>
    %136 = vector.shape_cast %135 : vector<1x1x8x8x4xf32> to vector<8x8x4xf32>
    %137 = vector.shape_cast %136 : vector<8x8x4xf32> to vector<64x4xf32>
    %c0_214 = arith.constant 0 : index
    %c6_215 = arith.constant 6 : index
    %c1_216 = arith.constant 1 : index
    %c1_217 = arith.constant 1 : index
    %c0_218 = arith.constant 0 : index
    %138 = vector.load %arg1[%c0_214, %c6_215, %c1_216, %c1_217, %c0_218] : memref<1x16x9x9x4xf32, #tpu.memory_space<vmem>>, vector<1x1x8x8x4xf32>
    %139 = vector.shape_cast %138 : vector<1x1x8x8x4xf32> to vector<8x8x4xf32>
    %140 = vector.shape_cast %139 : vector<8x8x4xf32> to vector<64x4xf32>
    %c0_219 = arith.constant 0 : index
    %c7_220 = arith.constant 7 : index
    %c1_221 = arith.constant 1 : index
    %c1_222 = arith.constant 1 : index
    %c0_223 = arith.constant 0 : index
    %141 = vector.load %arg1[%c0_219, %c7_220, %c1_221, %c1_222, %c0_223] : memref<1x16x9x9x4xf32, #tpu.memory_space<vmem>>, vector<1x1x8x8x4xf32>
    %142 = vector.shape_cast %141 : vector<1x1x8x8x4xf32> to vector<8x8x4xf32>
    %143 = vector.shape_cast %142 : vector<8x8x4xf32> to vector<64x4xf32>
    %c0_224 = arith.constant 0 : index
    %c8_225 = arith.constant 8 : index
    %c1_226 = arith.constant 1 : index
    %c0_227 = arith.constant 0 : index
    %c0_228 = arith.constant 0 : index
    %144 = vector.load %arg1[%c0_224, %c8_225, %c1_226, %c0_227, %c0_228] : memref<1x16x9x9x4xf32, #tpu.memory_space<vmem>>, vector<1x1x8x8x4xf32>
    %145 = vector.shape_cast %144 : vector<1x1x8x8x4xf32> to vector<8x8x4xf32>
    %146 = vector.shape_cast %145 : vector<8x8x4xf32> to vector<64x4xf32>
    %c0_229 = arith.constant 0 : index
    %c9_230 = arith.constant 9 : index
    %c1_231 = arith.constant 1 : index
    %c0_232 = arith.constant 0 : index
    %c0_233 = arith.constant 0 : index
    %147 = vector.load %arg1[%c0_229, %c9_230, %c1_231, %c0_232, %c0_233] : memref<1x16x9x9x4xf32, #tpu.memory_space<vmem>>, vector<1x1x8x8x4xf32>
    %148 = vector.shape_cast %147 : vector<1x1x8x8x4xf32> to vector<8x8x4xf32>
    %149 = vector.shape_cast %148 : vector<8x8x4xf32> to vector<64x4xf32>
    %c0_234 = arith.constant 0 : index
    %c10_235 = arith.constant 10 : index
    %c1_236 = arith.constant 1 : index
    %c0_237 = arith.constant 0 : index
    %c0_238 = arith.constant 0 : index
    %150 = vector.load %arg1[%c0_234, %c10_235, %c1_236, %c0_237, %c0_238] : memref<1x16x9x9x4xf32, #tpu.memory_space<vmem>>, vector<1x1x8x8x4xf32>
    %151 = vector.shape_cast %150 : vector<1x1x8x8x4xf32> to vector<8x8x4xf32>
    %152 = vector.shape_cast %151 : vector<8x8x4xf32> to vector<64x4xf32>
    %c0_239 = arith.constant 0 : index
    %c11_240 = arith.constant 11 : index
    %c1_241 = arith.constant 1 : index
    %c0_242 = arith.constant 0 : index
    %c0_243 = arith.constant 0 : index
    %153 = vector.load %arg1[%c0_239, %c11_240, %c1_241, %c0_242, %c0_243] : memref<1x16x9x9x4xf32, #tpu.memory_space<vmem>>, vector<1x1x8x8x4xf32>
    %154 = vector.shape_cast %153 : vector<1x1x8x8x4xf32> to vector<8x8x4xf32>
    %155 = vector.shape_cast %154 : vector<8x8x4xf32> to vector<64x4xf32>
    %c0_244 = arith.constant 0 : index
    %c8_245 = arith.constant 8 : index
    %c1_246 = arith.constant 1 : index
    %c1_247 = arith.constant 1 : index
    %c0_248 = arith.constant 0 : index
    %156 = vector.load %arg1[%c0_244, %c8_245, %c1_246, %c1_247, %c0_248] : memref<1x16x9x9x4xf32, #tpu.memory_space<vmem>>, vector<1x1x8x8x4xf32>
    %157 = vector.shape_cast %156 : vector<1x1x8x8x4xf32> to vector<8x8x4xf32>
    %158 = vector.shape_cast %157 : vector<8x8x4xf32> to vector<64x4xf32>
    %c0_249 = arith.constant 0 : index
    %c9_250 = arith.constant 9 : index
    %c1_251 = arith.constant 1 : index
    %c1_252 = arith.constant 1 : index
    %c0_253 = arith.constant 0 : index
    %159 = vector.load %arg1[%c0_249, %c9_250, %c1_251, %c1_252, %c0_253] : memref<1x16x9x9x4xf32, #tpu.memory_space<vmem>>, vector<1x1x8x8x4xf32>
    %160 = vector.shape_cast %159 : vector<1x1x8x8x4xf32> to vector<8x8x4xf32>
    %161 = vector.shape_cast %160 : vector<8x8x4xf32> to vector<64x4xf32>
    %c0_254 = arith.constant 0 : index
    %c10_255 = arith.constant 10 : index
    %c1_256 = arith.constant 1 : index
    %c1_257 = arith.constant 1 : index
    %c0_258 = arith.constant 0 : index
    %162 = vector.load %arg1[%c0_254, %c10_255, %c1_256, %c1_257, %c0_258] : memref<1x16x9x9x4xf32, #tpu.memory_space<vmem>>, vector<1x1x8x8x4xf32>
    %163 = vector.shape_cast %162 : vector<1x1x8x8x4xf32> to vector<8x8x4xf32>
    %164 = vector.shape_cast %163 : vector<8x8x4xf32> to vector<64x4xf32>
    %c0_259 = arith.constant 0 : index
    %c11_260 = arith.constant 11 : index
    %c1_261 = arith.constant 1 : index
    %c1_262 = arith.constant 1 : index
    %c0_263 = arith.constant 0 : index
    %165 = vector.load %arg1[%c0_259, %c11_260, %c1_261, %c1_262, %c0_263] : memref<1x16x9x9x4xf32, #tpu.memory_space<vmem>>, vector<1x1x8x8x4xf32>
    %166 = vector.shape_cast %165 : vector<1x1x8x8x4xf32> to vector<8x8x4xf32>
    %167 = vector.shape_cast %166 : vector<8x8x4xf32> to vector<64x4xf32>
    %c0_264 = arith.constant 0 : index
    %c12_265 = arith.constant 12 : index
    %c1_266 = arith.constant 1 : index
    %c0_267 = arith.constant 0 : index
    %c0_268 = arith.constant 0 : index
    %168 = vector.load %arg1[%c0_264, %c12_265, %c1_266, %c0_267, %c0_268] : memref<1x16x9x9x4xf32, #tpu.memory_space<vmem>>, vector<1x1x8x8x4xf32>
    %169 = vector.shape_cast %168 : vector<1x1x8x8x4xf32> to vector<8x8x4xf32>
    %170 = vector.shape_cast %169 : vector<8x8x4xf32> to vector<64x4xf32>
    %c0_269 = arith.constant 0 : index
    %c13_270 = arith.constant 13 : index
    %c1_271 = arith.constant 1 : index
    %c0_272 = arith.constant 0 : index
    %c0_273 = arith.constant 0 : index
    %171 = vector.load %arg1[%c0_269, %c13_270, %c1_271, %c0_272, %c0_273] : memref<1x16x9x9x4xf32, #tpu.memory_space<vmem>>, vector<1x1x8x8x4xf32>
    %172 = vector.shape_cast %171 : vector<1x1x8x8x4xf32> to vector<8x8x4xf32>
    %173 = vector.shape_cast %172 : vector<8x8x4xf32> to vector<64x4xf32>
    %c0_274 = arith.constant 0 : index
    %c14_275 = arith.constant 14 : index
    %c1_276 = arith.constant 1 : index
    %c0_277 = arith.constant 0 : index
    %c0_278 = arith.constant 0 : index
    %174 = vector.load %arg1[%c0_274, %c14_275, %c1_276, %c0_277, %c0_278] : memref<1x16x9x9x4xf32, #tpu.memory_space<vmem>>, vector<1x1x8x8x4xf32>
    %175 = vector.shape_cast %174 : vector<1x1x8x8x4xf32> to vector<8x8x4xf32>
    %176 = vector.shape_cast %175 : vector<8x8x4xf32> to vector<64x4xf32>
    %c0_279 = arith.constant 0 : index
    %c15_280 = arith.constant 15 : index
    %c1_281 = arith.constant 1 : index
    %c0_282 = arith.constant 0 : index
    %c0_283 = arith.constant 0 : index
    %177 = vector.load %arg1[%c0_279, %c15_280, %c1_281, %c0_282, %c0_283] : memref<1x16x9x9x4xf32, #tpu.memory_space<vmem>>, vector<1x1x8x8x4xf32>
    %178 = vector.shape_cast %177 : vector<1x1x8x8x4xf32> to vector<8x8x4xf32>
    %179 = vector.shape_cast %178 : vector<8x8x4xf32> to vector<64x4xf32>
    %c0_284 = arith.constant 0 : index
    %c12_285 = arith.constant 12 : index
    %c1_286 = arith.constant 1 : index
    %c1_287 = arith.constant 1 : index
    %c0_288 = arith.constant 0 : index
    %180 = vector.load %arg1[%c0_284, %c12_285, %c1_286, %c1_287, %c0_288] : memref<1x16x9x9x4xf32, #tpu.memory_space<vmem>>, vector<1x1x8x8x4xf32>
    %181 = vector.shape_cast %180 : vector<1x1x8x8x4xf32> to vector<8x8x4xf32>
    %182 = vector.shape_cast %181 : vector<8x8x4xf32> to vector<64x4xf32>
    %c0_289 = arith.constant 0 : index
    %c13_290 = arith.constant 13 : index
    %c1_291 = arith.constant 1 : index
    %c1_292 = arith.constant 1 : index
    %c0_293 = arith.constant 0 : index
    %183 = vector.load %arg1[%c0_289, %c13_290, %c1_291, %c1_292, %c0_293] : memref<1x16x9x9x4xf32, #tpu.memory_space<vmem>>, vector<1x1x8x8x4xf32>
    %184 = vector.shape_cast %183 : vector<1x1x8x8x4xf32> to vector<8x8x4xf32>
    %185 = vector.shape_cast %184 : vector<8x8x4xf32> to vector<64x4xf32>
    %c0_294 = arith.constant 0 : index
    %c14_295 = arith.constant 14 : index
    %c1_296 = arith.constant 1 : index
    %c1_297 = arith.constant 1 : index
    %c0_298 = arith.constant 0 : index
    %186 = vector.load %arg1[%c0_294, %c14_295, %c1_296, %c1_297, %c0_298] : memref<1x16x9x9x4xf32, #tpu.memory_space<vmem>>, vector<1x1x8x8x4xf32>
    %187 = vector.shape_cast %186 : vector<1x1x8x8x4xf32> to vector<8x8x4xf32>
    %188 = vector.shape_cast %187 : vector<8x8x4xf32> to vector<64x4xf32>
    %c0_299 = arith.constant 0 : index
    %c15_300 = arith.constant 15 : index
    %c1_301 = arith.constant 1 : index
    %c1_302 = arith.constant 1 : index
    %c0_303 = arith.constant 0 : index
    %189 = vector.load %arg1[%c0_299, %c15_300, %c1_301, %c1_302, %c0_303] : memref<1x16x9x9x4xf32, #tpu.memory_space<vmem>>, vector<1x1x8x8x4xf32>
    %190 = vector.shape_cast %189 : vector<1x1x8x8x4xf32> to vector<8x8x4xf32>
    %191 = vector.shape_cast %190 : vector<8x8x4xf32> to vector<64x4xf32>
    %192 = tpu.concatenate %2, %5, %8, %11, %14, %17, %20, %23, %26, %29, %32, %35, %38, %41, %44, %47 in 1 : vector<64x4xf32>, vector<64x4xf32>, vector<64x4xf32>, vector<64x4xf32>, vector<64x4xf32>, vector<64x4xf32>, vector<64x4xf32>, vector<64x4xf32>, vector<64x4xf32>, vector<64x4xf32>, vector<64x4xf32>, vector<64x4xf32>, vector<64x4xf32>, vector<64x4xf32>, vector<64x4xf32>, vector<64x4xf32> -> vector<64x64xf32>
    %193 = tpu.concatenate %50, %53, %56, %59, %62, %65, %68, %71, %74, %77, %80, %83, %86, %89, %92, %95 in 1 : vector<64x4xf32>, vector<64x4xf32>, vector<64x4xf32>, vector<64x4xf32>, vector<64x4xf32>, vector<64x4xf32>, vector<64x4xf32>, vector<64x4xf32>, vector<64x4xf32>, vector<64x4xf32>, vector<64x4xf32>, vector<64x4xf32>, vector<64x4xf32>, vector<64x4xf32>, vector<64x4xf32>, vector<64x4xf32> -> vector<64x64xf32>
    %194 = tpu.concatenate %98, %101, %104, %107, %110, %113, %116, %119, %122, %125, %128, %131, %134, %137, %140, %143 in 1 : vector<64x4xf32>, vector<64x4xf32>, vector<64x4xf32>, vector<64x4xf32>, vector<64x4xf32>, vector<64x4xf32>, vector<64x4xf32>, vector<64x4xf32>, vector<64x4xf32>, vector<64x4xf32>, vector<64x4xf32>, vector<64x4xf32>, vector<64x4xf32>, vector<64x4xf32>, vector<64x4xf32>, vector<64x4xf32> -> vector<64x64xf32>
    %195 = tpu.concatenate %146, %149, %152, %155, %158, %161, %164, %167, %170, %173, %176, %179, %182, %185, %188, %191 in 1 : vector<64x4xf32>, vector<64x4xf32>, vector<64x4xf32>, vector<64x4xf32>, vector<64x4xf32>, vector<64x4xf32>, vector<64x4xf32>, vector<64x4xf32>, vector<64x4xf32>, vector<64x4xf32>, vector<64x4xf32>, vector<64x4xf32>, vector<64x4xf32>, vector<64x4xf32>, vector<64x4xf32>, vector<64x4xf32> -> vector<64x64xf32>
    %196 = tpu.concatenate %192, %193, %194, %195 in 1 : vector<64x64xf32>, vector<64x64xf32>, vector<64x64xf32>, vector<64x64xf32> -> vector<64x256xf32>
    %197 = arith.truncf %196 : vector<64x256xf32> to vector<64x256xbf16>
    %c0_304 = arith.constant 0 : index
    %c0_305 = arith.constant 0 : index
    %198 = vector.load %arg2[%c0_304, %c0_305] : memref<256x32xbf16, #tpu.memory_space<vmem>>, vector<256x32xbf16>
    %cst = arith.constant dense<0.000000e+00> : vector<64x32xf32>
    %199 = tpu.matmul %197, %198, %cst {dimension_numbers = #tpu.dot_dimension_numbers<[1], [0], [0], [1], [0, 0, 1, 1], [], []>} : vector<64x256xbf16>, vector<256x32xbf16>, vector<64x32xf32> -> vector<64x32xf32>
    %c0_306 = arith.constant 0 : index
    %c0_307 = arith.constant 0 : index
    %200 = vector.load %arg3[%c0_306, %c0_307] : memref<1x32xf32, #tpu.memory_space<vmem>>, vector<1x32xf32>
    %201 = vector.broadcast %200 : vector<1x32xf32> to vector<64x32xf32>
    %202 = arith.addf %199, %201 : vector<64x32xf32>
    %cst_308 = arith.constant 0.000000e+00 : f32
    %203 = vector.broadcast %cst_308 : f32 to vector<64x32xf32>
    %204 = arith.maximumf %202, %203 : vector<64x32xf32>
    %205 = vector.extract_strided_slice %204 {offsets = [0, 0], sizes = [1, 32], strides = [1, 1]} : vector<64x32xf32> to vector<1x32xf32>
    %206 = vector.extract_strided_slice %204 {offsets = [2, 0], sizes = [1, 32], strides = [1, 1]} : vector<64x32xf32> to vector<1x32xf32>
    %207 = vector.extract_strided_slice %204 {offsets = [4, 0], sizes = [1, 32], strides = [1, 1]} : vector<64x32xf32> to vector<1x32xf32>
    %208 = vector.extract_strided_slice %204 {offsets = [16, 0], sizes = [1, 32], strides = [1, 1]} : vector<64x32xf32> to vector<1x32xf32>
    %209 = vector.extract_strided_slice %204 {offsets = [18, 0], sizes = [1, 32], strides = [1, 1]} : vector<64x32xf32> to vector<1x32xf32>
    %210 = vector.extract_strided_slice %204 {offsets = [20, 0], sizes = [1, 32], strides = [1, 1]} : vector<64x32xf32> to vector<1x32xf32>
    %211 = vector.extract_strided_slice %204 {offsets = [32, 0], sizes = [1, 32], strides = [1, 1]} : vector<64x32xf32> to vector<1x32xf32>
    %212 = vector.extract_strided_slice %204 {offsets = [34, 0], sizes = [1, 32], strides = [1, 1]} : vector<64x32xf32> to vector<1x32xf32>
    %213 = vector.extract_strided_slice %204 {offsets = [36, 0], sizes = [1, 32], strides = [1, 1]} : vector<64x32xf32> to vector<1x32xf32>
    %214 = tpu.concatenate %205, %206, %207, %208, %209, %210, %211, %212, %213 in 0 : vector<1x32xf32>, vector<1x32xf32>, vector<1x32xf32>, vector<1x32xf32>, vector<1x32xf32>, vector<1x32xf32>, vector<1x32xf32>, vector<1x32xf32>, vector<1x32xf32> -> vector<9x32xf32>
    %215 = vector.extract_strided_slice %204 {offsets = [1, 0], sizes = [1, 32], strides = [1, 1]} : vector<64x32xf32> to vector<1x32xf32>
    %216 = vector.extract_strided_slice %204 {offsets = [3, 0], sizes = [1, 32], strides = [1, 1]} : vector<64x32xf32> to vector<1x32xf32>
    %217 = vector.extract_strided_slice %204 {offsets = [5, 0], sizes = [1, 32], strides = [1, 1]} : vector<64x32xf32> to vector<1x32xf32>
    %218 = vector.extract_strided_slice %204 {offsets = [17, 0], sizes = [1, 32], strides = [1, 1]} : vector<64x32xf32> to vector<1x32xf32>
    %219 = vector.extract_strided_slice %204 {offsets = [19, 0], sizes = [1, 32], strides = [1, 1]} : vector<64x32xf32> to vector<1x32xf32>
    %220 = vector.extract_strided_slice %204 {offsets = [21, 0], sizes = [1, 32], strides = [1, 1]} : vector<64x32xf32> to vector<1x32xf32>
    %221 = vector.extract_strided_slice %204 {offsets = [33, 0], sizes = [1, 32], strides = [1, 1]} : vector<64x32xf32> to vector<1x32xf32>
    %222 = vector.extract_strided_slice %204 {offsets = [35, 0], sizes = [1, 32], strides = [1, 1]} : vector<64x32xf32> to vector<1x32xf32>
    %223 = vector.extract_strided_slice %204 {offsets = [37, 0], sizes = [1, 32], strides = [1, 1]} : vector<64x32xf32> to vector<1x32xf32>
    %224 = tpu.concatenate %215, %216, %217, %218, %219, %220, %221, %222, %223 in 0 : vector<1x32xf32>, vector<1x32xf32>, vector<1x32xf32>, vector<1x32xf32>, vector<1x32xf32>, vector<1x32xf32>, vector<1x32xf32>, vector<1x32xf32>, vector<1x32xf32> -> vector<9x32xf32>
    %225 = vector.extract_strided_slice %204 {offsets = [2, 0], sizes = [1, 32], strides = [1, 1]} : vector<64x32xf32> to vector<1x32xf32>
    %226 = vector.extract_strided_slice %204 {offsets = [4, 0], sizes = [1, 32], strides = [1, 1]} : vector<64x32xf32> to vector<1x32xf32>
    %227 = vector.extract_strided_slice %204 {offsets = [6, 0], sizes = [1, 32], strides = [1, 1]} : vector<64x32xf32> to vector<1x32xf32>
    %228 = vector.extract_strided_slice %204 {offsets = [18, 0], sizes = [1, 32], strides = [1, 1]} : vector<64x32xf32> to vector<1x32xf32>
    %229 = vector.extract_strided_slice %204 {offsets = [20, 0], sizes = [1, 32], strides = [1, 1]} : vector<64x32xf32> to vector<1x32xf32>
    %230 = vector.extract_strided_slice %204 {offsets = [22, 0], sizes = [1, 32], strides = [1, 1]} : vector<64x32xf32> to vector<1x32xf32>
    %231 = vector.extract_strided_slice %204 {offsets = [34, 0], sizes = [1, 32], strides = [1, 1]} : vector<64x32xf32> to vector<1x32xf32>
    %232 = vector.extract_strided_slice %204 {offsets = [36, 0], sizes = [1, 32], strides = [1, 1]} : vector<64x32xf32> to vector<1x32xf32>
    %233 = vector.extract_strided_slice %204 {offsets = [38, 0], sizes = [1, 32], strides = [1, 1]} : vector<64x32xf32> to vector<1x32xf32>
    %234 = tpu.concatenate %225, %226, %227, %228, %229, %230, %231, %232, %233 in 0 : vector<1x32xf32>, vector<1x32xf32>, vector<1x32xf32>, vector<1x32xf32>, vector<1x32xf32>, vector<1x32xf32>, vector<1x32xf32>, vector<1x32xf32>, vector<1x32xf32> -> vector<9x32xf32>
    %235 = vector.extract_strided_slice %204 {offsets = [3, 0], sizes = [1, 32], strides = [1, 1]} : vector<64x32xf32> to vector<1x32xf32>
    %236 = vector.extract_strided_slice %204 {offsets = [5, 0], sizes = [1, 32], strides = [1, 1]} : vector<64x32xf32> to vector<1x32xf32>
    %237 = vector.extract_strided_slice %204 {offsets = [7, 0], sizes = [1, 32], strides = [1, 1]} : vector<64x32xf32> to vector<1x32xf32>
    %238 = vector.extract_strided_slice %204 {offsets = [19, 0], sizes = [1, 32], strides = [1, 1]} : vector<64x32xf32> to vector<1x32xf32>
    %239 = vector.extract_strided_slice %204 {offsets = [21, 0], sizes = [1, 32], strides = [1, 1]} : vector<64x32xf32> to vector<1x32xf32>
    %240 = vector.extract_strided_slice %204 {offsets = [23, 0], sizes = [1, 32], strides = [1, 1]} : vector<64x32xf32> to vector<1x32xf32>
    %241 = vector.extract_strided_slice %204 {offsets = [35, 0], sizes = [1, 32], strides = [1, 1]} : vector<64x32xf32> to vector<1x32xf32>
    %242 = vector.extract_strided_slice %204 {offsets = [37, 0], sizes = [1, 32], strides = [1, 1]} : vector<64x32xf32> to vector<1x32xf32>
    %243 = vector.extract_strided_slice %204 {offsets = [39, 0], sizes = [1, 32], strides = [1, 1]} : vector<64x32xf32> to vector<1x32xf32>
    %244 = tpu.concatenate %235, %236, %237, %238, %239, %240, %241, %242, %243 in 0 : vector<1x32xf32>, vector<1x32xf32>, vector<1x32xf32>, vector<1x32xf32>, vector<1x32xf32>, vector<1x32xf32>, vector<1x32xf32>, vector<1x32xf32>, vector<1x32xf32> -> vector<9x32xf32>
    %245 = vector.extract_strided_slice %204 {offsets = [8, 0], sizes = [1, 32], strides = [1, 1]} : vector<64x32xf32> to vector<1x32xf32>
    %246 = vector.extract_strided_slice %204 {offsets = [10, 0], sizes = [1, 32], strides = [1, 1]} : vector<64x32xf32> to vector<1x32xf32>
    %247 = vector.extract_strided_slice %204 {offsets = [12, 0], sizes = [1, 32], strides = [1, 1]} : vector<64x32xf32> to vector<1x32xf32>
    %248 = vector.extract_strided_slice %204 {offsets = [24, 0], sizes = [1, 32], strides = [1, 1]} : vector<64x32xf32> to vector<1x32xf32>
    %249 = vector.extract_strided_slice %204 {offsets = [26, 0], sizes = [1, 32], strides = [1, 1]} : vector<64x32xf32> to vector<1x32xf32>
    %250 = vector.extract_strided_slice %204 {offsets = [28, 0], sizes = [1, 32], strides = [1, 1]} : vector<64x32xf32> to vector<1x32xf32>
    %251 = vector.extract_strided_slice %204 {offsets = [40, 0], sizes = [1, 32], strides = [1, 1]} : vector<64x32xf32> to vector<1x32xf32>
    %252 = vector.extract_strided_slice %204 {offsets = [42, 0], sizes = [1, 32], strides = [1, 1]} : vector<64x32xf32> to vector<1x32xf32>
    %253 = vector.extract_strided_slice %204 {offsets = [44, 0], sizes = [1, 32], strides = [1, 1]} : vector<64x32xf32> to vector<1x32xf32>
    %254 = tpu.concatenate %245, %246, %247, %248, %249, %250, %251, %252, %253 in 0 : vector<1x32xf32>, vector<1x32xf32>, vector<1x32xf32>, vector<1x32xf32>, vector<1x32xf32>, vector<1x32xf32>, vector<1x32xf32>, vector<1x32xf32>, vector<1x32xf32> -> vector<9x32xf32>
    %255 = vector.extract_strided_slice %204 {offsets = [9, 0], sizes = [1, 32], strides = [1, 1]} : vector<64x32xf32> to vector<1x32xf32>
    %256 = vector.extract_strided_slice %204 {offsets = [11, 0], sizes = [1, 32], strides = [1, 1]} : vector<64x32xf32> to vector<1x32xf32>
    %257 = vector.extract_strided_slice %204 {offsets = [13, 0], sizes = [1, 32], strides = [1, 1]} : vector<64x32xf32> to vector<1x32xf32>
    %258 = vector.extract_strided_slice %204 {offsets = [25, 0], sizes = [1, 32], strides = [1, 1]} : vector<64x32xf32> to vector<1x32xf32>
    %259 = vector.extract_strided_slice %204 {offsets = [27, 0], sizes = [1, 32], strides = [1, 1]} : vector<64x32xf32> to vector<1x32xf32>
    %260 = vector.extract_strided_slice %204 {offsets = [29, 0], sizes = [1, 32], strides = [1, 1]} : vector<64x32xf32> to vector<1x32xf32>
    %261 = vector.extract_strided_slice %204 {offsets = [41, 0], sizes = [1, 32], strides = [1, 1]} : vector<64x32xf32> to vector<1x32xf32>
    %262 = vector.extract_strided_slice %204 {offsets = [43, 0], sizes = [1, 32], strides = [1, 1]} : vector<64x32xf32> to vector<1x32xf32>
    %263 = vector.extract_strided_slice %204 {offsets = [45, 0], sizes = [1, 32], strides = [1, 1]} : vector<64x32xf32> to vector<1x32xf32>
    %264 = tpu.concatenate %255, %256, %257, %258, %259, %260, %261, %262, %263 in 0 : vector<1x32xf32>, vector<1x32xf32>, vector<1x32xf32>, vector<1x32xf32>, vector<1x32xf32>, vector<1x32xf32>, vector<1x32xf32>, vector<1x32xf32>, vector<1x32xf32> -> vector<9x32xf32>
    %265 = vector.extract_strided_slice %204 {offsets = [10, 0], sizes = [1, 32], strides = [1, 1]} : vector<64x32xf32> to vector<1x32xf32>
    %266 = vector.extract_strided_slice %204 {offsets = [12, 0], sizes = [1, 32], strides = [1, 1]} : vector<64x32xf32> to vector<1x32xf32>
    %267 = vector.extract_strided_slice %204 {offsets = [14, 0], sizes = [1, 32], strides = [1, 1]} : vector<64x32xf32> to vector<1x32xf32>
    %268 = vector.extract_strided_slice %204 {offsets = [26, 0], sizes = [1, 32], strides = [1, 1]} : vector<64x32xf32> to vector<1x32xf32>
    %269 = vector.extract_strided_slice %204 {offsets = [28, 0], sizes = [1, 32], strides = [1, 1]} : vector<64x32xf32> to vector<1x32xf32>
    %270 = vector.extract_strided_slice %204 {offsets = [30, 0], sizes = [1, 32], strides = [1, 1]} : vector<64x32xf32> to vector<1x32xf32>
    %271 = vector.extract_strided_slice %204 {offsets = [42, 0], sizes = [1, 32], strides = [1, 1]} : vector<64x32xf32> to vector<1x32xf32>
    %272 = vector.extract_strided_slice %204 {offsets = [44, 0], sizes = [1, 32], strides = [1, 1]} : vector<64x32xf32> to vector<1x32xf32>
    %273 = vector.extract_strided_slice %204 {offsets = [46, 0], sizes = [1, 32], strides = [1, 1]} : vector<64x32xf32> to vector<1x32xf32>
    %274 = tpu.concatenate %265, %266, %267, %268, %269, %270, %271, %272, %273 in 0 : vector<1x32xf32>, vector<1x32xf32>, vector<1x32xf32>, vector<1x32xf32>, vector<1x32xf32>, vector<1x32xf32>, vector<1x32xf32>, vector<1x32xf32>, vector<1x32xf32> -> vector<9x32xf32>
    %275 = vector.extract_strided_slice %204 {offsets = [11, 0], sizes = [1, 32], strides = [1, 1]} : vector<64x32xf32> to vector<1x32xf32>
    %276 = vector.extract_strided_slice %204 {offsets = [13, 0], sizes = [1, 32], strides = [1, 1]} : vector<64x32xf32> to vector<1x32xf32>
    %277 = vector.extract_strided_slice %204 {offsets = [15, 0], sizes = [1, 32], strides = [1, 1]} : vector<64x32xf32> to vector<1x32xf32>
    %278 = vector.extract_strided_slice %204 {offsets = [27, 0], sizes = [1, 32], strides = [1, 1]} : vector<64x32xf32> to vector<1x32xf32>
    %279 = vector.extract_strided_slice %204 {offsets = [29, 0], sizes = [1, 32], strides = [1, 1]} : vector<64x32xf32> to vector<1x32xf32>
    %280 = vector.extract_strided_slice %204 {offsets = [31, 0], sizes = [1, 32], strides = [1, 1]} : vector<64x32xf32> to vector<1x32xf32>
    %281 = vector.extract_strided_slice %204 {offsets = [43, 0], sizes = [1, 32], strides = [1, 1]} : vector<64x32xf32> to vector<1x32xf32>
    %282 = vector.extract_strided_slice %204 {offsets = [45, 0], sizes = [1, 32], strides = [1, 1]} : vector<64x32xf32> to vector<1x32xf32>
    %283 = vector.extract_strided_slice %204 {offsets = [47, 0], sizes = [1, 32], strides = [1, 1]} : vector<64x32xf32> to vector<1x32xf32>
    %284 = tpu.concatenate %275, %276, %277, %278, %279, %280, %281, %282, %283 in 0 : vector<1x32xf32>, vector<1x32xf32>, vector<1x32xf32>, vector<1x32xf32>, vector<1x32xf32>, vector<1x32xf32>, vector<1x32xf32>, vector<1x32xf32>, vector<1x32xf32> -> vector<9x32xf32>
    %285 = vector.extract_strided_slice %204 {offsets = [16, 0], sizes = [1, 32], strides = [1, 1]} : vector<64x32xf32> to vector<1x32xf32>
    %286 = vector.extract_strided_slice %204 {offsets = [18, 0], sizes = [1, 32], strides = [1, 1]} : vector<64x32xf32> to vector<1x32xf32>
    %287 = vector.extract_strided_slice %204 {offsets = [20, 0], sizes = [1, 32], strides = [1, 1]} : vector<64x32xf32> to vector<1x32xf32>
    %288 = vector.extract_strided_slice %204 {offsets = [32, 0], sizes = [1, 32], strides = [1, 1]} : vector<64x32xf32> to vector<1x32xf32>
    %289 = vector.extract_strided_slice %204 {offsets = [34, 0], sizes = [1, 32], strides = [1, 1]} : vector<64x32xf32> to vector<1x32xf32>
    %290 = vector.extract_strided_slice %204 {offsets = [36, 0], sizes = [1, 32], strides = [1, 1]} : vector<64x32xf32> to vector<1x32xf32>
    %291 = vector.extract_strided_slice %204 {offsets = [48, 0], sizes = [1, 32], strides = [1, 1]} : vector<64x32xf32> to vector<1x32xf32>
    %292 = vector.extract_strided_slice %204 {offsets = [50, 0], sizes = [1, 32], strides = [1, 1]} : vector<64x32xf32> to vector<1x32xf32>
    %293 = vector.extract_strided_slice %204 {offsets = [52, 0], sizes = [1, 32], strides = [1, 1]} : vector<64x32xf32> to vector<1x32xf32>
    %294 = tpu.concatenate %285, %286, %287, %288, %289, %290, %291, %292, %293 in 0 : vector<1x32xf32>, vector<1x32xf32>, vector<1x32xf32>, vector<1x32xf32>, vector<1x32xf32>, vector<1x32xf32>, vector<1x32xf32>, vector<1x32xf32>, vector<1x32xf32> -> vector<9x32xf32>
    %295 = vector.extract_strided_slice %204 {offsets = [17, 0], sizes = [1, 32], strides = [1, 1]} : vector<64x32xf32> to vector<1x32xf32>
    %296 = vector.extract_strided_slice %204 {offsets = [19, 0], sizes = [1, 32], strides = [1, 1]} : vector<64x32xf32> to vector<1x32xf32>
    %297 = vector.extract_strided_slice %204 {offsets = [21, 0], sizes = [1, 32], strides = [1, 1]} : vector<64x32xf32> to vector<1x32xf32>
    %298 = vector.extract_strided_slice %204 {offsets = [33, 0], sizes = [1, 32], strides = [1, 1]} : vector<64x32xf32> to vector<1x32xf32>
    %299 = vector.extract_strided_slice %204 {offsets = [35, 0], sizes = [1, 32], strides = [1, 1]} : vector<64x32xf32> to vector<1x32xf32>
    %300 = vector.extract_strided_slice %204 {offsets = [37, 0], sizes = [1, 32], strides = [1, 1]} : vector<64x32xf32> to vector<1x32xf32>
    %301 = vector.extract_strided_slice %204 {offsets = [49, 0], sizes = [1, 32], strides = [1, 1]} : vector<64x32xf32> to vector<1x32xf32>
    %302 = vector.extract_strided_slice %204 {offsets = [51, 0], sizes = [1, 32], strides = [1, 1]} : vector<64x32xf32> to vector<1x32xf32>
    %303 = vector.extract_strided_slice %204 {offsets = [53, 0], sizes = [1, 32], strides = [1, 1]} : vector<64x32xf32> to vector<1x32xf32>
    %304 = tpu.concatenate %295, %296, %297, %298, %299, %300, %301, %302, %303 in 0 : vector<1x32xf32>, vector<1x32xf32>, vector<1x32xf32>, vector<1x32xf32>, vector<1x32xf32>, vector<1x32xf32>, vector<1x32xf32>, vector<1x32xf32>, vector<1x32xf32> -> vector<9x32xf32>
    %305 = vector.extract_strided_slice %204 {offsets = [18, 0], sizes = [1, 32], strides = [1, 1]} : vector<64x32xf32> to vector<1x32xf32>
    %306 = vector.extract_strided_slice %204 {offsets = [20, 0], sizes = [1, 32], strides = [1, 1]} : vector<64x32xf32> to vector<1x32xf32>
    %307 = vector.extract_strided_slice %204 {offsets = [22, 0], sizes = [1, 32], strides = [1, 1]} : vector<64x32xf32> to vector<1x32xf32>
    %308 = vector.extract_strided_slice %204 {offsets = [34, 0], sizes = [1, 32], strides = [1, 1]} : vector<64x32xf32> to vector<1x32xf32>
    %309 = vector.extract_strided_slice %204 {offsets = [36, 0], sizes = [1, 32], strides = [1, 1]} : vector<64x32xf32> to vector<1x32xf32>
    %310 = vector.extract_strided_slice %204 {offsets = [38, 0], sizes = [1, 32], strides = [1, 1]} : vector<64x32xf32> to vector<1x32xf32>
    %311 = vector.extract_strided_slice %204 {offsets = [50, 0], sizes = [1, 32], strides = [1, 1]} : vector<64x32xf32> to vector<1x32xf32>
    %312 = vector.extract_strided_slice %204 {offsets = [52, 0], sizes = [1, 32], strides = [1, 1]} : vector<64x32xf32> to vector<1x32xf32>
    %313 = vector.extract_strided_slice %204 {offsets = [54, 0], sizes = [1, 32], strides = [1, 1]} : vector<64x32xf32> to vector<1x32xf32>
    %314 = tpu.concatenate %305, %306, %307, %308, %309, %310, %311, %312, %313 in 0 : vector<1x32xf32>, vector<1x32xf32>, vector<1x32xf32>, vector<1x32xf32>, vector<1x32xf32>, vector<1x32xf32>, vector<1x32xf32>, vector<1x32xf32>, vector<1x32xf32> -> vector<9x32xf32>
    %315 = vector.extract_strided_slice %204 {offsets = [19, 0], sizes = [1, 32], strides = [1, 1]} : vector<64x32xf32> to vector<1x32xf32>
    %316 = vector.extract_strided_slice %204 {offsets = [21, 0], sizes = [1, 32], strides = [1, 1]} : vector<64x32xf32> to vector<1x32xf32>
    %317 = vector.extract_strided_slice %204 {offsets = [23, 0], sizes = [1, 32], strides = [1, 1]} : vector<64x32xf32> to vector<1x32xf32>
    %318 = vector.extract_strided_slice %204 {offsets = [35, 0], sizes = [1, 32], strides = [1, 1]} : vector<64x32xf32> to vector<1x32xf32>
    %319 = vector.extract_strided_slice %204 {offsets = [37, 0], sizes = [1, 32], strides = [1, 1]} : vector<64x32xf32> to vector<1x32xf32>
    %320 = vector.extract_strided_slice %204 {offsets = [39, 0], sizes = [1, 32], strides = [1, 1]} : vector<64x32xf32> to vector<1x32xf32>
    %321 = vector.extract_strided_slice %204 {offsets = [51, 0], sizes = [1, 32], strides = [1, 1]} : vector<64x32xf32> to vector<1x32xf32>
    %322 = vector.extract_strided_slice %204 {offsets = [53, 0], sizes = [1, 32], strides = [1, 1]} : vector<64x32xf32> to vector<1x32xf32>
    %323 = vector.extract_strided_slice %204 {offsets = [55, 0], sizes = [1, 32], strides = [1, 1]} : vector<64x32xf32> to vector<1x32xf32>
    %324 = tpu.concatenate %315, %316, %317, %318, %319, %320, %321, %322, %323 in 0 : vector<1x32xf32>, vector<1x32xf32>, vector<1x32xf32>, vector<1x32xf32>, vector<1x32xf32>, vector<1x32xf32>, vector<1x32xf32>, vector<1x32xf32>, vector<1x32xf32> -> vector<9x32xf32>
    %325 = vector.extract_strided_slice %204 {offsets = [24, 0], sizes = [1, 32], strides = [1, 1]} : vector<64x32xf32> to vector<1x32xf32>
    %326 = vector.extract_strided_slice %204 {offsets = [26, 0], sizes = [1, 32], strides = [1, 1]} : vector<64x32xf32> to vector<1x32xf32>
    %327 = vector.extract_strided_slice %204 {offsets = [28, 0], sizes = [1, 32], strides = [1, 1]} : vector<64x32xf32> to vector<1x32xf32>
    %328 = vector.extract_strided_slice %204 {offsets = [40, 0], sizes = [1, 32], strides = [1, 1]} : vector<64x32xf32> to vector<1x32xf32>
    %329 = vector.extract_strided_slice %204 {offsets = [42, 0], sizes = [1, 32], strides = [1, 1]} : vector<64x32xf32> to vector<1x32xf32>
    %330 = vector.extract_strided_slice %204 {offsets = [44, 0], sizes = [1, 32], strides = [1, 1]} : vector<64x32xf32> to vector<1x32xf32>
    %331 = vector.extract_strided_slice %204 {offsets = [56, 0], sizes = [1, 32], strides = [1, 1]} : vector<64x32xf32> to vector<1x32xf32>
    %332 = vector.extract_strided_slice %204 {offsets = [58, 0], sizes = [1, 32], strides = [1, 1]} : vector<64x32xf32> to vector<1x32xf32>
    %333 = vector.extract_strided_slice %204 {offsets = [60, 0], sizes = [1, 32], strides = [1, 1]} : vector<64x32xf32> to vector<1x32xf32>
    %334 = tpu.concatenate %325, %326, %327, %328, %329, %330, %331, %332, %333 in 0 : vector<1x32xf32>, vector<1x32xf32>, vector<1x32xf32>, vector<1x32xf32>, vector<1x32xf32>, vector<1x32xf32>, vector<1x32xf32>, vector<1x32xf32>, vector<1x32xf32> -> vector<9x32xf32>
    %335 = vector.extract_strided_slice %204 {offsets = [25, 0], sizes = [1, 32], strides = [1, 1]} : vector<64x32xf32> to vector<1x32xf32>
    %336 = vector.extract_strided_slice %204 {offsets = [27, 0], sizes = [1, 32], strides = [1, 1]} : vector<64x32xf32> to vector<1x32xf32>
    %337 = vector.extract_strided_slice %204 {offsets = [29, 0], sizes = [1, 32], strides = [1, 1]} : vector<64x32xf32> to vector<1x32xf32>
    %338 = vector.extract_strided_slice %204 {offsets = [41, 0], sizes = [1, 32], strides = [1, 1]} : vector<64x32xf32> to vector<1x32xf32>
    %339 = vector.extract_strided_slice %204 {offsets = [43, 0], sizes = [1, 32], strides = [1, 1]} : vector<64x32xf32> to vector<1x32xf32>
    %340 = vector.extract_strided_slice %204 {offsets = [45, 0], sizes = [1, 32], strides = [1, 1]} : vector<64x32xf32> to vector<1x32xf32>
    %341 = vector.extract_strided_slice %204 {offsets = [57, 0], sizes = [1, 32], strides = [1, 1]} : vector<64x32xf32> to vector<1x32xf32>
    %342 = vector.extract_strided_slice %204 {offsets = [59, 0], sizes = [1, 32], strides = [1, 1]} : vector<64x32xf32> to vector<1x32xf32>
    %343 = vector.extract_strided_slice %204 {offsets = [61, 0], sizes = [1, 32], strides = [1, 1]} : vector<64x32xf32> to vector<1x32xf32>
    %344 = tpu.concatenate %335, %336, %337, %338, %339, %340, %341, %342, %343 in 0 : vector<1x32xf32>, vector<1x32xf32>, vector<1x32xf32>, vector<1x32xf32>, vector<1x32xf32>, vector<1x32xf32>, vector<1x32xf32>, vector<1x32xf32>, vector<1x32xf32> -> vector<9x32xf32>
    %345 = vector.extract_strided_slice %204 {offsets = [26, 0], sizes = [1, 32], strides = [1, 1]} : vector<64x32xf32> to vector<1x32xf32>
    %346 = vector.extract_strided_slice %204 {offsets = [28, 0], sizes = [1, 32], strides = [1, 1]} : vector<64x32xf32> to vector<1x32xf32>
    %347 = vector.extract_strided_slice %204 {offsets = [30, 0], sizes = [1, 32], strides = [1, 1]} : vector<64x32xf32> to vector<1x32xf32>
    %348 = vector.extract_strided_slice %204 {offsets = [42, 0], sizes = [1, 32], strides = [1, 1]} : vector<64x32xf32> to vector<1x32xf32>
    %349 = vector.extract_strided_slice %204 {offsets = [44, 0], sizes = [1, 32], strides = [1, 1]} : vector<64x32xf32> to vector<1x32xf32>
    %350 = vector.extract_strided_slice %204 {offsets = [46, 0], sizes = [1, 32], strides = [1, 1]} : vector<64x32xf32> to vector<1x32xf32>
    %351 = vector.extract_strided_slice %204 {offsets = [58, 0], sizes = [1, 32], strides = [1, 1]} : vector<64x32xf32> to vector<1x32xf32>
    %352 = vector.extract_strided_slice %204 {offsets = [60, 0], sizes = [1, 32], strides = [1, 1]} : vector<64x32xf32> to vector<1x32xf32>
    %353 = vector.extract_strided_slice %204 {offsets = [62, 0], sizes = [1, 32], strides = [1, 1]} : vector<64x32xf32> to vector<1x32xf32>
    %354 = tpu.concatenate %345, %346, %347, %348, %349, %350, %351, %352, %353 in 0 : vector<1x32xf32>, vector<1x32xf32>, vector<1x32xf32>, vector<1x32xf32>, vector<1x32xf32>, vector<1x32xf32>, vector<1x32xf32>, vector<1x32xf32>, vector<1x32xf32> -> vector<9x32xf32>
    %355 = vector.extract_strided_slice %204 {offsets = [27, 0], sizes = [1, 32], strides = [1, 1]} : vector<64x32xf32> to vector<1x32xf32>
    %356 = vector.extract_strided_slice %204 {offsets = [29, 0], sizes = [1, 32], strides = [1, 1]} : vector<64x32xf32> to vector<1x32xf32>
    %357 = vector.extract_strided_slice %204 {offsets = [31, 0], sizes = [1, 32], strides = [1, 1]} : vector<64x32xf32> to vector<1x32xf32>
    %358 = vector.extract_strided_slice %204 {offsets = [43, 0], sizes = [1, 32], strides = [1, 1]} : vector<64x32xf32> to vector<1x32xf32>
    %359 = vector.extract_strided_slice %204 {offsets = [45, 0], sizes = [1, 32], strides = [1, 1]} : vector<64x32xf32> to vector<1x32xf32>
    %360 = vector.extract_strided_slice %204 {offsets = [47, 0], sizes = [1, 32], strides = [1, 1]} : vector<64x32xf32> to vector<1x32xf32>
    %361 = vector.extract_strided_slice %204 {offsets = [59, 0], sizes = [1, 32], strides = [1, 1]} : vector<64x32xf32> to vector<1x32xf32>
    %362 = vector.extract_strided_slice %204 {offsets = [61, 0], sizes = [1, 32], strides = [1, 1]} : vector<64x32xf32> to vector<1x32xf32>
    %363 = vector.extract_strided_slice %204 {offsets = [63, 0], sizes = [1, 32], strides = [1, 1]} : vector<64x32xf32> to vector<1x32xf32>
    %364 = tpu.concatenate %355, %356, %357, %358, %359, %360, %361, %362, %363 in 0 : vector<1x32xf32>, vector<1x32xf32>, vector<1x32xf32>, vector<1x32xf32>, vector<1x32xf32>, vector<1x32xf32>, vector<1x32xf32>, vector<1x32xf32>, vector<1x32xf32> -> vector<9x32xf32>
    %365 = tpu.concatenate %214, %224, %234, %244, %254, %264, %274, %284, %294, %304, %314, %324, %334, %344, %354, %364 in 1 : vector<9x32xf32>, vector<9x32xf32>, vector<9x32xf32>, vector<9x32xf32>, vector<9x32xf32>, vector<9x32xf32>, vector<9x32xf32>, vector<9x32xf32>, vector<9x32xf32>, vector<9x32xf32>, vector<9x32xf32>, vector<9x32xf32>, vector<9x32xf32>, vector<9x32xf32>, vector<9x32xf32>, vector<9x32xf32> -> vector<9x512xf32>
    %366 = arith.truncf %365 : vector<9x512xf32> to vector<9x512xbf16>
    %c0_309 = arith.constant 0 : index
    %c0_310 = arith.constant 0 : index
    %367 = vector.load %arg4[%c0_309, %c0_310] : memref<512x64xbf16, #tpu.memory_space<vmem>>, vector<512x64xbf16>
    %cst_311 = arith.constant dense<0.000000e+00> : vector<9x64xf32>
    %368 = tpu.matmul %366, %367, %cst_311 {dimension_numbers = #tpu.dot_dimension_numbers<[1], [0], [0], [1], [0, 0, 1, 1], [], []>} : vector<9x512xbf16>, vector<512x64xbf16>, vector<9x64xf32> -> vector<9x64xf32>
    %c0_312 = arith.constant 0 : index
    %c0_313 = arith.constant 0 : index
    %369 = vector.load %arg5[%c0_312, %c0_313] : memref<1x64xf32, #tpu.memory_space<vmem>>, vector<1x64xf32>
    %370 = vector.broadcast %369 : vector<1x64xf32> to vector<9x64xf32>
    %371 = arith.addf %368, %370 : vector<9x64xf32>
    %cst_314 = arith.constant 0.000000e+00 : f32
    %372 = vector.broadcast %cst_314 : f32 to vector<9x64xf32>
    %373 = arith.maximumf %371, %372 : vector<9x64xf32>
    %374 = vector.extract_strided_slice %373 {offsets = [0, 0], sizes = [1, 64], strides = [1, 1]} : vector<9x64xf32> to vector<1x64xf32>
    %375 = vector.extract_strided_slice %373 {offsets = [1, 0], sizes = [1, 64], strides = [1, 1]} : vector<9x64xf32> to vector<1x64xf32>
    %376 = vector.extract_strided_slice %373 {offsets = [2, 0], sizes = [1, 64], strides = [1, 1]} : vector<9x64xf32> to vector<1x64xf32>
    %377 = vector.extract_strided_slice %373 {offsets = [3, 0], sizes = [1, 64], strides = [1, 1]} : vector<9x64xf32> to vector<1x64xf32>
    %378 = vector.extract_strided_slice %373 {offsets = [4, 0], sizes = [1, 64], strides = [1, 1]} : vector<9x64xf32> to vector<1x64xf32>
    %379 = vector.extract_strided_slice %373 {offsets = [5, 0], sizes = [1, 64], strides = [1, 1]} : vector<9x64xf32> to vector<1x64xf32>
    %380 = vector.extract_strided_slice %373 {offsets = [6, 0], sizes = [1, 64], strides = [1, 1]} : vector<9x64xf32> to vector<1x64xf32>
    %381 = vector.extract_strided_slice %373 {offsets = [7, 0], sizes = [1, 64], strides = [1, 1]} : vector<9x64xf32> to vector<1x64xf32>
    %382 = vector.extract_strided_slice %373 {offsets = [8, 0], sizes = [1, 64], strides = [1, 1]} : vector<9x64xf32> to vector<1x64xf32>
    %383 = tpu.concatenate %374, %375, %376, %377, %378, %379, %380, %381, %382 in 1 : vector<1x64xf32>, vector<1x64xf32>, vector<1x64xf32>, vector<1x64xf32>, vector<1x64xf32>, vector<1x64xf32>, vector<1x64xf32>, vector<1x64xf32>, vector<1x64xf32> -> vector<1x576xf32>
    %384 = arith.truncf %383 : vector<1x576xf32> to vector<1x576xbf16>
    %c0_315 = arith.constant 0 : index
    %c0_316 = arith.constant 0 : index
    %385 = vector.load %arg6[%c0_315, %c0_316] : memref<576x64xbf16, #tpu.memory_space<vmem>>, vector<576x64xbf16>
    %cst_317 = arith.constant dense<0.000000e+00> : vector<1x64xf32>
    %386 = tpu.matmul %384, %385, %cst_317 {dimension_numbers = #tpu.dot_dimension_numbers<[1], [0], [0], [1], [0, 0, 1, 1], [], []>} : vector<1x576xbf16>, vector<576x64xbf16>, vector<1x64xf32> -> vector<1x64xf32>
    %c0_318 = arith.constant 0 : index
    %c0_319 = arith.constant 0 : index
    %387 = vector.load %arg7[%c0_318, %c0_319] : memref<1x64xf32, #tpu.memory_space<vmem>>, vector<1x64xf32>
    %388 = arith.addf %386, %387 : vector<1x64xf32>
    %cst_320 = arith.constant 0.000000e+00 : f32
    %389 = vector.broadcast %cst_320 : f32 to vector<1x64xf32>
    %390 = arith.maximumf %388, %389 : vector<1x64xf32>
    %391 = arith.truncf %390 : vector<1x64xf32> to vector<1x64xbf16>
    %c0_321 = arith.constant 0 : index
    %c0_322 = arith.constant 0 : index
    %392 = vector.load %arg8[%c0_321, %c0_322] : memref<64x128xbf16, #tpu.memory_space<vmem>>, vector<64x128xbf16>
    %cst_323 = arith.constant dense<0.000000e+00> : vector<1x128xf32>
    %393 = tpu.matmul %391, %392, %cst_323 {dimension_numbers = #tpu.dot_dimension_numbers<[1], [0], [0], [1], [0, 0, 1, 1], [], []>} : vector<1x64xbf16>, vector<64x128xbf16>, vector<1x128xf32> -> vector<1x128xf32>
    %c0_324 = arith.constant 0 : index
    %c0_325 = arith.constant 0 : index
    %394 = vector.load %arg9[%c0_324, %c0_325] : memref<1x128xf32, #tpu.memory_space<vmem>>, vector<1x128xf32>
    %395 = arith.addf %393, %394 : vector<1x128xf32>
    %cst_326 = arith.constant 0.000000e+00 : f32
    %396 = vector.broadcast %cst_326 : f32 to vector<1x128xf32>
    %397 = arith.cmpf ogt, %395, %396 : vector<1x128xf32>
    %cst_327 = arith.constant 0.00999999977 : f32
    %398 = vector.broadcast %cst_327 : f32 to vector<1x128xf32>
    %399 = arith.mulf %398, %395 : vector<1x128xf32>
    %400 = arith.select %397, %395, %399 : vector<1x128xi1>, vector<1x128xf32>
    %401 = arith.truncf %400 : vector<1x128xf32> to vector<1x128xbf16>
    %c0_328 = arith.constant 0 : index
    %c0_329 = arith.constant 0 : index
    %402 = vector.load %arg10[%c0_328, %c0_329] : memref<128x128xbf16, #tpu.memory_space<vmem>>, vector<128x128xbf16>
    %cst_330 = arith.constant dense<0.000000e+00> : vector<1x128xf32>
    %403 = tpu.matmul %401, %402, %cst_330 {dimension_numbers = #tpu.dot_dimension_numbers<[1], [0], [0], [1], [0, 0, 1, 1], [], []>} : vector<1x128xbf16>, vector<128x128xbf16>, vector<1x128xf32> -> vector<1x128xf32>
    %c0_331 = arith.constant 0 : index
    %c0_332 = arith.constant 0 : index
    %404 = vector.load %arg11[%c0_331, %c0_332] : memref<1x128xf32, #tpu.memory_space<vmem>>, vector<1x128xf32>
    %405 = arith.addf %403, %404 : vector<1x128xf32>
    %c0_333 = arith.constant 0 : index
    %c0_334 = arith.constant 0 : index
    %c0_335 = arith.constant 0 : index
    %406 = vector.load %arg12[%c0_333, %c0_334, %c0_335] : memref<1x1x128xf32, #tpu.memory_space<vmem>>, vector<1x1x128xf32>
    %407 = vector.shape_cast %406 : vector<1x1x128xf32> to vector<1x128xf32>
    %408 = vector.shape_cast %405 : vector<1x128xf32> to vector<1x1x128xf32>
    tpu.vector_store %arg12[%c0_333, %c0_334, %c0_335], %408 {strides = array<i32>} : memref<1x1x128xf32, #tpu.memory_space<vmem>>, vector<1x1x128xf32>,
    return
  }
  func.func @transform_0(%arg0: i32) -> (i32, i32, i32, i32, i32) {
    %c0_i32 = arith.constant 0 : i32
    %c0_i32_0 = arith.constant 0 : i32
    %c0_i32_1 = arith.constant 0 : i32
    %c0_i32_2 = arith.constant 0 : i32
    %c0_i32_3 = arith.constant 0 : i32
    return %arg0, %c0_i32, %c0_i32_0, %c0_i32_1, %c0_i32_2 : i32, i32, i32, i32, i32
  }
  func.func @transform_1(%arg0: i32) -> (i32, i32) {
    %c0_i32 = arith.constant 0 : i32
    %c0_i32_0 = arith.constant 0 : i32
    %c0_i32_1 = arith.constant 0 : i32
    return %c0_i32, %c0_i32_0 : i32, i32
  }
  func.func @transform_2(%arg0: i32) -> (i32, i32) {
    %c0_i32 = arith.constant 0 : i32
    %c0_i32_0 = arith.constant 0 : i32
    %c0_i32_1 = arith.constant 0 : i32
    return %c0_i32, %c0_i32_0 : i32, i32
  }
  func.func @transform_3(%arg0: i32) -> (i32, i32) {
    %c0_i32 = arith.constant 0 : i32
    %c0_i32_0 = arith.constant 0 : i32
    %c0_i32_1 = arith.constant 0 : i32
    return %c0_i32, %c0_i32_0 : i32, i32
  }
  func.func @transform_4(%arg0: i32) -> (i32, i32) {
    %c0_i32 = arith.constant 0 : i32
    %c0_i32_0 = arith.constant 0 : i32
    %c0_i32_1 = arith.constant 0 : i32
    return %c0_i32, %c0_i32_0 : i32, i32
  }
  func.func @transform_5(%arg0: i32) -> (i32, i32) {
    %c0_i32 = arith.constant 0 : i32
    %c0_i32_0 = arith.constant 0 : i32
    %c0_i32_1 = arith.constant 0 : i32
    return %c0_i32, %c0_i32_0 : i32, i32
  }
  func.func @transform_6(%arg0: i32) -> (i32, i32) {
    %c0_i32 = arith.constant 0 : i32
    %c0_i32_0 = arith.constant 0 : i32
    %c0_i32_1 = arith.constant 0 : i32
    return %c0_i32, %c0_i32_0 : i32, i32
  }
  func.func @transform_7(%arg0: i32) -> (i32, i32) {
    %c0_i32 = arith.constant 0 : i32
    %c0_i32_0 = arith.constant 0 : i32
    %c0_i32_1 = arith.constant 0 : i32
    return %c0_i32, %c0_i32_0 : i32, i32
  }
  func.func @transform_8(%arg0: i32) -> (i32, i32) {
    %c0_i32 = arith.constant 0 : i32
    %c0_i32_0 = arith.constant 0 : i32
    %c0_i32_1 = arith.constant 0 : i32
    return %c0_i32, %c0_i32_0 : i32, i32
  }
  func.func @transform_9(%arg0: i32) -> (i32, i32) {
    %c0_i32 = arith.constant 0 : i32
    %c0_i32_0 = arith.constant 0 : i32
    %c0_i32_1 = arith.constant 0 : i32
    return %c0_i32, %c0_i32_0 : i32, i32
  }
  func.func @transform_10(%arg0: i32) -> (i32, i32) {
    %c0_i32 = arith.constant 0 : i32
    %c0_i32_0 = arith.constant 0 : i32
    %c0_i32_1 = arith.constant 0 : i32
    return %c0_i32, %c0_i32_0 : i32, i32
  }
  func.func @transform_11(%arg0: i32) -> (i32, i32, i32) {
    %c0_i32 = arith.constant 0 : i32
    %c0_i32_0 = arith.constant 0 : i32
    %c0_i32_1 = arith.constant 0 : i32
    return %arg0, %c0_i32, %c0_i32_0 : i32, i32, i32
  }
}

</mosaic_0001>

<llo_original>
// kernel: simple_cnn_forward.1
$region0: #{simple_cnn_forward.1}
  #allocation0 [shape = 'u32[]', space=smem, size = 0x4, offset = 0x4, fixed_abs, tag = 'smem constant byte address 0x4 - core index']
  #allocation1 [shape = 'u32[72,128]{1,0:T(1,128)}', space=vmem, size = 0x9000, scoped, tag = 'internal scratch']
  %s0 = inlined_call_operand.vmem [shape: f32[2,16,9,9,4], index: 0, kind: input, shape index: {}]
  %s1 = inlined_call_operand.vmem [shape: bf16[256,32], index: 1, kind: input, shape index: {}]
  %s2 = inlined_call_operand.vmem [shape: f32[1,32], index: 2, kind: input, shape index: {}]
  %s3 = inlined_call_operand.vmem [shape: bf16[512,64], index: 3, kind: input, shape index: {}]
  %s4 = inlined_call_operand.vmem [shape: f32[1,64], index: 4, kind: input, shape index: {}]
  %s5 = inlined_call_operand.vmem [shape: bf16[576,64], index: 5, kind: input, shape index: {}]
  %s6 = inlined_call_operand.vmem [shape: f32[1,64], index: 6, kind: input, shape index: {}]
  %s7 = inlined_call_operand.vmem [shape: bf16[64,128], index: 7, kind: input, shape index: {}]
  %s8 = inlined_call_operand.vmem [shape: f32[1,128], index: 8, kind: input, shape index: {}]
  %s9 = inlined_call_operand.vmem [shape: bf16[128,128], index: 9, kind: input, shape index: {}]
  %s10 = inlined_call_operand.vmem [shape: f32[1,128], index: 10, kind: input, shape index: {}]
  %s11 = inlined_call_operand.hbm [shape: f32[2,1,128], index: 11, kind: output, shape index: {}]
  %s12 = sld [smem:[#allocation0]]
  $region77: #{simple_cnn_forward.1} parent=0
    _
  %s14 = ssub.s32 1, %s12
  %s15 = scalar_select 0, %s14, %s12
  $region1: #{simple_cnn_forward.1} parent=0
    #allocation2 [shape = 'u8[1024]{0}', space=vmem, size = 0x400, scoped, tag = 'output window, operand 0']
    #allocation3 [shape = 's32[2]{0}', space=sflag, size = 0x8, scoped, tag = 'scoped memory for simple_cnn_forward.1']
    %16 = vsyncpa [#allocation3], 0
    %s17 = scalar_lea.sflag [#allocation3], 1
    %18 = vsyncpa %s17, 0
    loop: start=0, step=1, limit=4
    $region2: #{simple_cnn_forward.1} parent=1 // loop_pre_header
      _
    $region3: #{simple_cnn_forward.1} parent=1 // loop_header
      %s20 = sphi 0, %s24
      %p21 = scmp.ge.s32.totalorder %s20, 4
      %s30 = sphi 0, %s32
      %s33 = sphi 0, %s30
      %s34 = sphi 0, %s33
      %s50 = sphi 0, %s34
      %s54 = sphi 0, %s54
      %s56 = sphi 0, %s54
      %s57 = sphi 0, %s56
      %s71 = sphi 0, %s57
      %s75 = sphi 0, %s75
      %s77 = sphi 0, %s75
      %s78 = sphi 0, %s77
      %s92 = sphi 0, %s78
      %s96 = sphi 0, %s96
      %s98 = sphi 0, %s96
      %s99 = sphi 0, %s98
      %s113 = sphi 0, %s99
      %s117 = sphi 0, %s117
      %s119 = sphi 0, %s117
      %s120 = sphi 0, %s119
      %s134 = sphi 0, %s120
      %s138 = sphi 0, %s138
      %s140 = sphi 0, %s138
      %s141 = sphi 0, %s140
      %s155 = sphi 0, %s141
      %s159 = sphi 0, %s159
      %s161 = sphi 0, %s159
      %s162 = sphi 0, %s161
      %s176 = sphi 0, %s162
      %s180 = sphi 0, %s180
      %s182 = sphi 0, %s180
      %s183 = sphi 0, %s182
      %s197 = sphi 0, %s183
      %s201 = sphi 0, %s201
      %s203 = sphi 0, %s201
      %s204 = sphi 0, %s203
      %s218 = sphi 0, %s204
      %s222 = sphi 0, %s222
      %s224 = sphi 0, %s222
      %s225 = sphi 0, %s224
      %s239 = sphi 0, %s225
      %s243 = sphi 0, %s243
      %s245 = sphi 0, %s243
      %s246 = sphi 0, %s245
      %s260 = sphi 0, %s246
      %s266 = sphi 0, %s268
      %s269 = sphi 0, %s266
      %s270 = sphi 0, %s269
      %s286 = sphi 0, %s270
    $region4: #{simple_cnn_forward.1} parent=1 // loop_header_branch
      %23 = sbr.rel (%p21) target = $region8
    $region5: #{simple_cnn_forward.1} parent=1 // loop_body
      %s25 = ssub.s32 %s20, 1
      %s26 = ssub.s32 %s20, 2
      %s27 = sadd.s32 %s20, 1
      %s28 = ssub.s32 %s20, %s27
      %p29 = scmp.eq.s32.totalorder %s28, 0
      %s31 = sadd.s32 %s30, 1
      %s32 = scalar_select %p29, %s30, %s31
      %p35 = pneg %p29
      %p36 = scmp.eq.s32.totalorder %s20, 1
      %p37 = por %p35, %p36
      %p38 = scmp.ne.s32.totalorder %s30, %s33
      %p39 = scmp.eq.s32.totalorder %s20, 0
      %p40 = por %p38, %p39
      %p41 = scmp.ne.s32.totalorder %s30, %s33
      %p42 = scmp.eq.s32.totalorder %s25, 1
      %p43 = por %p41, %p42
      %p44 = scmp.ne.s32.totalorder %s33, %s34
      %p45 = scmp.eq.s32.totalorder %s25, 0
      %p46 = por %p44, %p45
      %p47 = scmp.ne.s32.totalorder %s33, %s34
      %p48 = scmp.eq.s32.totalorder %s26, 1
      %p49 = por %p47, %p48
      %p51 = scmp.ne.s32.totalorder %s34, %s50
      %p52 = scmp.eq.s32.totalorder %s26, 0
      %p53 = por %p51, %p52
      %s55 = sadd.s32 %s54, 1
      %p58 = scmp.eq.s32.totalorder %s20, 1
      %p59 = scmp.ne.s32.totalorder %s54, %s56
      %p60 = scmp.eq.s32.totalorder %s20, 0
      %p61 = por %p59, %p60
      %p62 = scmp.ne.s32.totalorder %s54, %s56
      %p63 = scmp.eq.s32.totalorder %s25, 1
      %p64 = por %p62, %p63
      %p65 = scmp.ne.s32.totalorder %s56, %s57
      %p66 = scmp.eq.s32.totalorder %s25, 0
      %p67 = por %p65, %p66
      %p68 = scmp.ne.s32.totalorder %s56, %s57
      %p69 = scmp.eq.s32.totalorder %s26, 1
      %p70 = por %p68, %p69
      %p72 = scmp.ne.s32.totalorder %s57, %s71
      %p73 = scmp.eq.s32.totalorder %s26, 0
      %p74 = por %p72, %p73
      %s76 = sadd.s32 %s75, 1
      %p79 = scmp.eq.s32.totalorder %s20, 1
      %p80 = scmp.ne.s32.totalorder %s75, %s77
      %p81 = scmp.eq.s32.totalorder %s20, 0
      %p82 = por %p80, %p81
      %p83 = scmp.ne.s32.totalorder %s75, %s77
      %p84 = scmp.eq.s32.totalorder %s25, 1
      %p85 = por %p83, %p84
      %p86 = scmp.ne.s32.totalorder %s77, %s78
      %p87 = scmp.eq.s32.totalorder %s25, 0
      %p88 = por %p86, %p87
      %p89 = scmp.ne.s32.totalorder %s77, %s78
      %p90 = scmp.eq.s32.totalorder %s26, 1
      %p91 = por %p89, %p90
      %p93 = scmp.ne.s32.totalorder %s78, %s92
      %p94 = scmp.eq.s32.totalorder %s26, 0
      %p95 = por %p93, %p94
      %s97 = sadd.s32 %s96, 1
      %p100 = scmp.eq.s32.totalorder %s20, 1
      %p101 = scmp.ne.s32.totalorder %s96, %s98
      %p102 = scmp.eq.s32.totalorder %s20, 0
      %p103 = por %p101, %p102
      %p104 = scmp.ne.s32.totalorder %s96, %s98
      %p105 = scmp.eq.s32.totalorder %s25, 1
      %p106 = por %p104, %p105
      %p107 = scmp.ne.s32.totalorder %s98, %s99
      %p108 = scmp.eq.s32.totalorder %s25, 0
      %p109 = por %p107, %p108
      %p110 = scmp.ne.s32.totalorder %s98, %s99
      %p111 = scmp.eq.s32.totalorder %s26, 1
      %p112 = por %p110, %p111
      %p114 = scmp.ne.s32.totalorder %s99, %s113
      %p115 = scmp.eq.s32.totalorder %s26, 0
      %p116 = por %p114, %p115
      %s118 = sadd.s32 %s117, 1
      %p121 = scmp.eq.s32.totalorder %s20, 1
      %p122 = scmp.ne.s32.totalorder %s117, %s119
      %p123 = scmp.eq.s32.totalorder %s20, 0
      %p124 = por %p122, %p123
      %p125 = scmp.ne.s32.totalorder %s117, %s119
      %p126 = scmp.eq.s32.totalorder %s25, 1
      %p127 = por %p125, %p126
      %p128 = scmp.ne.s32.totalorder %s119, %s120
      %p129 = scmp.eq.s32.totalorder %s25, 0
      %p130 = por %p128, %p129
      %p131 = scmp.ne.s32.totalorder %s119, %s120
      %p132 = scmp.eq.s32.totalorder %s26, 1
      %p133 = por %p131, %p132
      %p135 = scmp.ne.s32.totalorder %s120, %s134
      %p136 = scmp.eq.s32.totalorder %s26, 0
      %p137 = por %p135, %p136
      %s139 = sadd.s32 %s138, 1
      %p142 = scmp.eq.s32.totalorder %s20, 1
      %p143 = scmp.ne.s32.totalorder %s138, %s140
      %p144 = scmp.eq.s32.totalorder %s20, 0
      %p145 = por %p143, %p144
      %p146 = scmp.ne.s32.totalorder %s138, %s140
      %p147 = scmp.eq.s32.totalorder %s25, 1
      %p148 = por %p146, %p147
      %p149 = scmp.ne.s32.totalorder %s140, %s141
      %p150 = scmp.eq.s32.totalorder %s25, 0
      %p151 = por %p149, %p150
      %p152 = scmp.ne.s32.totalorder %s140, %s141
      %p153 = scmp.eq.s32.totalorder %s26, 1
      %p154 = por %p152, %p153
      %p156 = scmp.ne.s32.totalorder %s141, %s155
      %p157 = scmp.eq.s32.totalorder %s26, 0
      %p158 = por %p156, %p157
      %s160 = sadd.s32 %s159, 1
      %p163 = scmp.eq.s32.totalorder %s20, 1
      %p164 = scmp.ne.s32.totalorder %s159, %s161
      %p165 = scmp.eq.s32.totalorder %s20, 0
      %p166 = por %p164, %p165
      %p167 = scmp.ne.s32.totalorder %s159, %s161
      %p168 = scmp.eq.s32.totalorder %s25, 1
      %p169 = por %p167, %p168
      %p170 = scmp.ne.s32.totalorder %s161, %s162
      %p171 = scmp.eq.s32.totalorder %s25, 0
      %p172 = por %p170, %p171
      %p173 = scmp.ne.s32.totalorder %s161, %s162
      %p174 = scmp.eq.s32.totalorder %s26, 1
      %p175 = por %p173, %p174
      %p177 = scmp.ne.s32.totalorder %s162, %s176
      %p178 = scmp.eq.s32.totalorder %s26, 0
      %p179 = por %p177, %p178
      %s181 = sadd.s32 %s180, 1
      %p184 = scmp.eq.s32.totalorder %s20, 1
      %p185 = scmp.ne.s32.totalorder %s180, %s182
      %p186 = scmp.eq.s32.totalorder %s20, 0
      %p187 = por %p185, %p186
      %p188 = scmp.ne.s32.totalorder %s180, %s182
      %p189 = scmp.eq.s32.totalorder %s25, 1
      %p190 = por %p188, %p189
      %p191 = scmp.ne.s32.totalorder %s182, %s183
      %p192 = scmp.eq.s32.totalorder %s25, 0
      %p193 = por %p191, %p192
      %p194 = scmp.ne.s32.totalorder %s182, %s183
      %p195 = scmp.eq.s32.totalorder %s26, 1
      %p196 = por %p194, %p195
      %p198 = scmp.ne.s32.totalorder %s183, %s197
      %p199 = scmp.eq.s32.totalorder %s26, 0
      %p200 = por %p198, %p199
      %s202 = sadd.s32 %s201, 1
      %p205 = scmp.eq.s32.totalorder %s20, 1
      %p206 = scmp.ne.s32.totalorder %s201, %s203
      %p207 = scmp.eq.s32.totalorder %s20, 0
      %p208 = por %p206, %p207
      %p209 = scmp.ne.s32.totalorder %s201, %s203
      %p210 = scmp.eq.s32.totalorder %s25, 1
      %p211 = por %p209, %p210
      %p212 = scmp.ne.s32.totalorder %s203, %s204
      %p213 = scmp.eq.s32.totalorder %s25, 0
      %p214 = por %p212, %p213
      %p215 = scmp.ne.s32.totalorder %s203, %s204
      %p216 = scmp.eq.s32.totalorder %s26, 1
      %p217 = por %p215, %p216
      %p219 = scmp.ne.s32.totalorder %s204, %s218
      %p220 = scmp.eq.s32.totalorder %s26, 0
      %p221 = por %p219, %p220
      %s223 = sadd.s32 %s222, 1
      %p226 = scmp.eq.s32.totalorder %s20, 1
      %p227 = scmp.ne.s32.totalorder %s222, %s224
      %p228 = scmp.eq.s32.totalorder %s20, 0
      %p229 = por %p227, %p228
      %p230 = scmp.ne.s32.totalorder %s222, %s224
      %p231 = scmp.eq.s32.totalorder %s25, 1
      %p232 = por %p230, %p231
      %p233 = scmp.ne.s32.totalorder %s224, %s225
      %p234 = scmp.eq.s32.totalorder %s25, 0
      %p235 = por %p233, %p234
      %p236 = scmp.ne.s32.totalorder %s224, %s225
      %p237 = scmp.eq.s32.totalorder %s26, 1
      %p238 = por %p236, %p237
      %p240 = scmp.ne.s32.totalorder %s225, %s239
      %p241 = scmp.eq.s32.totalorder %s26, 0
      %p242 = por %p240, %p241
      %s244 = sadd.s32 %s243, 1
      %p247 = scmp.eq.s32.totalorder %s20, 1
      %p248 = scmp.ne.s32.totalorder %s243, %s245
      %p249 = scmp.eq.s32.totalorder %s20, 0
      %p250 = por %p248, %p249
      %p251 = scmp.ne.s32.totalorder %s243, %s245
      %p252 = scmp.eq.s32.totalorder %s25, 1
      %p253 = por %p251, %p252
      %p254 = scmp.ne.s32.totalorder %s245, %s246
      %p255 = scmp.eq.s32.totalorder %s25, 0
      %p256 = por %p254, %p255
      %p257 = scmp.ne.s32.totalorder %s245, %s246
      %p258 = scmp.eq.s32.totalorder %s26, 1
      %p259 = por %p257, %p258
      %p261 = scmp.ne.s32.totalorder %s246, %s260
      %p262 = scmp.eq.s32.totalorder %s26, 0
      %p263 = por %p261, %p262
      %s264 = ssub.s32 %s20, %s27
      %p265 = scmp.eq.s32.totalorder %s264, 0
      %s267 = sadd.s32 %s266, 1
      %s268 = scalar_select %p265, %s266, %s267
      %p271 = pneg %p265
      %p272 = scmp.eq.s32.totalorder %s20, 1
      %p273 = por %p271, %p272
      %p274 = scmp.ne.s32.totalorder %s266, %s269
      %p275 = scmp.eq.s32.totalorder %s20, 0
      %p276 = por %p274, %p275
      %p277 = scmp.ne.s32.totalorder %s266, %s269
      %p278 = scmp.eq.s32.totalorder %s25, 1
      %p279 = por %p277, %p278
      %p280 = scmp.ne.s32.totalorder %s269, %s270
      %p281 = scmp.eq.s32.totalorder %s25, 0
      %p282 = por %p280, %p281
      %p283 = scmp.ne.s32.totalorder %s269, %s270
      %p284 = scmp.eq.s32.totalorder %s26, 1
      %p285 = por %p283, %p284
      %p287 = scmp.ne.s32.totalorder %s270, %s286
      %p288 = scmp.eq.s32.totalorder %s26, 0
      %p289 = por %p287, %p288
      %p290 = scmp.le.s32.totalorder 1, %s20
      %p291 = scmp.lt.s32.totalorder %s20, 3
      %p292 = pnand %p290, %p291
      %p293 = pneg %p292
      // Predicated region
      $region9: #{simple_cnn_forward.1} parent=5 // pred_check
        _
      $region10: #{simple_cnn_forward.1} parent=5 // pred_check_branch
        %295 = sbr.rel (%p292) target = $region12
      $region11: #{simple_cnn_forward.1} parent=5 // pred_region
        %s296 = ssub.s32 %s20, 1
        // Predicated region
        $region13: #{simple_cnn_forward.1} parent=11 // pred_check
          %p297 = pneg %p67
        $region14: #{simple_cnn_forward.1} parent=11 // pred_check_branch
          %299 = sbr.rel (%p297) target = $region16
        $region15: #{simple_cnn_forward.1} parent=11 // pred_region
          _
        $region16: #{simple_cnn_forward.1} parent=11 // pred_fallthru
          _
        // Predicated region
        $region17: #{simple_cnn_forward.1} parent=11 // pred_check
          %p300 = pneg %p88
        $region18: #{simple_cnn_forward.1} parent=11 // pred_check_branch
          %302 = sbr.rel (%p300) target = $region20
        $region19: #{simple_cnn_forward.1} parent=11 // pred_region
          _
        $region20: #{simple_cnn_forward.1} parent=11 // pred_fallthru
          _
        // Predicated region
        $region21: #{simple_cnn_forward.1} parent=11 // pred_check
          %p303 = pneg %p109
        $region22: #{simple_cnn_forward.1} parent=11 // pred_check_branch
          %305 = sbr.rel (%p303) target = $region24
        $region23: #{simple_cnn_forward.1} parent=11 // pred_region
          _
        $region24: #{simple_cnn_forward.1} parent=11 // pred_fallthru
          _
        // Predicated region
        $region25: #{simple_cnn_forward.1} parent=11 // pred_check
          %p306 = pneg %p130
        $region26: #{simple_cnn_forward.1} parent=11 // pred_check_branch
          %308 = sbr.rel (%p306) target = $region28
        $region27: #{simple_cnn_forward.1} parent=11 // pred_region
          _
        $region28: #{simple_cnn_forward.1} parent=11 // pred_fallthru
          _
        // Predicated region
        $region29: #{simple_cnn_forward.1} parent=11 // pred_check
          %p309 = pneg %p151
        $region30: #{simple_cnn_forward.1} parent=11 // pred_check_branch
          %311 = sbr.rel (%p309) target = $region32
        $region31: #{simple_cnn_forward.1} parent=11 // pred_region
          _
        $region32: #{simple_cnn_forward.1} parent=11 // pred_fallthru
          _
        // Predicated region
        $region33: #{simple_cnn_forward.1} parent=11 // pred_check
          %p312 = pneg %p172
        $region34: #{simple_cnn_forward.1} parent=11 // pred_check_branch
          %314 = sbr.rel (%p312) target = $region36
        $region35: #{simple_cnn_forward.1} parent=11 // pred_region
          _
        $region36: #{simple_cnn_forward.1} parent=11 // pred_fallthru
          _
        // Predicated region
        $region37: #{simple_cnn_forward.1} parent=11 // pred_check
          %p315 = pneg %p193
        $region38: #{simple_cnn_forward.1} parent=11 // pred_check_branch
          %317 = sbr.rel (%p315) target = $region40
        $region39: #{simple_cnn_forward.1} parent=11 // pred_region
          _
        $region40: #{simple_cnn_forward.1} parent=11 // pred_fallthru
          _
        // Predicated region
        $region41: #{simple_cnn_forward.1} parent=11 // pred_check
          %p318 = pneg %p214
        $region42: #{simple_cnn_forward.1} parent=11 // pred_check_branch
          %320 = sbr.rel (%p318) target = $region44
        $region43: #{simple_cnn_forward.1} parent=11 // pred_region
          _
        $region44: #{simple_cnn_forward.1} parent=11 // pred_fallthru
          _
        // Predicated region
        $region45: #{simple_cnn_forward.1} parent=11 // pred_check
          %p321 = pneg %p235
        $region46: #{simple_cnn_forward.1} parent=11 // pred_check_branch
          %323 = sbr.rel (%p321) target = $region48
        $region47: #{simple_cnn_forward.1} parent=11 // pred_region
          _
        $region48: #{simple_cnn_forward.1} parent=11 // pred_fallthru
          _
        // Predicated region
        $region49: #{simple_cnn_forward.1} parent=11 // pred_check
          %p324 = pneg %p256
        $region50: #{simple_cnn_forward.1} parent=11 // pred_check_branch
          %326 = sbr.rel (%p324) target = $region52
        $region51: #{simple_cnn_forward.1} parent=11 // pred_region
          _
        $region52: #{simple_cnn_forward.1} parent=11 // pred_fallthru
          _
      $region12: #{simple_cnn_forward.1} parent=5 // pred_fallthru
        _
      %p327 = scmp.lt.s32.totalorder %s20, 2
      // Predicated region
      $region53: #{simple_cnn_forward.1} parent=5 // pred_check
        %p328 = pneg %p327
      $region54: #{simple_cnn_forward.1} parent=5 // pred_check_branch
        %330 = sbr.rel (%p328) target = $region56
      $region55: #{simple_cnn_forward.1} parent=5 // pred_region
        // Predicated region
        $region57: #{simple_cnn_forward.1} parent=55 // pred_check
          %p331 = pneg %p40
        $region58: #{simple_cnn_forward.1} parent=55 // pred_check_branch
          %333 = sbr.rel (%p331) target = $region60
        $region59: #{simple_cnn_forward.1} parent=55 // pred_region
          %p334 = scmp.lt.s32.totalorder %s20, 1
          %s335 = scalar_select %p334, %s20, 1
          %s336 = smul.addr %s335, 288
          %s337 = smul.addr %s336, 8
          %s338 = scalar_lea.vmem %s0, %s337
        $region60: #{simple_cnn_forward.1} parent=55 // pred_fallthru
          _
      $region56: #{simple_cnn_forward.1} parent=5 // pred_fallthru
        _
      %p339 = scmp.le.s32.totalorder 1, %s20
      %p340 = scmp.lt.s32.totalorder %s20, 3
      %p341 = pnand %p339, %p340
      %p342 = pneg %p341
      // Predicated region
      $region61: #{simple_cnn_forward.1} parent=5 // pred_check
        _
      $region62: #{simple_cnn_forward.1} parent=5 // pred_check_branch
        %344 = sbr.rel (%p341) target = $region64
      $region63: #{simple_cnn_forward.1} parent=5 // pred_region
        %s345 = ssub.s32 %s20, 1
        %p346 = scmp.lt.s32.totalorder %s25, 1
        %s347 = scalar_select %p346, %s25, 1
        %s348 = smul.addr %s347, 288
        %s349 = smul.addr %s348, 8
        %s350 = scalar_lea.vmem %s0, %s349
        %p351 = pneg %p46
        %p352 = pneg %p43
        %p353 = pneg %p67
        %p354 = pneg %p64
        %p355 = pneg %p88
        %p356 = pneg %p85
        %p357 = pneg %p109
        %p358 = pneg %p106
        %p359 = pneg %p130
        %p360 = pneg %p127
        %p361 = pneg %p151
        %p362 = pneg %p148
        %p363 = pneg %p172
        %p364 = pneg %p169
        %p365 = pneg %p193
        %p366 = pneg %p190
        %p367 = pneg %p214
        %p368 = pneg %p211
        %p369 = pneg %p235
        %p370 = pneg %p232
        %p371 = pneg %p256
        %p372 = pneg %p253
        %p373 = pneg %p282
        %p374 = pneg %p279
        %s375 = sand.u32 %s269, 1
        %s376 = scalar_lea.sflag [#allocation3], %s375
        %s377 = sand.u32 %s269, 1
        %s378 = scalar_lea.vmem [#allocation2], %s377
        %p379 = scmp.lt.s32.totalorder %s25, 1
        %s380 = scalar_select %p379, %s25, 1
        %s381 = smul.addr %s380, 288
        %s382 = smul.addr %s381, 8
        %s383 = scalar_lea.vmem %s0, %s382
        %v385 = vld [vmem:[%s383] sm:$0xff]
        %v386 = vld [vmem:[%s383 + $0x10] sm:$0xff]
        %v387 = vld [vmem:[%s383 + $0x20] sm:$0xff]
        %v388 = vld [vmem:[%s383 + $0x30] sm:$0xff]
        %v389 = vld [vmem:[%s383 + $0x40] sm:$0xff]
        %v390 = vld [vmem:[%s383 + $0x50] sm:$0xff]
        %v391 = vld [vmem:[%s383 + $0x60] sm:$0xff]
        %v392 = vld [vmem:[%s383 + $0x70] sm:$0xff]
        %s393 = scalar_lea.vmem %s383, 144
        %v394 = vld [vmem:[%s393] sm:$0xff]
        %v395 = vld [vmem:[%s393 + $0x10] sm:$0xff]
        %v396 = vld [vmem:[%s393 + $0x20] sm:$0xff]
        %v397 = vld [vmem:[%s393 + $0x30] sm:$0xff]
        %v398 = vld [vmem:[%s393 + $0x40] sm:$0xff]
        %v399 = vld [vmem:[%s393 + $0x50] sm:$0xff]
        %v400 = vld [vmem:[%s393 + $0x60] sm:$0xff]
        %v401 = vld [vmem:[%s393 + $0x70] sm:$0xff]
        %s402 = scalar_lea.vmem %s383, 288
        %v403 = vld [vmem:[%s402] sm:$0xff]
        %v404 = vld [vmem:[%s402 + $0x10] sm:$0xff]
        %v405 = vld [vmem:[%s402 + $0x20] sm:$0xff]
        %v406 = vld [vmem:[%s402 + $0x30] sm:$0xff]
        %v407 = vld [vmem:[%s402 + $0x40] sm:$0xff]
        %v408 = vld [vmem:[%s402 + $0x50] sm:$0xff]
        %v409 = vld [vmem:[%s402 + $0x60] sm:$0xff]
        %v410 = vld [vmem:[%s402 + $0x70] sm:$0xff]
        %s411 = scalar_lea.vmem %s383, 432
        %v412 = vld [vmem:[%s411] sm:$0xff]
        %v413 = vld [vmem:[%s411 + $0x10] sm:$0xff]
        %v414 = vld [vmem:[%s411 + $0x20] sm:$0xff]
        %v415 = vld [vmem:[%s411 + $0x30] sm:$0xff]
        %v416 = vld [vmem:[%s411 + $0x40] sm:$0xff]
        %v417 = vld [vmem:[%s411 + $0x50] sm:$0xff]
        %v418 = vld [vmem:[%s411 + $0x60] sm:$0xff]
        %v419 = vld [vmem:[%s411 + $0x70] sm:$0xff]
        %v420 = vld [vmem:[%s383 + $0x1] sm:$0xff]
        %v421 = vld [vmem:[%s383 + $0x11] sm:$0xff]
        %v422 = vld [vmem:[%s383 + $0x21] sm:$0xff]
        %v423 = vld [vmem:[%s383 + $0x31] sm:$0xff]
        %v424 = vld [vmem:[%s383 + $0x41] sm:$0xff]
        %v425 = vld [vmem:[%s383 + $0x51] sm:$0xff]
        %v426 = vld [vmem:[%s383 + $0x61] sm:$0xff]
        %v427 = vld [vmem:[%s383 + $0x71] sm:$0xff]
        %v428 = vld [vmem:[%s393 + $0x1] sm:$0xff]
        %v429 = vld [vmem:[%s393 + $0x11] sm:$0xff]
        %v430 = vld [vmem:[%s393 + $0x21] sm:$0xff]
        %v431 = vld [vmem:[%s393 + $0x31] sm:$0xff]
        %v432 = vld [vmem:[%s393 + $0x41] sm:$0xff]
        %v433 = vld [vmem:[%s393 + $0x51] sm:$0xff]
        %v434 = vld [vmem:[%s393 + $0x61] sm:$0xff]
        %v435 = vld [vmem:[%s393 + $0x71] sm:$0xff]
        %v436 = vld [vmem:[%s402 + $0x1] sm:$0xff]
        %v437 = vld [vmem:[%s402 + $0x11] sm:$0xff]
        %v438 = vld [vmem:[%s402 + $0x21] sm:$0xff]
        %v439 = vld [vmem:[%s402 + $0x31] sm:$0xff]
        %v440 = vld [vmem:[%s402 + $0x41] sm:$0xff]
        %v441 = vld [vmem:[%s402 + $0x51] sm:$0xff]
        %v442 = vld [vmem:[%s402 + $0x61] sm:$0xff]
        %v443 = vld [vmem:[%s402 + $0x71] sm:$0xff]
        %v444 = vld [vmem:[%s411 + $0x1] sm:$0xff]
        %v445 = vld [vmem:[%s411 + $0x11] sm:$0xff]
        %v446 = vld [vmem:[%s411 + $0x21] sm:$0xff]
        %v447 = vld [vmem:[%s411 + $0x31] sm:$0xff]
        %v448 = vld [vmem:[%s411 + $0x41] sm:$0xff]
        %v449 = vld [vmem:[%s411 + $0x51] sm:$0xff]
        %v450 = vld [vmem:[%s411 + $0x61] sm:$0xff]
        %v451 = vld [vmem:[%s411 + $0x71] sm:$0xff]
        %s452 = scalar_lea.vmem %s383, 576
        %v453 = vld [vmem:[%s452] sm:$0xff]
        %v454 = vld [vmem:[%s452 + $0x10] sm:$0xff]
        %v455 = vld [vmem:[%s452 + $0x20] sm:$0xff]
        %v456 = vld [vmem:[%s452 + $0x30] sm:$0xff]
        %v457 = vld [vmem:[%s452 + $0x40] sm:$0xff]
        %v458 = vld [vmem:[%s452 + $0x50] sm:$0xff]
        %v459 = vld [vmem:[%s452 + $0x60] sm:$0xff]
        %v460 = vld [vmem:[%s452 + $0x70] sm:$0xff]
        %s461 = scalar_lea.vmem %s383, 720
        %v462 = vld [vmem:[%s461] sm:$0xff]
        %v463 = vld [vmem:[%s461 + $0x10] sm:$0xff]
        %v464 = vld [vmem:[%s461 + $0x20] sm:$0xff]
        %v465 = vld [vmem:[%s461 + $0x30] sm:$0xff]
        %v466 = vld [vmem:[%s461 + $0x40] sm:$0xff]
        %v467 = vld [vmem:[%s461 + $0x50] sm:$0xff]
        %v468 = vld [vmem:[%s461 + $0x60] sm:$0xff]
        %v469 = vld [vmem:[%s461 + $0x70] sm:$0xff]
        %s470 = scalar_lea.vmem %s383, 864
        %v471 = vld [vmem:[%s470] sm:$0xff]
        %v472 = vld [vmem:[%s470 + $0x10] sm:$0xff]
        %v473 = vld [vmem:[%s470 + $0x20] sm:$0xff]
        %v474 = vld [vmem:[%s470 + $0x30] sm:$0xff]
        %v475 = vld [vmem:[%s470 + $0x40] sm:$0xff]
        %v476 = vld [vmem:[%s470 + $0x50] sm:$0xff]
        %v477 = vld [vmem:[%s470 + $0x60] sm:$0xff]
        %v478 = vld [vmem:[%s470 + $0x70] sm:$0xff]
        %s479 = scalar_lea.vmem %s383, 1008
        %v480 = vld [vmem:[%s479] sm:$0xff]
        %v481 = vld [vmem:[%s479 + $0x10] sm:$0xff]
        %v482 = vld [vmem:[%s479 + $0x20] sm:$0xff]
        %v483 = vld [vmem:[%s479 + $0x30] sm:$0xff]
        %v484 = vld [vmem:[%s479 + $0x40] sm:$0xff]
        %v485 = vld [vmem:[%s479 + $0x50] sm:$0xff]
        %v486 = vld [vmem:[%s479 + $0x60] sm:$0xff]
        %v487 = vld [vmem:[%s479 + $0x70] sm:$0xff]
        %v488 = vld [vmem:[%s452 + $0x1] sm:$0xff]
        %v489 = vld [vmem:[%s452 + $0x11] sm:$0xff]
        %v490 = vld [vmem:[%s452 + $0x21] sm:$0xff]
        %v491 = vld [vmem:[%s452 + $0x31] sm:$0xff]
        %v492 = vld [vmem:[%s452 + $0x41] sm:$0xff]
        %v493 = vld [vmem:[%s452 + $0x51] sm:$0xff]
        %v494 = vld [vmem:[%s452 + $0x61] sm:$0xff]
        %v495 = vld [vmem:[%s452 + $0x71] sm:$0xff]
        %v496 = vld [vmem:[%s461 + $0x1] sm:$0xff]
        %v497 = vld [vmem:[%s461 + $0x11] sm:$0xff]
        %v498 = vld [vmem:[%s461 + $0x21] sm:$0xff]
        %v499 = vld [vmem:[%s461 + $0x31] sm:$0xff]
        %v500 = vld [vmem:[%s461 + $0x41] sm:$0xff]
        %v501 = vld [vmem:[%s461 + $0x51] sm:$0xff]
        %v502 = vld [vmem:[%s461 + $0x61] sm:$0xff]
        %v503 = vld [vmem:[%s461 + $0x71] sm:$0xff]
        %v504 = vld [vmem:[%s470 + $0x1] sm:$0xff]
        %v505 = vld [vmem:[%s470 + $0x11] sm:$0xff]
        %v506 = vld [vmem:[%s470 + $0x21] sm:$0xff]
        %v507 = vld [vmem:[%s470 + $0x31] sm:$0xff]
        %v508 = vld [vmem:[%s470 + $0x41] sm:$0xff]
        %v509 = vld [vmem:[%s470 + $0x51] sm:$0xff]
        %v510 = vld [vmem:[%s470 + $0x61] sm:$0xff]
        %v511 = vld [vmem:[%s470 + $0x71] sm:$0xff]
        %v512 = vld [vmem:[%s479 + $0x1] sm:$0xff]
        %v513 = vld [vmem:[%s479 + $0x11] sm:$0xff]
        %v514 = vld [vmem:[%s479 + $0x21] sm:$0xff]
        %v515 = vld [vmem:[%s479 + $0x31] sm:$0xff]
        %v516 = vld [vmem:[%s479 + $0x41] sm:$0xff]
        %v517 = vld [vmem:[%s479 + $0x51] sm:$0xff]
        %v518 = vld [vmem:[%s479 + $0x61] sm:$0xff]
        %v519 = vld [vmem:[%s479 + $0x71] sm:$0xff]
        %s520 = scalar_lea.vmem %s383, 1152
        %v521 = vld [vmem:[%s520] sm:$0xff]
        %v522 = vld [vmem:[%s520 + $0x10] sm:$0xff]
        %v523 = vld [vmem:[%s520 + $0x20] sm:$0xff]
        %v524 = vld [vmem:[%s520 + $0x30] sm:$0xff]
        %v525 = vld [vmem:[%s520 + $0x40] sm:$0xff]
        %v526 = vld [vmem:[%s520 + $0x50] sm:$0xff]
        %v527 = vld [vmem:[%s520 + $0x60] sm:$0xff]
        %v528 = vld [vmem:[%s520 + $0x70] sm:$0xff]
        %s529 = scalar_lea.vmem %s383, 1296
        %v530 = vld [vmem:[%s529] sm:$0xff]
        %v531 = vld [vmem:[%s529 + $0x10] sm:$0xff]
        %v532 = vld [vmem:[%s529 + $0x20] sm:$0xff]
        %v533 = vld [vmem:[%s529 + $0x30] sm:$0xff]
        %v534 = vld [vmem:[%s529 + $0x40] sm:$0xff]
        %v535 = vld [vmem:[%s529 + $0x50] sm:$0xff]
        %v536 = vld [vmem:[%s529 + $0x60] sm:$0xff]
        %v537 = vld [vmem:[%s529 + $0x70] sm:$0xff]
        %s538 = scalar_lea.vmem %s383, 1440
        %v539 = vld [vmem:[%s538] sm:$0xff]
        %v540 = vld [vmem:[%s538 + $0x10] sm:$0xff]
        %v541 = vld [vmem:[%s538 + $0x20] sm:$0xff]
        %v542 = vld [vmem:[%s538 + $0x30] sm:$0xff]
        %v543 = vld [vmem:[%s538 + $0x40] sm:$0xff]
        %v544 = vld [vmem:[%s538 + $0x50] sm:$0xff]
        %v545 = vld [vmem:[%s538 + $0x60] sm:$0xff]
        %v546 = vld [vmem:[%s538 + $0x70] sm:$0xff]
        %s547 = scalar_lea.vmem %s383, 1584
        %v548 = vld [vmem:[%s547] sm:$0xff]
        %v549 = vld [vmem:[%s547 + $0x10] sm:$0xff]
        %v550 = vld [vmem:[%s547 + $0x20] sm:$0xff]
        %v551 = vld [vmem:[%s547 + $0x30] sm:$0xff]
        %v552 = vld [vmem:[%s547 + $0x40] sm:$0xff]
        %v553 = vld [vmem:[%s547 + $0x50] sm:$0xff]
        %v554 = vld [vmem:[%s547 + $0x60] sm:$0xff]
        %v555 = vld [vmem:[%s547 + $0x70] sm:$0xff]
        %v556 = vld [vmem:[%s520 + $0x1] sm:$0xff]
        %v557 = vld [vmem:[%s520 + $0x11] sm:$0xff]
        %v558 = vld [vmem:[%s520 + $0x21] sm:$0xff]
        %v559 = vld [vmem:[%s520 + $0x31] sm:$0xff]
        %v560 = vld [vmem:[%s520 + $0x41] sm:$0xff]
        %v561 = vld [vmem:[%s520 + $0x51] sm:$0xff]
        %v562 = vld [vmem:[%s520 + $0x61] sm:$0xff]
        %v563 = vld [vmem:[%s520 + $0x71] sm:$0xff]
        %v564 = vld [vmem:[%s529 + $0x1] sm:$0xff]
        %v565 = vld [vmem:[%s529 + $0x11] sm:$0xff]
        %v566 = vld [vmem:[%s529 + $0x21] sm:$0xff]
        %v567 = vld [vmem:[%s529 + $0x31] sm:$0xff]
        %v568 = vld [vmem:[%s529 + $0x41] sm:$0xff]
        %v569 = vld [vmem:[%s529 + $0x51] sm:$0xff]
        %v570 = vld [vmem:[%s529 + $0x61] sm:$0xff]
        %v571 = vld [vmem:[%s529 + $0x71] sm:$0xff]
        %v572 = vld [vmem:[%s538 + $0x1] sm:$0xff]
        %v573 = vld [vmem:[%s538 + $0x11] sm:$0xff]
        %v574 = vld [vmem:[%s538 + $0x21] sm:$0xff]
        %v575 = vld [vmem:[%s538 + $0x31] sm:$0xff]
        %v576 = vld [vmem:[%s538 + $0x41] sm:$0xff]
        %v577 = vld [vmem:[%s538 + $0x51] sm:$0xff]
        %v578 = vld [vmem:[%s538 + $0x61] sm:$0xff]
        %v579 = vld [vmem:[%s538 + $0x71] sm:$0xff]
        %v580 = vld [vmem:[%s547 + $0x1] sm:$0xff]
        %v581 = vld [vmem:[%s547 + $0x11] sm:$0xff]
        %v582 = vld [vmem:[%s547 + $0x21] sm:$0xff]
        %v583 = vld [vmem:[%s547 + $0x31] sm:$0xff]
        %v584 = vld [vmem:[%s547 + $0x41] sm:$0xff]
        %v585 = vld [vmem:[%s547 + $0x51] sm:$0xff]
        %v586 = vld [vmem:[%s547 + $0x61] sm:$0xff]
        %v587 = vld [vmem:[%s547 + $0x71] sm:$0xff]
        %s588 = scalar_lea.vmem %s383, 1728
        %v589 = vld [vmem:[%s588] sm:$0xff]
        %v590 = vld [vmem:[%s588 + $0x10] sm:$0xff]
        %v591 = vld [vmem:[%s588 + $0x20] sm:$0xff]
        %v592 = vld [vmem:[%s588 + $0x30] sm:$0xff]
        %v593 = vld [vmem:[%s588 + $0x40] sm:$0xff]
        %v594 = vld [vmem:[%s588 + $0x50] sm:$0xff]
        %v595 = vld [vmem:[%s588 + $0x60] sm:$0xff]
        %v596 = vld [vmem:[%s588 + $0x70] sm:$0xff]
        %s597 = scalar_lea.vmem %s383, 1872
        %v598 = vld [vmem:[%s597] sm:$0xff]
        %v599 = vld [vmem:[%s597 + $0x10] sm:$0xff]
        %v600 = vld [vmem:[%s597 + $0x20] sm:$0xff]
        %v601 = vld [vmem:[%s597 + $0x30] sm:$0xff]
        %v602 = vld [vmem:[%s597 + $0x40] sm:$0xff]
        %v603 = vld [vmem:[%s597 + $0x50] sm:$0xff]
        %v604 = vld [vmem:[%s597 + $0x60] sm:$0xff]
        %v605 = vld [vmem:[%s597 + $0x70] sm:$0xff]
        %s606 = scalar_lea.vmem %s383, 2016
        %v607 = vld [vmem:[%s606] sm:$0xff]
        %v608 = vld [vmem:[%s606 + $0x10] sm:$0xff]
        %v609 = vld [vmem:[%s606 + $0x20] sm:$0xff]
        %v610 = vld [vmem:[%s606 + $0x30] sm:$0xff]
        %v611 = vld [vmem:[%s606 + $0x40] sm:$0xff]
        %v612 = vld [vmem:[%s606 + $0x50] sm:$0xff]
        %v613 = vld [vmem:[%s606 + $0x60] sm:$0xff]
        %v614 = vld [vmem:[%s606 + $0x70] sm:$0xff]
        %s615 = scalar_lea.vmem %s383, 2160
        %v616 = vld [vmem:[%s615] sm:$0xff]
        %v617 = vld [vmem:[%s615 + $0x10] sm:$0xff]
        %v618 = vld [vmem:[%s615 + $0x20] sm:$0xff]
        %v619 = vld [vmem:[%s615 + $0x30] sm:$0xff]
        %v620 = vld [vmem:[%s615 + $0x40] sm:$0xff]
        %v621 = vld [vmem:[%s615 + $0x50] sm:$0xff]
        %v622 = vld [vmem:[%s615 + $0x60] sm:$0xff]
        %v623 = vld [vmem:[%s615 + $0x70] sm:$0xff]
        %v624 = vld [vmem:[%s588 + $0x1] sm:$0xff]
        %v625 = vld [vmem:[%s588 + $0x11] sm:$0xff]
        %v626 = vld [vmem:[%s588 + $0x21] sm:$0xff]
        %v627 = vld [vmem:[%s588 + $0x31] sm:$0xff]
        %v628 = vld [vmem:[%s588 + $0x41] sm:$0xff]
        %v629 = vld [vmem:[%s588 + $0x51] sm:$0xff]
        %v630 = vld [vmem:[%s588 + $0x61] sm:$0xff]
        %v631 = vld [vmem:[%s588 + $0x71] sm:$0xff]
        %v632 = vld [vmem:[%s597 + $0x1] sm:$0xff]
        %v633 = vld [vmem:[%s597 + $0x11] sm:$0xff]
        %v634 = vld [vmem:[%s597 + $0x21] sm:$0xff]
        %v635 = vld [vmem:[%s597 + $0x31] sm:$0xff]
        %v636 = vld [vmem:[%s597 + $0x41] sm:$0xff]
        %v637 = vld [vmem:[%s597 + $0x51] sm:$0xff]
        %v638 = vld [vmem:[%s597 + $0x61] sm:$0xff]
        %v639 = vld [vmem:[%s597 + $0x71] sm:$0xff]
        %v640 = vld [vmem:[%s606 + $0x1] sm:$0xff]
        %v641 = vld [vmem:[%s606 + $0x11] sm:$0xff]
        %v642 = vld [vmem:[%s606 + $0x21] sm:$0xff]
        %v643 = vld [vmem:[%s606 + $0x31] sm:$0xff]
        %v644 = vld [vmem:[%s606 + $0x41] sm:$0xff]
        %v645 = vld [vmem:[%s606 + $0x51] sm:$0xff]
        %v646 = vld [vmem:[%s606 + $0x61] sm:$0xff]
        %v647 = vld [vmem:[%s606 + $0x71] sm:$0xff]
        %v648 = vld [vmem:[%s615 + $0x1] sm:$0xff]
        %v649 = vld [vmem:[%s615 + $0x11] sm:$0xff]
        %v650 = vld [vmem:[%s615 + $0x21] sm:$0xff]
        %v651 = vld [vmem:[%s615 + $0x31] sm:$0xff]
        %v652 = vld [vmem:[%s615 + $0x41] sm:$0xff]
        %v653 = vld [vmem:[%s615 + $0x51] sm:$0xff]
        %v654 = vld [vmem:[%s615 + $0x61] sm:$0xff]
        %v655 = vld [vmem:[%s615 + $0x71] sm:$0xff]
        %s656 = scalar_lea.vmem %s383, 16
        %v657 = vld [vmem:[%s656] sm:$0xff]
        %v658 = vld [vmem:[%s656 + $0x10] sm:$0xff]
        %v659 = vld [vmem:[%s656 + $0x20] sm:$0xff]
        %v660 = vld [vmem:[%s656 + $0x30] sm:$0xff]
        %v661 = vld [vmem:[%s656 + $0x40] sm:$0xff]
        %v662 = vld [vmem:[%s656 + $0x50] sm:$0xff]
        %v663 = vld [vmem:[%s656 + $0x60] sm:$0xff]
        %v664 = vld [vmem:[%s656 + $0x70] sm:$0xff]
        %s665 = scalar_lea.vmem %s383, 160
        %v666 = vld [vmem:[%s665] sm:$0xff]
        %v667 = vld [vmem:[%s665 + $0x10] sm:$0xff]
        %v668 = vld [vmem:[%s665 + $0x20] sm:$0xff]
        %v669 = vld [vmem:[%s665 + $0x30] sm:$0xff]
        %v670 = vld [vmem:[%s665 + $0x40] sm:$0xff]
        %v671 = vld [vmem:[%s665 + $0x50] sm:$0xff]
        %v672 = vld [vmem:[%s665 + $0x60] sm:$0xff]
        %v673 = vld [vmem:[%s665 + $0x70] sm:$0xff]
        %s674 = scalar_lea.vmem %s383, 304
        %v675 = vld [vmem:[%s674] sm:$0xff]
        %v676 = vld [vmem:[%s674 + $0x10] sm:$0xff]
        %v677 = vld [vmem:[%s674 + $0x20] sm:$0xff]
        %v678 = vld [vmem:[%s674 + $0x30] sm:$0xff]
        %v679 = vld [vmem:[%s674 + $0x40] sm:$0xff]
        %v680 = vld [vmem:[%s674 + $0x50] sm:$0xff]
        %v681 = vld [vmem:[%s674 + $0x60] sm:$0xff]
        %v682 = vld [vmem:[%s674 + $0x70] sm:$0xff]
        %s683 = scalar_lea.vmem %s383, 448
        %v684 = vld [vmem:[%s683] sm:$0xff]
        %v685 = vld [vmem:[%s683 + $0x10] sm:$0xff]
        %v686 = vld [vmem:[%s683 + $0x20] sm:$0xff]
        %v687 = vld [vmem:[%s683 + $0x30] sm:$0xff]
        %v688 = vld [vmem:[%s683 + $0x40] sm:$0xff]
        %v689 = vld [vmem:[%s683 + $0x50] sm:$0xff]
        %v690 = vld [vmem:[%s683 + $0x60] sm:$0xff]
        %v691 = vld [vmem:[%s683 + $0x70] sm:$0xff]
        %v692 = vld [vmem:[%s656 + $0x1] sm:$0xff]
        %v693 = vld [vmem:[%s656 + $0x11] sm:$0xff]
        %v694 = vld [vmem:[%s656 + $0x21] sm:$0xff]
        %v695 = vld [vmem:[%s656 + $0x31] sm:$0xff]
        %v696 = vld [vmem:[%s656 + $0x41] sm:$0xff]
        %v697 = vld [vmem:[%s656 + $0x51] sm:$0xff]
        %v698 = vld [vmem:[%s656 + $0x61] sm:$0xff]
        %v699 = vld [vmem:[%s656 + $0x71] sm:$0xff]
        %v700 = vld [vmem:[%s665 + $0x1] sm:$0xff]
        %v701 = vld [vmem:[%s665 + $0x11] sm:$0xff]
        %v702 = vld [vmem:[%s665 + $0x21] sm:$0xff]
        %v703 = vld [vmem:[%s665 + $0x31] sm:$0xff]
        %v704 = vld [vmem:[%s665 + $0x41] sm:$0xff]
        %v705 = vld [vmem:[%s665 + $0x51] sm:$0xff]
        %v706 = vld [vmem:[%s665 + $0x61] sm:$0xff]
        %v707 = vld [vmem:[%s665 + $0x71] sm:$0xff]
        %v708 = vld [vmem:[%s674 + $0x1] sm:$0xff]
        %v709 = vld [vmem:[%s674 + $0x11] sm:$0xff]
        %v710 = vld [vmem:[%s674 + $0x21] sm:$0xff]
        %v711 = vld [vmem:[%s674 + $0x31] sm:$0xff]
        %v712 = vld [vmem:[%s674 + $0x41] sm:$0xff]
        %v713 = vld [vmem:[%s674 + $0x51] sm:$0xff]
        %v714 = vld [vmem:[%s674 + $0x61] sm:$0xff]
        %v715 = vld [vmem:[%s674 + $0x71] sm:$0xff]
        %v716 = vld [vmem:[%s683 + $0x1] sm:$0xff]
        %v717 = vld [vmem:[%s683 + $0x11] sm:$0xff]
        %v718 = vld [vmem:[%s683 + $0x21] sm:$0xff]
        %v719 = vld [vmem:[%s683 + $0x31] sm:$0xff]
        %v720 = vld [vmem:[%s683 + $0x41] sm:$0xff]
        %v721 = vld [vmem:[%s683 + $0x51] sm:$0xff]
        %v722 = vld [vmem:[%s683 + $0x61] sm:$0xff]
        %v723 = vld [vmem:[%s683 + $0x71] sm:$0xff]
        %s724 = scalar_lea.vmem %s383, 592
        %v725 = vld [vmem:[%s724] sm:$0xff]
        %v726 = vld [vmem:[%s724 + $0x10] sm:$0xff]
        %v727 = vld [vmem:[%s724 + $0x20] sm:$0xff]
        %v728 = vld [vmem:[%s724 + $0x30] sm:$0xff]
        %v729 = vld [vmem:[%s724 + $0x40] sm:$0xff]
        %v730 = vld [vmem:[%s724 + $0x50] sm:$0xff]
        %v731 = vld [vmem:[%s724 + $0x60] sm:$0xff]
        %v732 = vld [vmem:[%s724 + $0x70] sm:$0xff]
        %s733 = scalar_lea.vmem %s383, 736
        %v734 = vld [vmem:[%s733] sm:$0xff]
        %v735 = vld [vmem:[%s733 + $0x10] sm:$0xff]
        %v736 = vld [vmem:[%s733 + $0x20] sm:$0xff]
        %v737 = vld [vmem:[%s733 + $0x30] sm:$0xff]
        %v738 = vld [vmem:[%s733 + $0x40] sm:$0xff]
        %v739 = vld [vmem:[%s733 + $0x50] sm:$0xff]
        %v740 = vld [vmem:[%s733 + $0x60] sm:$0xff]
        %v741 = vld [vmem:[%s733 + $0x70] sm:$0xff]
        %s742 = scalar_lea.vmem %s383, 880
        %v743 = vld [vmem:[%s742] sm:$0xff]
        %v744 = vld [vmem:[%s742 + $0x10] sm:$0xff]
        %v745 = vld [vmem:[%s742 + $0x20] sm:$0xff]
        %v746 = vld [vmem:[%s742 + $0x30] sm:$0xff]
        %v747 = vld [vmem:[%s742 + $0x40] sm:$0xff]
        %v748 = vld [vmem:[%s742 + $0x50] sm:$0xff]
        %v749 = vld [vmem:[%s742 + $0x60] sm:$0xff]
        %v750 = vld [vmem:[%s742 + $0x70] sm:$0xff]
        %s751 = scalar_lea.vmem %s383, 1024
        %v752 = vld [vmem:[%s751] sm:$0xff]
        %v753 = vld [vmem:[%s751 + $0x10] sm:$0xff]
        %v754 = vld [vmem:[%s751 + $0x20] sm:$0xff]
        %v755 = vld [vmem:[%s751 + $0x30] sm:$0xff]
        %v756 = vld [vmem:[%s751 + $0x40] sm:$0xff]
        %v757 = vld [vmem:[%s751 + $0x50] sm:$0xff]
        %v758 = vld [vmem:[%s751 + $0x60] sm:$0xff]
        %v759 = vld [vmem:[%s751 + $0x70] sm:$0xff]
        %v760 = vld [vmem:[%s724 + $0x1] sm:$0xff]
        %v761 = vld [vmem:[%s724 + $0x11] sm:$0xff]
        %v762 = vld [vmem:[%s724 + $0x21] sm:$0xff]
        %v763 = vld [vmem:[%s724 + $0x31] sm:$0xff]
        %v764 = vld [vmem:[%s724 + $0x41] sm:$0xff]
        %v765 = vld [vmem:[%s724 + $0x51] sm:$0xff]
        %v766 = vld [vmem:[%s724 + $0x61] sm:$0xff]
        %v767 = vld [vmem:[%s724 + $0x71] sm:$0xff]
        %v768 = vld [vmem:[%s733 + $0x1] sm:$0xff]
        %v769 = vld [vmem:[%s733 + $0x11] sm:$0xff]
        %v770 = vld [vmem:[%s733 + $0x21] sm:$0xff]
        %v771 = vld [vmem:[%s733 + $0x31] sm:$0xff]
        %v772 = vld [vmem:[%s733 + $0x41] sm:$0xff]
        %v773 = vld [vmem:[%s733 + $0x51] sm:$0xff]
        %v774 = vld [vmem:[%s733 + $0x61] sm:$0xff]
        %v775 = vld [vmem:[%s733 + $0x71] sm:$0xff]
        %v776 = vld [vmem:[%s742 + $0x1] sm:$0xff]
        %v777 = vld [vmem:[%s742 + $0x11] sm:$0xff]
        %v778 = vld [vmem:[%s742 + $0x21] sm:$0xff]
        %v779 = vld [vmem:[%s742 + $0x31] sm:$0xff]
        %v780 = vld [vmem:[%s742 + $0x41] sm:$0xff]
        %v781 = vld [vmem:[%s742 + $0x51] sm:$0xff]
        %v782 = vld [vmem:[%s742 + $0x61] sm:$0xff]
        %v783 = vld [vmem:[%s742 + $0x71] sm:$0xff]
        %v784 = vld [vmem:[%s751 + $0x1] sm:$0xff]
        %v785 = vld [vmem:[%s751 + $0x11] sm:$0xff]
        %v786 = vld [vmem:[%s751 + $0x21] sm:$0xff]
        %v787 = vld [vmem:[%s751 + $0x31] sm:$0xff]
        %v788 = vld [vmem:[%s751 + $0x41] sm:$0xff]
        %v789 = vld [vmem:[%s751 + $0x51] sm:$0xff]
        %v790 = vld [vmem:[%s751 + $0x61] sm:$0xff]
        %v791 = vld [vmem:[%s751 + $0x71] sm:$0xff]
        %s792 = scalar_lea.vmem %s383, 1168
        %v793 = vld [vmem:[%s792] sm:$0xff]
        %v794 = vld [vmem:[%s792 + $0x10] sm:$0xff]
        %v795 = vld [vmem:[%s792 + $0x20] sm:$0xff]
        %v796 = vld [vmem:[%s792 + $0x30] sm:$0xff]
        %v797 = vld [vmem:[%s792 + $0x40] sm:$0xff]
        %v798 = vld [vmem:[%s792 + $0x50] sm:$0xff]
        %v799 = vld [vmem:[%s792 + $0x60] sm:$0xff]
        %v800 = vld [vmem:[%s792 + $0x70] sm:$0xff]
        %s801 = scalar_lea.vmem %s383, 1312
        %v802 = vld [vmem:[%s801] sm:$0xff]
        %v803 = vld [vmem:[%s801 + $0x10] sm:$0xff]
        %v804 = vld [vmem:[%s801 + $0x20] sm:$0xff]
        %v805 = vld [vmem:[%s801 + $0x30] sm:$0xff]
        %v806 = vld [vmem:[%s801 + $0x40] sm:$0xff]
        %v807 = vld [vmem:[%s801 + $0x50] sm:$0xff]
        %v808 = vld [vmem:[%s801 + $0x60] sm:$0xff]
        %v809 = vld [vmem:[%s801 + $0x70] sm:$0xff]
        %s810 = scalar_lea.vmem %s383, 1456
        %v811 = vld [vmem:[%s810] sm:$0xff]
        %v812 = vld [vmem:[%s810 + $0x10] sm:$0xff]
        %v813 = vld [vmem:[%s810 + $0x20] sm:$0xff]
        %v814 = vld [vmem:[%s810 + $0x30] sm:$0xff]
        %v815 = vld [vmem:[%s810 + $0x40] sm:$0xff]
        %v816 = vld [vmem:[%s810 + $0x50] sm:$0xff]
        %v817 = vld [vmem:[%s810 + $0x60] sm:$0xff]
        %v818 = vld [vmem:[%s810 + $0x70] sm:$0xff]
        %s819 = scalar_lea.vmem %s383, 1600
        %v820 = vld [vmem:[%s819] sm:$0xff]
        %v821 = vld [vmem:[%s819 + $0x10] sm:$0xff]
        %v822 = vld [vmem:[%s819 + $0x20] sm:$0xff]
        %v823 = vld [vmem:[%s819 + $0x30] sm:$0xff]
        %v824 = vld [vmem:[%s819 + $0x40] sm:$0xff]
        %v825 = vld [vmem:[%s819 + $0x50] sm:$0xff]
        %v826 = vld [vmem:[%s819 + $0x60] sm:$0xff]
        %v827 = vld [vmem:[%s819 + $0x70] sm:$0xff]
        %v828 = vld [vmem:[%s792 + $0x1] sm:$0xff]
        %v829 = vld [vmem:[%s792 + $0x11] sm:$0xff]
        %v830 = vld [vmem:[%s792 + $0x21] sm:$0xff]
        %v831 = vld [vmem:[%s792 + $0x31] sm:$0xff]
        %v832 = vld [vmem:[%s792 + $0x41] sm:$0xff]
        %v833 = vld [vmem:[%s792 + $0x51] sm:$0xff]
        %v834 = vld [vmem:[%s792 + $0x61] sm:$0xff]
        %v835 = vld [vmem:[%s792 + $0x71] sm:$0xff]
        %v836 = vld [vmem:[%s801 + $0x1] sm:$0xff]
        %v837 = vld [vmem:[%s801 + $0x11] sm:$0xff]
        %v838 = vld [vmem:[%s801 + $0x21] sm:$0xff]
        %v839 = vld [vmem:[%s801 + $0x31] sm:$0xff]
        %v840 = vld [vmem:[%s801 + $0x41] sm:$0xff]
        %v841 = vld [vmem:[%s801 + $0x51] sm:$0xff]
        %v842 = vld [vmem:[%s801 + $0x61] sm:$0xff]
        %v843 = vld [vmem:[%s801 + $0x71] sm:$0xff]
        %v844 = vld [vmem:[%s810 + $0x1] sm:$0xff]
        %v845 = vld [vmem:[%s810 + $0x11] sm:$0xff]
        %v846 = vld [vmem:[%s810 + $0x21] sm:$0xff]
        %v847 = vld [vmem:[%s810 + $0x31] sm:$0xff]
        %v848 = vld [vmem:[%s810 + $0x41] sm:$0xff]
        %v849 = vld [vmem:[%s810 + $0x51] sm:$0xff]
        %v850 = vld [vmem:[%s810 + $0x61] sm:$0xff]
        %v851 = vld [vmem:[%s810 + $0x71] sm:$0xff]
        %v852 = vld [vmem:[%s819 + $0x1] sm:$0xff]
        %v853 = vld [vmem:[%s819 + $0x11] sm:$0xff]
        %v854 = vld [vmem:[%s819 + $0x21] sm:$0xff]
        %v855 = vld [vmem:[%s819 + $0x31] sm:$0xff]
        %v856 = vld [vmem:[%s819 + $0x41] sm:$0xff]
        %v857 = vld [vmem:[%s819 + $0x51] sm:$0xff]
        %v858 = vld [vmem:[%s819 + $0x61] sm:$0xff]
        %v859 = vld [vmem:[%s819 + $0x71] sm:$0xff]
        %s860 = scalar_lea.vmem %s383, 1744
        %v861 = vld [vmem:[%s860] sm:$0xff]
        %v862 = vld [vmem:[%s860 + $0x10] sm:$0xff]
        %v863 = vld [vmem:[%s860 + $0x20] sm:$0xff]
        %v864 = vld [vmem:[%s860 + $0x30] sm:$0xff]
        %v865 = vld [vmem:[%s860 + $0x40] sm:$0xff]
        %v866 = vld [vmem:[%s860 + $0x50] sm:$0xff]
        %v867 = vld [vmem:[%s860 + $0x60] sm:$0xff]
        %v868 = vld [vmem:[%s860 + $0x70] sm:$0xff]
        %s869 = scalar_lea.vmem %s383, 1888
        %v870 = vld [vmem:[%s869] sm:$0xff]
        %v871 = vld [vmem:[%s869 + $0x10] sm:$0xff]
        %v872 = vld [vmem:[%s869 + $0x20] sm:$0xff]
        %v873 = vld [vmem:[%s869 + $0x30] sm:$0xff]
        %v874 = vld [vmem:[%s869 + $0x40] sm:$0xff]
        %v875 = vld [vmem:[%s869 + $0x50] sm:$0xff]
        %v876 = vld [vmem:[%s869 + $0x60] sm:$0xff]
        %v877 = vld [vmem:[%s869 + $0x70] sm:$0xff]
        %s878 = scalar_lea.vmem %s383, 2032
        %v879 = vld [vmem:[%s878] sm:$0xff]
        %v880 = vld [vmem:[%s878 + $0x10] sm:$0xff]
        %v881 = vld [vmem:[%s878 + $0x20] sm:$0xff]
        %v882 = vld [vmem:[%s878 + $0x30] sm:$0xff]
        %v883 = vld [vmem:[%s878 + $0x40] sm:$0xff]
        %v884 = vld [vmem:[%s878 + $0x50] sm:$0xff]
        %v885 = vld [vmem:[%s878 + $0x60] sm:$0xff]
        %v886 = vld [vmem:[%s878 + $0x70] sm:$0xff]
        %s887 = scalar_lea.vmem %s383, 2176
        %v888 = vld [vmem:[%s887] sm:$0xff]
        %v889 = vld [vmem:[%s887 + $0x10] sm:$0xff]
        %v890 = vld [vmem:[%s887 + $0x20] sm:$0xff]
        %v891 = vld [vmem:[%s887 + $0x30] sm:$0xff]
        %v892 = vld [vmem:[%s887 + $0x40] sm:$0xff]
        %v893 = vld [vmem:[%s887 + $0x50] sm:$0xff]
        %v894 = vld [vmem:[%s887 + $0x60] sm:$0xff]
        %v895 = vld [vmem:[%s887 + $0x70] sm:$0xff]
        %v896 = vld [vmem:[%s860 + $0x1] sm:$0xff]
        %v897 = vld [vmem:[%s860 + $0x11] sm:$0xff]
        %v898 = vld [vmem:[%s860 + $0x21] sm:$0xff]
        %v899 = vld [vmem:[%s860 + $0x31] sm:$0xff]
        %v900 = vld [vmem:[%s860 + $0x41] sm:$0xff]
        %v901 = vld [vmem:[%s860 + $0x51] sm:$0xff]
        %v902 = vld [vmem:[%s860 + $0x61] sm:$0xff]
        %v903 = vld [vmem:[%s860 + $0x71] sm:$0xff]
        %v904 = vld [vmem:[%s869 + $0x1] sm:$0xff]
        %v905 = vld [vmem:[%s869 + $0x11] sm:$0xff]
        %v906 = vld [vmem:[%s869 + $0x21] sm:$0xff]
        %v907 = vld [vmem:[%s869 + $0x31] sm:$0xff]
        %v908 = vld [vmem:[%s869 + $0x41] sm:$0xff]
        %v909 = vld [vmem:[%s869 + $0x51] sm:$0xff]
        %v910 = vld [vmem:[%s869 + $0x61] sm:$0xff]
        %v911 = vld [vmem:[%s869 + $0x71] sm:$0xff]
        %v912 = vld [vmem:[%s878 + $0x1] sm:$0xff]
        %v913 = vld [vmem:[%s878 + $0x11] sm:$0xff]
        %v914 = vld [vmem:[%s878 + $0x21] sm:$0xff]
        %v915 = vld [vmem:[%s878 + $0x31] sm:$0xff]
        %v916 = vld [vmem:[%s878 + $0x41] sm:$0xff]
        %v917 = vld [vmem:[%s878 + $0x51] sm:$0xff]
        %v918 = vld [vmem:[%s878 + $0x61] sm:$0xff]
        %v919 = vld [vmem:[%s878 + $0x71] sm:$0xff]
        %v920 = vld [vmem:[%s887 + $0x1] sm:$0xff]
        %v921 = vld [vmem:[%s887 + $0x11] sm:$0xff]
        %v922 = vld [vmem:[%s887 + $0x21] sm:$0xff]
        %v923 = vld [vmem:[%s887 + $0x31] sm:$0xff]
        %v924 = vld [vmem:[%s887 + $0x41] sm:$0xff]
        %v925 = vld [vmem:[%s887 + $0x51] sm:$0xff]
        %v926 = vld [vmem:[%s887 + $0x61] sm:$0xff]
        %v927 = vld [vmem:[%s887 + $0x71] sm:$0xff]
        %936 = vrot.lane.b32.xlu0 %v394, 4
        %v937 = vpop.permute.xlu0 %936
        %938 = vrot.lane.b32.xlu0 %v395, 4
        %v939 = vpop.permute.xlu0 %938
        %940 = vrot.lane.b32.xlu0 %v396, 4
        %v941 = vpop.permute.xlu0 %940
        %942 = vrot.lane.b32.xlu0 %v397, 4
        %v943 = vpop.permute.xlu0 %942
        %944 = vrot.lane.b32.xlu0 %v398, 4
        %v945 = vpop.permute.xlu0 %944
        %946 = vrot.lane.b32.xlu0 %v399, 4
        %v947 = vpop.permute.xlu0 %946
        %948 = vrot.lane.b32.xlu0 %v400, 4
        %v949 = vpop.permute.xlu0 %948
        %950 = vrot.lane.b32.xlu0 %v401, 4
        %v951 = vpop.permute.xlu0 %950
        %968 = vrot.lane.b32.xlu0 %v403, 8
        %v969 = vpop.permute.xlu0 %968
        %970 = vrot.lane.b32.xlu0 %v404, 8
        %v971 = vpop.permute.xlu0 %970
        %972 = vrot.lane.b32.xlu0 %v405, 8
        %v973 = vpop.permute.xlu0 %972
        %974 = vrot.lane.b32.xlu0 %v406, 8
        %v975 = vpop.permute.xlu0 %974
        %976 = vrot.lane.b32.xlu0 %v407, 8
        %v977 = vpop.permute.xlu0 %976
        %978 = vrot.lane.b32.xlu0 %v408, 8
        %v979 = vpop.permute.xlu0 %978
        %980 = vrot.lane.b32.xlu0 %v409, 8
        %v981 = vpop.permute.xlu0 %980
        %982 = vrot.lane.b32.xlu0 %v410, 8
        %v983 = vpop.permute.xlu0 %982
        %1000 = vrot.lane.b32.xlu0 %v412, 12
        %v1001 = vpop.permute.xlu0 %1000
        %1002 = vrot.lane.b32.xlu0 %v413, 12
        %v1003 = vpop.permute.xlu0 %1002
        %1004 = vrot.lane.b32.xlu0 %v414, 12
        %v1005 = vpop.permute.xlu0 %1004
        %1006 = vrot.lane.b32.xlu0 %v415, 12
        %v1007 = vpop.permute.xlu0 %1006
        %1008 = vrot.lane.b32.xlu0 %v416, 12
        %v1009 = vpop.permute.xlu0 %1008
        %1010 = vrot.lane.b32.xlu0 %v417, 12
        %v1011 = vpop.permute.xlu0 %1010
        %1012 = vrot.lane.b32.xlu0 %v418, 12
        %v1013 = vpop.permute.xlu0 %1012
        %1014 = vrot.lane.b32.xlu0 %v419, 12
        %v1015 = vpop.permute.xlu0 %1014
        %1032 = vrot.lane.b32.xlu0 %v420, 16
        %v1033 = vpop.permute.xlu0 %1032
        %1034 = vrot.lane.b32.xlu0 %v421, 16
        %v1035 = vpop.permute.xlu0 %1034
        %1036 = vrot.lane.b32.xlu0 %v422, 16
        %v1037 = vpop.permute.xlu0 %1036
        %1038 = vrot.lane.b32.xlu0 %v423, 16
        %v1039 = vpop.permute.xlu0 %1038
        %1040 = vrot.lane.b32.xlu0 %v424, 16
        %v1041 = vpop.permute.xlu0 %1040
        %1042 = vrot.lane.b32.xlu0 %v425, 16
        %v1043 = vpop.permute.xlu0 %1042
        %1044 = vrot.lane.b32.xlu0 %v426, 16
        %v1045 = vpop.permute.xlu0 %1044
        %1046 = vrot.lane.b32.xlu0 %v427, 16
        %v1047 = vpop.permute.xlu0 %1046
        %1064 = vrot.lane.b32.xlu0 %v428, 20
        %v1065 = vpop.permute.xlu0 %1064
        %1066 = vrot.lane.b32.xlu0 %v429, 20
        %v1067 = vpop.permute.xlu0 %1066
        %1068 = vrot.lane.b32.xlu0 %v430, 20
        %v1069 = vpop.permute.xlu0 %1068
        %1070 = vrot.lane.b32.xlu0 %v431, 20
        %v1071 = vpop.permute.xlu0 %1070
        %1072 = vrot.lane.b32.xlu0 %v432, 20
        %v1073 = vpop.permute.xlu0 %1072
        %1074 = vrot.lane.b32.xlu0 %v433, 20
        %v1075 = vpop.permute.xlu0 %1074
        %1076 = vrot.lane.b32.xlu0 %v434, 20
        %v1077 = vpop.permute.xlu0 %1076
        %1078 = vrot.lane.b32.xlu0 %v435, 20
        %v1079 = vpop.permute.xlu0 %1078
        %1096 = vrot.lane.b32.xlu0 %v436, 24
        %v1097 = vpop.permute.xlu0 %1096
        %1098 = vrot.lane.b32.xlu0 %v437, 24
        %v1099 = vpop.permute.xlu0 %1098
        %1100 = vrot.lane.b32.xlu0 %v438, 24
        %v1101 = vpop.permute.xlu0 %1100
        %1102 = vrot.lane.b32.xlu0 %v439, 24
        %v1103 = vpop.permute.xlu0 %1102
        %1104 = vrot.lane.b32.xlu0 %v440, 24
        %v1105 = vpop.permute.xlu0 %1104
        %1106 = vrot.lane.b32.xlu0 %v441, 24
        %v1107 = vpop.permute.xlu0 %1106
        %1108 = vrot.lane.b32.xlu0 %v442, 24
        %v1109 = vpop.permute.xlu0 %1108
        %1110 = vrot.lane.b32.xlu0 %v443, 24
        %v1111 = vpop.permute.xlu0 %1110
        %1128 = vrot.lane.b32.xlu0 %v444, 28
        %v1129 = vpop.permute.xlu0 %1128
        %1130 = vrot.lane.b32.xlu0 %v445, 28
        %v1131 = vpop.permute.xlu0 %1130
        %1132 = vrot.lane.b32.xlu0 %v446, 28
        %v1133 = vpop.permute.xlu0 %1132
        %1134 = vrot.lane.b32.xlu0 %v447, 28
        %v1135 = vpop.permute.xlu0 %1134
        %1136 = vrot.lane.b32.xlu0 %v448, 28
        %v1137 = vpop.permute.xlu0 %1136
        %1138 = vrot.lane.b32.xlu0 %v449, 28
        %v1139 = vpop.permute.xlu0 %1138
        %1140 = vrot.lane.b32.xlu0 %v450, 28
        %v1141 = vpop.permute.xlu0 %1140
        %1142 = vrot.lane.b32.xlu0 %v451, 28
        %v1143 = vpop.permute.xlu0 %1142
        %1160 = vrot.lane.b32.xlu0 %v453, 32
        %v1161 = vpop.permute.xlu0 %1160
        %1162 = vrot.lane.b32.xlu0 %v454, 32
        %v1163 = vpop.permute.xlu0 %1162
        %1164 = vrot.lane.b32.xlu0 %v455, 32
        %v1165 = vpop.permute.xlu0 %1164
        %1166 = vrot.lane.b32.xlu0 %v456, 32
        %v1167 = vpop.permute.xlu0 %1166
        %1168 = vrot.lane.b32.xlu0 %v457, 32
        %v1169 = vpop.permute.xlu0 %1168
        %1170 = vrot.lane.b32.xlu0 %v458, 32
        %v1171 = vpop.permute.xlu0 %1170
        %1172 = vrot.lane.b32.xlu0 %v459, 32
        %v1173 = vpop.permute.xlu0 %1172
        %1174 = vrot.lane.b32.xlu0 %v460, 32
        %v1175 = vpop.permute.xlu0 %1174
        %1192 = vrot.lane.b32.xlu0 %v462, 36
        %v1193 = vpop.permute.xlu0 %1192
        %1194 = vrot.lane.b32.xlu0 %v463, 36
        %v1195 = vpop.permute.xlu0 %1194
        %1196 = vrot.lane.b32.xlu0 %v464, 36
        %v1197 = vpop.permute.xlu0 %1196
        %1198 = vrot.lane.b32.xlu0 %v465, 36
        %v1199 = vpop.permute.xlu0 %1198
        %1200 = vrot.lane.b32.xlu0 %v466, 36
        %v1201 = vpop.permute.xlu0 %1200
        %1202 = vrot.lane.b32.xlu0 %v467, 36
        %v1203 = vpop.permute.xlu0 %1202
        %1204 = vrot.lane.b32.xlu0 %v468, 36
        %v1205 = vpop.permute.xlu0 %1204
        %1206 = vrot.lane.b32.xlu0 %v469, 36
        %v1207 = vpop.permute.xlu0 %1206
        %1224 = vrot.lane.b32.xlu0 %v471, 40
        %v1225 = vpop.permute.xlu0 %1224
        %1226 = vrot.lane.b32.xlu0 %v472, 40
        %v1227 = vpop.permute.xlu0 %1226
        %1228 = vrot.lane.b32.xlu0 %v473, 40
        %v1229 = vpop.permute.xlu0 %1228
        %1230 = vrot.lane.b32.xlu0 %v474, 40
        %v1231 = vpop.permute.xlu0 %1230
        %1232 = vrot.lane.b32.xlu0 %v475, 40
        %v1233 = vpop.permute.xlu0 %1232
        %1234 = vrot.lane.b32.xlu0 %v476, 40
        %v1235 = vpop.permute.xlu0 %1234
        %1236 = vrot.lane.b32.xlu0 %v477, 40
        %v1237 = vpop.permute.xlu0 %1236
        %1238 = vrot.lane.b32.xlu0 %v478, 40
        %v1239 = vpop.permute.xlu0 %1238
        %1256 = vrot.lane.b32.xlu0 %v480, 44
        %v1257 = vpop.permute.xlu0 %1256
        %1258 = vrot.lane.b32.xlu0 %v481, 44
        %v1259 = vpop.permute.xlu0 %1258
        %1260 = vrot.lane.b32.xlu0 %v482, 44
        %v1261 = vpop.permute.xlu0 %1260
        %1262 = vrot.lane.b32.xlu0 %v483, 44
        %v1263 = vpop.permute.xlu0 %1262
        %1264 = vrot.lane.b32.xlu0 %v484, 44
        %v1265 = vpop.permute.xlu0 %1264
        %1266 = vrot.lane.b32.xlu0 %v485, 44
        %v1267 = vpop.permute.xlu0 %1266
        %1268 = vrot.lane.b32.xlu0 %v486, 44
        %v1269 = vpop.permute.xlu0 %1268
        %1270 = vrot.lane.b32.xlu0 %v487, 44
        %v1271 = vpop.permute.xlu0 %1270
        %1288 = vrot.lane.b32.xlu0 %v488, 48
        %v1289 = vpop.permute.xlu0 %1288
        %1290 = vrot.lane.b32.xlu0 %v489, 48
        %v1291 = vpop.permute.xlu0 %1290
        %1292 = vrot.lane.b32.xlu0 %v490, 48
        %v1293 = vpop.permute.xlu0 %1292
        %1294 = vrot.lane.b32.xlu0 %v491, 48
        %v1295 = vpop.permute.xlu0 %1294
        %1296 = vrot.lane.b32.xlu0 %v492, 48
        %v1297 = vpop.permute.xlu0 %1296
        %1298 = vrot.lane.b32.xlu0 %v493, 48
        %v1299 = vpop.permute.xlu0 %1298
        %1300 = vrot.lane.b32.xlu0 %v494, 48
        %v1301 = vpop.permute.xlu0 %1300
        %1302 = vrot.lane.b32.xlu0 %v495, 48
        %v1303 = vpop.permute.xlu0 %1302
        %1320 = vrot.lane.b32.xlu0 %v496, 52
        %v1321 = vpop.permute.xlu0 %1320
        %1322 = vrot.lane.b32.xlu0 %v497, 52
        %v1323 = vpop.permute.xlu0 %1322
        %1324 = vrot.lane.b32.xlu0 %v498, 52
        %v1325 = vpop.permute.xlu0 %1324
        %1326 = vrot.lane.b32.xlu0 %v499, 52
        %v1327 = vpop.permute.xlu0 %1326
        %1328 = vrot.lane.b32.xlu0 %v500, 52
        %v1329 = vpop.permute.xlu0 %1328
        %1330 = vrot.lane.b32.xlu0 %v501, 52
        %v1331 = vpop.permute.xlu0 %1330
        %1332 = vrot.lane.b32.xlu0 %v502, 52
        %v1333 = vpop.permute.xlu0 %1332
        %1334 = vrot.lane.b32.xlu0 %v503, 52
        %v1335 = vpop.permute.xlu0 %1334
        %1352 = vrot.lane.b32.xlu0 %v504, 56
        %v1353 = vpop.permute.xlu0 %1352
        %1354 = vrot.lane.b32.xlu0 %v505, 56
        %v1355 = vpop.permute.xlu0 %1354
        %1356 = vrot.lane.b32.xlu0 %v506, 56
        %v1357 = vpop.permute.xlu0 %1356
        %1358 = vrot.lane.b32.xlu0 %v507, 56
        %v1359 = vpop.permute.xlu0 %1358
        %1360 = vrot.lane.b32.xlu0 %v508, 56
        %v1361 = vpop.permute.xlu0 %1360
        %1362 = vrot.lane.b32.xlu0 %v509, 56
        %v1363 = vpop.permute.xlu0 %1362
        %1364 = vrot.lane.b32.xlu0 %v510, 56
        %v1365 = vpop.permute.xlu0 %1364
        %1366 = vrot.lane.b32.xlu0 %v511, 56
        %v1367 = vpop.permute.xlu0 %1366
        %1384 = vrot.lane.b32.xlu0 %v512, 60
        %v1385 = vpop.permute.xlu0 %1384
        %1386 = vrot.lane.b32.xlu0 %v513, 60
        %v1387 = vpop.permute.xlu0 %1386
        %1388 = vrot.lane.b32.xlu0 %v514, 60
        %v1389 = vpop.permute.xlu0 %1388
        %1390 = vrot.lane.b32.xlu0 %v515, 60
        %v1391 = vpop.permute.xlu0 %1390
        %1392 = vrot.lane.b32.xlu0 %v516, 60
        %v1393 = vpop.permute.xlu0 %1392
        %1394 = vrot.lane.b32.xlu0 %v517, 60
        %v1395 = vpop.permute.xlu0 %1394
        %1396 = vrot.lane.b32.xlu0 %v518, 60
        %v1397 = vpop.permute.xlu0 %1396
        %1398 = vrot.lane.b32.xlu0 %v519, 60
        %v1399 = vpop.permute.xlu0 %1398
        %vm1408 = vcmask 31744
        %v1409 = vsel %vm1408, %v385, %v937
        %v1410 = vsel %vm1408, %v386, %v939
        %v1411 = vsel %vm1408, %v387, %v941
        %v1412 = vsel %vm1408, %v388, %v943
        %v1413 = vsel %vm1408, %v389, %v945
        %v1414 = vsel %vm1408, %v390, %v947
        %v1415 = vsel %vm1408, %v391, %v949
        %v1416 = vsel %vm1408, %v392, %v951
        %vm1417 = vcmask 64512
        %v1418 = vsel %vm1417, %v1409, %v969
        %v1419 = vsel %vm1417, %v1410, %v971
        %v1420 = vsel %vm1417, %v1411, %v973
        %v1421 = vsel %vm1417, %v1412, %v975
        %v1422 = vsel %vm1417, %v1413, %v977
        %v1423 = vsel %vm1417, %v1414, %v979
        %v1424 = vsel %vm1417, %v1415, %v981
        %v1425 = vsel %vm1417, %v1416, %v983
        %vm1426 = vcmask 97280
        %v1427 = vsel %vm1426, %v1418, %v1001
        %v1428 = vsel %vm1426, %v1419, %v1003
        %v1429 = vsel %vm1426, %v1420, %v1005
        %v1430 = vsel %vm1426, %v1421, %v1007
        %v1431 = vsel %vm1426, %v1422, %v1009
        %v1432 = vsel %vm1426, %v1423, %v1011
        %v1433 = vsel %vm1426, %v1424, %v1013
        %v1434 = vsel %vm1426, %v1425, %v1015
        %vm1435 = vcmask 130048
        %v1436 = vsel %vm1435, %v1427, %v1033
        %v1437 = vsel %vm1435, %v1428, %v1035
        %v1438 = vsel %vm1435, %v1429, %v1037
        %v1439 = vsel %vm1435, %v1430, %v1039
        %v1440 = vsel %vm1435, %v1431, %v1041
        %v1441 = vsel %vm1435, %v1432, %v1043
        %v1442 = vsel %vm1435, %v1433, %v1045
        %v1443 = vsel %vm1435, %v1434, %v1047
        %vm1444 = vcmask 162816
        %v1445 = vsel %vm1444, %v1436, %v1065
        %v1446 = vsel %vm1444, %v1437, %v1067
        %v1447 = vsel %vm1444, %v1438, %v1069
        %v1448 = vsel %vm1444, %v1439, %v1071
        %v1449 = vsel %vm1444, %v1440, %v1073
        %v1450 = vsel %vm1444, %v1441, %v1075
        %v1451 = vsel %vm1444, %v1442, %v1077
        %v1452 = vsel %vm1444, %v1443, %v1079
        %vm1453 = vcmask 195584
        %v1454 = vsel %vm1453, %v1445, %v1097
        %v1455 = vsel %vm1453, %v1446, %v1099
        %v1456 = vsel %vm1453, %v1447, %v1101
        %v1457 = vsel %vm1453, %v1448, %v1103
        %v1458 = vsel %vm1453, %v1449, %v1105
        %v1459 = vsel %vm1453, %v1450, %v1107
        %v1460 = vsel %vm1453, %v1451, %v1109
        %v1461 = vsel %vm1453, %v1452, %v1111
        %vm1462 = vcmask 228352
        %v1463 = vsel %vm1462, %v1454, %v1129
        %v1464 = vsel %vm1462, %v1455, %v1131
        %v1465 = vsel %vm1462, %v1456, %v1133
        %v1466 = vsel %vm1462, %v1457, %v1135
        %v1467 = vsel %vm1462, %v1458, %v1137
        %v1468 = vsel %vm1462, %v1459, %v1139
        %v1469 = vsel %vm1462, %v1460, %v1141
        %v1470 = vsel %vm1462, %v1461, %v1143
        %vm1471 = vcmask 261120
        %v1472 = vsel %vm1471, %v1463, %v1161
        %v1473 = vsel %vm1471, %v1464, %v1163
        %v1474 = vsel %vm1471, %v1465, %v1165
        %v1475 = vsel %vm1471, %v1466, %v1167
        %v1476 = vsel %vm1471, %v1467, %v1169
        %v1477 = vsel %vm1471, %v1468, %v1171
        %v1478 = vsel %vm1471, %v1469, %v1173
        %v1479 = vsel %vm1471, %v1470, %v1175
        %vm1480 = vcmask 293888
        %v1481 = vsel %vm1480, %v1472, %v1193
        %v1482 = vsel %vm1480, %v1473, %v1195
        %v1483 = vsel %vm1480, %v1474, %v1197
        %v1484 = vsel %vm1480, %v1475, %v1199
        %v1485 = vsel %vm1480, %v1476, %v1201
        %v1486 = vsel %vm1480, %v1477, %v1203
        %v1487 = vsel %vm1480, %v1478, %v1205
        %v1488 = vsel %vm1480, %v1479, %v1207
        %vm1489 = vcmask 326656
        %v1490 = vsel %vm1489, %v1481, %v1225
        %v1491 = vsel %vm1489, %v1482, %v1227
        %v1492 = vsel %vm1489, %v1483, %v1229
        %v1493 = vsel %vm1489, %v1484, %v1231
        %v1494 = vsel %vm1489, %v1485, %v1233
        %v1495 = vsel %vm1489, %v1486, %v1235
        %v1496 = vsel %vm1489, %v1487, %v1237
        %v1497 = vsel %vm1489, %v1488, %v1239
        %vm1498 = vcmask 359424
        %v1499 = vsel %vm1498, %v1490, %v1257
        %v1500 = vsel %vm1498, %v1491, %v1259
        %v1501 = vsel %vm1498, %v1492, %v1261
        %v1502 = vsel %vm1498, %v1493, %v1263
        %v1503 = vsel %vm1498, %v1494, %v1265
        %v1504 = vsel %vm1498, %v1495, %v1267
        %v1505 = vsel %vm1498, %v1496, %v1269
        %v1506 = vsel %vm1498, %v1497, %v1271
        %vm1507 = vcmask 392192
        %v1508 = vsel %vm1507, %v1499, %v1289
        %v1509 = vsel %vm1507, %v1500, %v1291
        %v1510 = vsel %vm1507, %v1501, %v1293
        %v1511 = vsel %vm1507, %v1502, %v1295
        %v1512 = vsel %vm1507, %v1503, %v1297
        %v1513 = vsel %vm1507, %v1504, %v1299
        %v1514 = vsel %vm1507, %v1505, %v1301
        %v1515 = vsel %vm1507, %v1506, %v1303
        %vm1516 = vcmask 424960
        %v1517 = vsel %vm1516, %v1508, %v1321
        %v1518 = vsel %vm1516, %v1509, %v1323
        %v1519 = vsel %vm1516, %v1510, %v1325
        %v1520 = vsel %vm1516, %v1511, %v1327
        %v1521 = vsel %vm1516, %v1512, %v1329
        %v1522 = vsel %vm1516, %v1513, %v1331
        %v1523 = vsel %vm1516, %v1514, %v1333
        %v1524 = vsel %vm1516, %v1515, %v1335
        %vm1525 = vcmask 457728
        %v1526 = vsel %vm1525, %v1517, %v1353
        %v1527 = vsel %vm1525, %v1518, %v1355
        %v1528 = vsel %vm1525, %v1519, %v1357
        %v1529 = vsel %vm1525, %v1520, %v1359
        %v1530 = vsel %vm1525, %v1521, %v1361
        %v1531 = vsel %vm1525, %v1522, %v1363
        %v1532 = vsel %vm1525, %v1523, %v1365
        %v1533 = vsel %vm1525, %v1524, %v1367
        %vm1534 = vcmask 490496
        %v1535 = vsel %vm1534, %v1526, %v1385
        %v1536 = vsel %vm1534, %v1527, %v1387
        %v1537 = vsel %vm1534, %v1528, %v1389
        %v1538 = vsel %vm1534, %v1529, %v1391
        %v1539 = vsel %vm1534, %v1530, %v1393
        %v1540 = vsel %vm1534, %v1531, %v1395
        %v1541 = vsel %vm1534, %v1532, %v1397
        %v1542 = vsel %vm1534, %v1533, %v1399
        %1551 = vrot.lane.b32.xlu0 %v530, 4
        %v1552 = vpop.permute.xlu0 %1551
        %1553 = vrot.lane.b32.xlu0 %v531, 4
        %v1554 = vpop.permute.xlu0 %1553
        %1555 = vrot.lane.b32.xlu0 %v532, 4
        %v1556 = vpop.permute.xlu0 %1555
        %1557 = vrot.lane.b32.xlu0 %v533, 4
        %v1558 = vpop.permute.xlu0 %1557
        %1559 = vrot.lane.b32.xlu0 %v534, 4
        %v1560 = vpop.permute.xlu0 %1559
        %1561 = vrot.lane.b32.xlu0 %v535, 4
        %v1562 = vpop.permute.xlu0 %1561
        %1563 = vrot.lane.b32.xlu0 %v536, 4
        %v1564 = vpop.permute.xlu0 %1563
        %1565 = vrot.lane.b32.xlu0 %v537, 4
        %v1566 = vpop.permute.xlu0 %1565
        %1583 = vrot.lane.b32.xlu0 %v539, 8
        %v1584 = vpop.permute.xlu0 %1583
        %1585 = vrot.lane.b32.xlu0 %v540, 8
        %v1586 = vpop.permute.xlu0 %1585
        %1587 = vrot.lane.b32.xlu0 %v541, 8
        %v1588 = vpop.permute.xlu0 %1587
        %1589 = vrot.lane.b32.xlu0 %v542, 8
        %v1590 = vpop.permute.xlu0 %1589
        %1591 = vrot.lane.b32.xlu0 %v543, 8
        %v1592 = vpop.permute.xlu0 %1591
        %1593 = vrot.lane.b32.xlu0 %v544, 8
        %v1594 = vpop.permute.xlu0 %1593
        %1595 = vrot.lane.b32.xlu0 %v545, 8
        %v1596 = vpop.permute.xlu0 %1595
        %1597 = vrot.lane.b32.xlu0 %v546, 8
        %v1598 = vpop.permute.xlu0 %1597
        %1615 = vrot.lane.b32.xlu0 %v548, 12
        %v1616 = vpop.permute.xlu0 %1615
        %1617 = vrot.lane.b32.xlu0 %v549, 12
        %v1618 = vpop.permute.xlu0 %1617
        %1619 = vrot.lane.b32.xlu0 %v550, 12
        %v1620 = vpop.permute.xlu0 %1619
        %1621 = vrot.lane.b32.xlu0 %v551, 12
        %v1622 = vpop.permute.xlu0 %1621
        %1623 = vrot.lane.b32.xlu0 %v552, 12
        %v1624 = vpop.permute.xlu0 %1623
        %1625 = vrot.lane.b32.xlu0 %v553, 12
        %v1626 = vpop.permute.xlu0 %1625
        %1627 = vrot.lane.b32.xlu0 %v554, 12
        %v1628 = vpop.permute.xlu0 %1627
        %1629 = vrot.lane.b32.xlu0 %v555, 12
        %v1630 = vpop.permute.xlu0 %1629
        %1647 = vrot.lane.b32.xlu0 %v556, 16
        %v1648 = vpop.permute.xlu0 %1647
        %1649 = vrot.lane.b32.xlu0 %v557, 16
        %v1650 = vpop.permute.xlu0 %1649
        %1651 = vrot.lane.b32.xlu0 %v558, 16
        %v1652 = vpop.permute.xlu0 %1651
        %1653 = vrot.lane.b32.xlu0 %v559, 16
        %v1654 = vpop.permute.xlu0 %1653
        %1655 = vrot.lane.b32.xlu0 %v560, 16
        %v1656 = vpop.permute.xlu0 %1655
        %1657 = vrot.lane.b32.xlu0 %v561, 16
        %v1658 = vpop.permute.xlu0 %1657
        %1659 = vrot.lane.b32.xlu0 %v562, 16
        %v1660 = vpop.permute.xlu0 %1659
        %1661 = vrot.lane.b32.xlu0 %v563, 16
        %v1662 = vpop.permute.xlu0 %1661
        %1679 = vrot.lane.b32.xlu0 %v564, 20
        %v1680 = vpop.permute.xlu0 %1679
        %1681 = vrot.lane.b32.xlu0 %v565, 20
        %v1682 = vpop.permute.xlu0 %1681
        %1683 = vrot.lane.b32.xlu0 %v566, 20
        %v1684 = vpop.permute.xlu0 %1683
        %1685 = vrot.lane.b32.xlu0 %v567, 20
        %v1686 = vpop.permute.xlu0 %1685
        %1687 = vrot.lane.b32.xlu0 %v568, 20
        %v1688 = vpop.permute.xlu0 %1687
        %1689 = vrot.lane.b32.xlu0 %v569, 20
        %v1690 = vpop.permute.xlu0 %1689
        %1691 = vrot.lane.b32.xlu0 %v570, 20
        %v1692 = vpop.permute.xlu0 %1691
        %1693 = vrot.lane.b32.xlu0 %v571, 20
        %v1694 = vpop.permute.xlu0 %1693
        %1711 = vrot.lane.b32.xlu0 %v572, 24
        %v1712 = vpop.permute.xlu0 %1711
        %1713 = vrot.lane.b32.xlu0 %v573, 24
        %v1714 = vpop.permute.xlu0 %1713
        %1715 = vrot.lane.b32.xlu0 %v574, 24
        %v1716 = vpop.permute.xlu0 %1715
        %1717 = vrot.lane.b32.xlu0 %v575, 24
        %v1718 = vpop.permute.xlu0 %1717
        %1719 = vrot.lane.b32.xlu0 %v576, 24
        %v1720 = vpop.permute.xlu0 %1719
        %1721 = vrot.lane.b32.xlu0 %v577, 24
        %v1722 = vpop.permute.xlu0 %1721
        %1723 = vrot.lane.b32.xlu0 %v578, 24
        %v1724 = vpop.permute.xlu0 %1723
        %1725 = vrot.lane.b32.xlu0 %v579, 24
        %v1726 = vpop.permute.xlu0 %1725
        %1743 = vrot.lane.b32.xlu0 %v580, 28
        %v1744 = vpop.permute.xlu0 %1743
        %1745 = vrot.lane.b32.xlu0 %v581, 28
        %v1746 = vpop.permute.xlu0 %1745
        %1747 = vrot.lane.b32.xlu0 %v582, 28
        %v1748 = vpop.permute.xlu0 %1747
        %1749 = vrot.lane.b32.xlu0 %v583, 28
        %v1750 = vpop.permute.xlu0 %1749
        %1751 = vrot.lane.b32.xlu0 %v584, 28
        %v1752 = vpop.permute.xlu0 %1751
        %1753 = vrot.lane.b32.xlu0 %v585, 28
        %v1754 = vpop.permute.xlu0 %1753
        %1755 = vrot.lane.b32.xlu0 %v586, 28
        %v1756 = vpop.permute.xlu0 %1755
        %1757 = vrot.lane.b32.xlu0 %v587, 28
        %v1758 = vpop.permute.xlu0 %1757
        %1775 = vrot.lane.b32.xlu0 %v589, 32
        %v1776 = vpop.permute.xlu0 %1775
        %1777 = vrot.lane.b32.xlu0 %v590, 32
        %v1778 = vpop.permute.xlu0 %1777
        %1779 = vrot.lane.b32.xlu0 %v591, 32
        %v1780 = vpop.permute.xlu0 %1779
        %1781 = vrot.lane.b32.xlu0 %v592, 32
        %v1782 = vpop.permute.xlu0 %1781
        %1783 = vrot.lane.b32.xlu0 %v593, 32
        %v1784 = vpop.permute.xlu0 %1783
        %1785 = vrot.lane.b32.xlu0 %v594, 32
        %v1786 = vpop.permute.xlu0 %1785
        %1787 = vrot.lane.b32.xlu0 %v595, 32
        %v1788 = vpop.permute.xlu0 %1787
        %1789 = vrot.lane.b32.xlu0 %v596, 32
        %v1790 = vpop.permute.xlu0 %1789
        %1807 = vrot.lane.b32.xlu0 %v598, 36
        %v1808 = vpop.permute.xlu0 %1807
        %1809 = vrot.lane.b32.xlu0 %v599, 36
        %v1810 = vpop.permute.xlu0 %1809
        %1811 = vrot.lane.b32.xlu0 %v600, 36
        %v1812 = vpop.permute.xlu0 %1811
        %1813 = vrot.lane.b32.xlu0 %v601, 36
        %v1814 = vpop.permute.xlu0 %1813
        %1815 = vrot.lane.b32.xlu0 %v602, 36
        %v1816 = vpop.permute.xlu0 %1815
        %1817 = vrot.lane.b32.xlu0 %v603, 36
        %v1818 = vpop.permute.xlu0 %1817
        %1819 = vrot.lane.b32.xlu0 %v604, 36
        %v1820 = vpop.permute.xlu0 %1819
        %1821 = vrot.lane.b32.xlu0 %v605, 36
        %v1822 = vpop.permute.xlu0 %1821
        %1839 = vrot.lane.b32.xlu0 %v607, 40
        %v1840 = vpop.permute.xlu0 %1839
        %1841 = vrot.lane.b32.xlu0 %v608, 40
        %v1842 = vpop.permute.xlu0 %1841
        %1843 = vrot.lane.b32.xlu0 %v609, 40
        %v1844 = vpop.permute.xlu0 %1843
        %1845 = vrot.lane.b32.xlu0 %v610, 40
        %v1846 = vpop.permute.xlu0 %1845
        %1847 = vrot.lane.b32.xlu0 %v611, 40
        %v1848 = vpop.permute.xlu0 %1847
        %1849 = vrot.lane.b32.xlu0 %v612, 40
        %v1850 = vpop.permute.xlu0 %1849
        %1851 = vrot.lane.b32.xlu0 %v613, 40
        %v1852 = vpop.permute.xlu0 %1851
        %1853 = vrot.lane.b32.xlu0 %v614, 40
        %v1854 = vpop.permute.xlu0 %1853
        %1871 = vrot.lane.b32.xlu0 %v616, 44
        %v1872 = vpop.permute.xlu0 %1871
        %1873 = vrot.lane.b32.xlu0 %v617, 44
        %v1874 = vpop.permute.xlu0 %1873
        %1875 = vrot.lane.b32.xlu0 %v618, 44
        %v1876 = vpop.permute.xlu0 %1875
        %1877 = vrot.lane.b32.xlu0 %v619, 44
        %v1878 = vpop.permute.xlu0 %1877
        %1879 = vrot.lane.b32.xlu0 %v620, 44
        %v1880 = vpop.permute.xlu0 %1879
        %1881 = vrot.lane.b32.xlu0 %v621, 44
        %v1882 = vpop.permute.xlu0 %1881
        %1883 = vrot.lane.b32.xlu0 %v622, 44
        %v1884 = vpop.permute.xlu0 %1883
        %1885 = vrot.lane.b32.xlu0 %v623, 44
        %v1886 = vpop.permute.xlu0 %1885
        %1903 = vrot.lane.b32.xlu0 %v624, 48
        %v1904 = vpop.permute.xlu0 %1903
        %1905 = vrot.lane.b32.xlu0 %v625, 48
        %v1906 = vpop.permute.xlu0 %1905
        %1907 = vrot.lane.b32.xlu0 %v626, 48
        %v1908 = vpop.permute.xlu0 %1907
        %1909 = vrot.lane.b32.xlu0 %v627, 48
        %v1910 = vpop.permute.xlu0 %1909
        %1911 = vrot.lane.b32.xlu0 %v628, 48
        %v1912 = vpop.permute.xlu0 %1911
        %1913 = vrot.lane.b32.xlu0 %v629, 48
        %v1914 = vpop.permute.xlu0 %1913
        %1915 = vrot.lane.b32.xlu0 %v630, 48
        %v1916 = vpop.permute.xlu0 %1915
        %1917 = vrot.lane.b32.xlu0 %v631, 48
        %v1918 = vpop.permute.xlu0 %1917
        %1935 = vrot.lane.b32.xlu0 %v632, 52
        %v1936 = vpop.permute.xlu0 %1935
        %1937 = vrot.lane.b32.xlu0 %v633, 52
        %v1938 = vpop.permute.xlu0 %1937
        %1939 = vrot.lane.b32.xlu0 %v634, 52
        %v1940 = vpop.permute.xlu0 %1939
        %1941 = vrot.lane.b32.xlu0 %v635, 52
        %v1942 = vpop.permute.xlu0 %1941
        %1943 = vrot.lane.b32.xlu0 %v636, 52
        %v1944 = vpop.permute.xlu0 %1943
        %1945 = vrot.lane.b32.xlu0 %v637, 52
        %v1946 = vpop.permute.xlu0 %1945
        %1947 = vrot.lane.b32.xlu0 %v638, 52
        %v1948 = vpop.permute.xlu0 %1947
        %1949 = vrot.lane.b32.xlu0 %v639, 52
        %v1950 = vpop.permute.xlu0 %1949
        %1967 = vrot.lane.b32.xlu0 %v640, 56
        %v1968 = vpop.permute.xlu0 %1967
        %1969 = vrot.lane.b32.xlu0 %v641, 56
        %v1970 = vpop.permute.xlu0 %1969
        %1971 = vrot.lane.b32.xlu0 %v642, 56
        %v1972 = vpop.permute.xlu0 %1971
        %1973 = vrot.lane.b32.xlu0 %v643, 56
        %v1974 = vpop.permute.xlu0 %1973
        %1975 = vrot.lane.b32.xlu0 %v644, 56
        %v1976 = vpop.permute.xlu0 %1975
        %1977 = vrot.lane.b32.xlu0 %v645, 56
        %v1978 = vpop.permute.xlu0 %1977
        %1979 = vrot.lane.b32.xlu0 %v646, 56
        %v1980 = vpop.permute.xlu0 %1979
        %1981 = vrot.lane.b32.xlu0 %v647, 56
        %v1982 = vpop.permute.xlu0 %1981
        %1999 = vrot.lane.b32.xlu0 %v648, 60
        %v2000 = vpop.permute.xlu0 %1999
        %2001 = vrot.lane.b32.xlu0 %v649, 60
        %v2002 = vpop.permute.xlu0 %2001
        %2003 = vrot.lane.b32.xlu0 %v650, 60
        %v2004 = vpop.permute.xlu0 %2003
        %2005 = vrot.lane.b32.xlu0 %v651, 60
        %v2006 = vpop.permute.xlu0 %2005
        %2007 = vrot.lane.b32.xlu0 %v652, 60
        %v2008 = vpop.permute.xlu0 %2007
        %2009 = vrot.lane.b32.xlu0 %v653, 60
        %v2010 = vpop.permute.xlu0 %2009
        %2011 = vrot.lane.b32.xlu0 %v654, 60
        %v2012 = vpop.permute.xlu0 %2011
        %2013 = vrot.lane.b32.xlu0 %v655, 60
        %v2014 = vpop.permute.xlu0 %2013
        %v2023 = vsel %vm1408, %v521, %v1552
        %v2024 = vsel %vm1408, %v522, %v1554
        %v2025 = vsel %vm1408, %v523, %v1556
        %v2026 = vsel %vm1408, %v524, %v1558
        %v2027 = vsel %vm1408, %v525, %v1560
        %v2028 = vsel %vm1408, %v526, %v1562
        %v2029 = vsel %vm1408, %v527, %v1564
        %v2030 = vsel %vm1408, %v528, %v1566
        %v2031 = vsel %vm1417, %v2023, %v1584
        %v2032 = vsel %vm1417, %v2024, %v1586
        %v2033 = vsel %vm1417, %v2025, %v1588
        %v2034 = vsel %vm1417, %v2026, %v1590
        %v2035 = vsel %vm1417, %v2027, %v1592
        %v2036 = vsel %vm1417, %v2028, %v1594
        %v2037 = vsel %vm1417, %v2029, %v1596
        %v2038 = vsel %vm1417, %v2030, %v1598
        %v2039 = vsel %vm1426, %v2031, %v1616
        %v2040 = vsel %vm1426, %v2032, %v1618
        %v2041 = vsel %vm1426, %v2033, %v1620
        %v2042 = vsel %vm1426, %v2034, %v1622
        %v2043 = vsel %vm1426, %v2035, %v1624
        %v2044 = vsel %vm1426, %v2036, %v1626
        %v2045 = vsel %vm1426, %v2037, %v1628
        %v2046 = vsel %vm1426, %v2038, %v1630
        %v2047 = vsel %vm1435, %v2039, %v1648
        %v2048 = vsel %vm1435, %v2040, %v1650
        %v2049 = vsel %vm1435, %v2041, %v1652
        %v2050 = vsel %vm1435, %v2042, %v1654
        %v2051 = vsel %vm1435, %v2043, %v1656
        %v2052 = vsel %vm1435, %v2044, %v1658
        %v2053 = vsel %vm1435, %v2045, %v1660
        %v2054 = vsel %vm1435, %v2046, %v1662
        %v2055 = vsel %vm1444, %v2047, %v1680
        %v2056 = vsel %vm1444, %v2048, %v1682
        %v2057 = vsel %vm1444, %v2049, %v1684
        %v2058 = vsel %vm1444, %v2050, %v1686
        %v2059 = vsel %vm1444, %v2051, %v1688
        %v2060 = vsel %vm1444, %v2052, %v1690
        %v2061 = vsel %vm1444, %v2053, %v1692
        %v2062 = vsel %vm1444, %v2054, %v1694
        %v2063 = vsel %vm1453, %v2055, %v1712
        %v2064 = vsel %vm1453, %v2056, %v1714
        %v2065 = vsel %vm1453, %v2057, %v1716
        %v2066 = vsel %vm1453, %v2058, %v1718
        %v2067 = vsel %vm1453, %v2059, %v1720
        %v2068 = vsel %vm1453, %v2060, %v1722
        %v2069 = vsel %vm1453, %v2061, %v1724
        %v2070 = vsel %vm1453, %v2062, %v1726
        %v2071 = vsel %vm1462, %v2063, %v1744
        %v2072 = vsel %vm1462, %v2064, %v1746
        %v2073 = vsel %vm1462, %v2065, %v1748
        %v2074 = vsel %vm1462, %v2066, %v1750
        %v2075 = vsel %vm1462, %v2067, %v1752
        %v2076 = vsel %vm1462, %v2068, %v1754
        %v2077 = vsel %vm1462, %v2069, %v1756
        %v2078 = vsel %vm1462, %v2070, %v1758
        %v2079 = vsel %vm1471, %v2071, %v1776
        %v2080 = vsel %vm1471, %v2072, %v1778
        %v2081 = vsel %vm1471, %v2073, %v1780
        %v2082 = vsel %vm1471, %v2074, %v1782
        %v2083 = vsel %vm1471, %v2075, %v1784
        %v2084 = vsel %vm1471, %v2076, %v1786
        %v2085 = vsel %vm1471, %v2077, %v1788
        %v2086 = vsel %vm1471, %v2078, %v1790
        %v2087 = vsel %vm1480, %v2079, %v1808
        %v2088 = vsel %vm1480, %v2080, %v1810
        %v2089 = vsel %vm1480, %v2081, %v1812
        %v2090 = vsel %vm1480, %v2082, %v1814
        %v2091 = vsel %vm1480, %v2083, %v1816
        %v2092 = vsel %vm1480, %v2084, %v1818
        %v2093 = vsel %vm1480, %v2085, %v1820
        %v2094 = vsel %vm1480, %v2086, %v1822
        %v2095 = vsel %vm1489, %v2087, %v1840
        %v2096 = vsel %vm1489, %v2088, %v1842
        %v2097 = vsel %vm1489, %v2089, %v1844
        %v2098 = vsel %vm1489, %v2090, %v1846
        %v2099 = vsel %vm1489, %v2091, %v1848
        %v2100 = vsel %vm1489, %v2092, %v1850
        %v2101 = vsel %vm1489, %v2093, %v1852
        %v2102 = vsel %vm1489, %v2094, %v1854
        %v2103 = vsel %vm1498, %v2095, %v1872
        %v2104 = vsel %vm1498, %v2096, %v1874
        %v2105 = vsel %vm1498, %v2097, %v1876
        %v2106 = vsel %vm1498, %v2098, %v1878
        %v2107 = vsel %vm1498, %v2099, %v1880
        %v2108 = vsel %vm1498, %v2100, %v1882
        %v2109 = vsel %vm1498, %v2101, %v1884
        %v2110 = vsel %vm1498, %v2102, %v1886
        %v2111 = vsel %vm1507, %v2103, %v1904
        %v2112 = vsel %vm1507, %v2104, %v1906
        %v2113 = vsel %vm1507, %v2105, %v1908
        %v2114 = vsel %vm1507, %v2106, %v1910
        %v2115 = vsel %vm1507, %v2107, %v1912
        %v2116 = vsel %vm1507, %v2108, %v1914
        %v2117 = vsel %vm1507, %v2109, %v1916
        %v2118 = vsel %vm1507, %v2110, %v1918
        %v2119 = vsel %vm1516, %v2111, %v1936
        %v2120 = vsel %vm1516, %v2112, %v1938
        %v2121 = vsel %vm1516, %v2113, %v1940
        %v2122 = vsel %vm1516, %v2114, %v1942
        %v2123 = vsel %vm1516, %v2115, %v1944
        %v2124 = vsel %vm1516, %v2116, %v1946
        %v2125 = vsel %vm1516, %v2117, %v1948
        %v2126 = vsel %vm1516, %v2118, %v1950
        %v2127 = vsel %vm1525, %v2119, %v1968
        %v2128 = vsel %vm1525, %v2120, %v1970
        %v2129 = vsel %vm1525, %v2121, %v1972
        %v2130 = vsel %vm1525, %v2122, %v1974
        %v2131 = vsel %vm1525, %v2123, %v1976
        %v2132 = vsel %vm1525, %v2124, %v1978
        %v2133 = vsel %vm1525, %v2125, %v1980
        %v2134 = vsel %vm1525, %v2126, %v1982
        %v2135 = vsel %vm1534, %v2127, %v2000
        %v2136 = vsel %vm1534, %v2128, %v2002
        %v2137 = vsel %vm1534, %v2129, %v2004
        %v2138 = vsel %vm1534, %v2130, %v2006
        %v2139 = vsel %vm1534, %v2131, %v2008
        %v2140 = vsel %vm1534, %v2132, %v2010
        %v2141 = vsel %vm1534, %v2133, %v2012
        %v2142 = vsel %vm1534, %v2134, %v2014
        %2151 = vrot.lane.b32.xlu0 %v666, 4
        %v2152 = vpop.permute.xlu0 %2151
        %2153 = vrot.lane.b32.xlu0 %v667, 4
        %v2154 = vpop.permute.xlu0 %2153
        %2155 = vrot.lane.b32.xlu0 %v668, 4
        %v2156 = vpop.permute.xlu0 %2155
        %2157 = vrot.lane.b32.xlu0 %v669, 4
        %v2158 = vpop.permute.xlu0 %2157
        %2159 = vrot.lane.b32.xlu0 %v670, 4
        %v2160 = vpop.permute.xlu0 %2159
        %2161 = vrot.lane.b32.xlu0 %v671, 4
        %v2162 = vpop.permute.xlu0 %2161
        %2163 = vrot.lane.b32.xlu0 %v672, 4
        %v2164 = vpop.permute.xlu0 %2163
        %2165 = vrot.lane.b32.xlu0 %v673, 4
        %v2166 = vpop.permute.xlu0 %2165
        %2183 = vrot.lane.b32.xlu0 %v675, 8
        %v2184 = vpop.permute.xlu0 %2183
        %2185 = vrot.lane.b32.xlu0 %v676, 8
        %v2186 = vpop.permute.xlu0 %2185
        %2187 = vrot.lane.b32.xlu0 %v677, 8
        %v2188 = vpop.permute.xlu0 %2187
        %2189 = vrot.lane.b32.xlu0 %v678, 8
        %v2190 = vpop.permute.xlu0 %2189
        %2191 = vrot.lane.b32.xlu0 %v679, 8
        %v2192 = vpop.permute.xlu0 %2191
        %2193 = vrot.lane.b32.xlu0 %v680, 8
        %v2194 = vpop.permute.xlu0 %2193
        %2195 = vrot.lane.b32.xlu0 %v681, 8
        %v2196 = vpop.permute.xlu0 %2195
        %2197 = vrot.lane.b32.xlu0 %v682, 8
        %v2198 = vpop.permute.xlu0 %2197
        %2215 = vrot.lane.b32.xlu0 %v684, 12
        %v2216 = vpop.permute.xlu0 %2215
        %2217 = vrot.lane.b32.xlu0 %v685, 12
        %v2218 = vpop.permute.xlu0 %2217
        %2219 = vrot.lane.b32.xlu0 %v686, 12
        %v2220 = vpop.permute.xlu0 %2219
        %2221 = vrot.lane.b32.xlu0 %v687, 12
        %v2222 = vpop.permute.xlu0 %2221
        %2223 = vrot.lane.b32.xlu0 %v688, 12
        %v2224 = vpop.permute.xlu0 %2223
        %2225 = vrot.lane.b32.xlu0 %v689, 12
        %v2226 = vpop.permute.xlu0 %2225
        %2227 = vrot.lane.b32.xlu0 %v690, 12
        %v2228 = vpop.permute.xlu0 %2227
        %2229 = vrot.lane.b32.xlu0 %v691, 12
        %v2230 = vpop.permute.xlu0 %2229
        %2247 = vrot.lane.b32.xlu0 %v692, 16
        %v2248 = vpop.permute.xlu0 %2247
        %2249 = vrot.lane.b32.xlu0 %v693, 16
        %v2250 = vpop.permute.xlu0 %2249
        %2251 = vrot.lane.b32.xlu0 %v694, 16
        %v2252 = vpop.permute.xlu0 %2251
        %2253 = vrot.lane.b32.xlu0 %v695, 16
        %v2254 = vpop.permute.xlu0 %2253
        %2255 = vrot.lane.b32.xlu0 %v696, 16
        %v2256 = vpop.permute.xlu0 %2255
        %2257 = vrot.lane.b32.xlu0 %v697, 16
        %v2258 = vpop.permute.xlu0 %2257
        %2259 = vrot.lane.b32.xlu0 %v698, 16
        %v2260 = vpop.permute.xlu0 %2259
        %2261 = vrot.lane.b32.xlu0 %v699, 16
        %v2262 = vpop.permute.xlu0 %2261
        %2279 = vrot.lane.b32.xlu0 %v700, 20
        %v2280 = vpop.permute.xlu0 %2279
        %2281 = vrot.lane.b32.xlu0 %v701, 20
        %v2282 = vpop.permute.xlu0 %2281
        %2283 = vrot.lane.b32.xlu0 %v702, 20
        %v2284 = vpop.permute.xlu0 %2283
        %2285 = vrot.lane.b32.xlu0 %v703, 20
        %v2286 = vpop.permute.xlu0 %2285
        %2287 = vrot.lane.b32.xlu0 %v704, 20
        %v2288 = vpop.permute.xlu0 %2287
        %2289 = vrot.lane.b32.xlu0 %v705, 20
        %v2290 = vpop.permute.xlu0 %2289
        %2291 = vrot.lane.b32.xlu0 %v706, 20
        %v2292 = vpop.permute.xlu0 %2291
        %2293 = vrot.lane.b32.xlu0 %v707, 20
        %v2294 = vpop.permute.xlu0 %2293
        %2311 = vrot.lane.b32.xlu0 %v708, 24
        %v2312 = vpop.permute.xlu0 %2311
        %2313 = vrot.lane.b32.xlu0 %v709, 24
        %v2314 = vpop.permute.xlu0 %2313
        %2315 = vrot.lane.b32.xlu0 %v710, 24
        %v2316 = vpop.permute.xlu0 %2315
        %2317 = vrot.lane.b32.xlu0 %v711, 24
        %v2318 = vpop.permute.xlu0 %2317
        %2319 = vrot.lane.b32.xlu0 %v712, 24
        %v2320 = vpop.permute.xlu0 %2319
        %2321 = vrot.lane.b32.xlu0 %v713, 24
        %v2322 = vpop.permute.xlu0 %2321
        %2323 = vrot.lane.b32.xlu0 %v714, 24
        %v2324 = vpop.permute.xlu0 %2323
        %2325 = vrot.lane.b32.xlu0 %v715, 24
        %v2326 = vpop.permute.xlu0 %2325
        %2343 = vrot.lane.b32.xlu0 %v716, 28
        %v2344 = vpop.permute.xlu0 %2343
        %2345 = vrot.lane.b32.xlu0 %v717, 28
        %v2346 = vpop.permute.xlu0 %2345
        %2347 = vrot.lane.b32.xlu0 %v718, 28
        %v2348 = vpop.permute.xlu0 %2347
        %2349 = vrot.lane.b32.xlu0 %v719, 28
        %v2350 = vpop.permute.xlu0 %2349
        %2351 = vrot.lane.b32.xlu0 %v720, 28
        %v2352 = vpop.permute.xlu0 %2351
        %2353 = vrot.lane.b32.xlu0 %v721, 28
        %v2354 = vpop.permute.xlu0 %2353
        %2355 = vrot.lane.b32.xlu0 %v722, 28
        %v2356 = vpop.permute.xlu0 %2355
        %2357 = vrot.lane.b32.xlu0 %v723, 28
        %v2358 = vpop.permute.xlu0 %2357
        %2375 = vrot.lane.b32.xlu0 %v725, 32
        %v2376 = vpop.permute.xlu0 %2375
        %2377 = vrot.lane.b32.xlu0 %v726, 32
        %v2378 = vpop.permute.xlu0 %2377
        %2379 = vrot.lane.b32.xlu0 %v727, 32
        %v2380 = vpop.permute.xlu0 %2379
        %2381 = vrot.lane.b32.xlu0 %v728, 32
        %v2382 = vpop.permute.xlu0 %2381
        %2383 = vrot.lane.b32.xlu0 %v729, 32
        %v2384 = vpop.permute.xlu0 %2383
        %2385 = vrot.lane.b32.xlu0 %v730, 32
        %v2386 = vpop.permute.xlu0 %2385
        %2387 = vrot.lane.b32.xlu0 %v731, 32
        %v2388 = vpop.permute.xlu0 %2387
        %2389 = vrot.lane.b32.xlu0 %v732, 32
        %v2390 = vpop.permute.xlu0 %2389
        %2407 = vrot.lane.b32.xlu0 %v734, 36
        %v2408 = vpop.permute.xlu0 %2407
        %2409 = vrot.lane.b32.xlu0 %v735, 36
        %v2410 = vpop.permute.xlu0 %2409
        %2411 = vrot.lane.b32.xlu0 %v736, 36
        %v2412 = vpop.permute.xlu0 %2411
        %2413 = vrot.lane.b32.xlu0 %v737, 36
        %v2414 = vpop.permute.xlu0 %2413
        %2415 = vrot.lane.b32.xlu0 %v738, 36
        %v2416 = vpop.permute.xlu0 %2415
        %2417 = vrot.lane.b32.xlu0 %v739, 36
        %v2418 = vpop.permute.xlu0 %2417
        %2419 = vrot.lane.b32.xlu0 %v740, 36
        %v2420 = vpop.permute.xlu0 %2419
        %2421 = vrot.lane.b32.xlu0 %v741, 36
        %v2422 = vpop.permute.xlu0 %2421
        %2439 = vrot.lane.b32.xlu0 %v743, 40
        %v2440 = vpop.permute.xlu0 %2439
        %2441 = vrot.lane.b32.xlu0 %v744, 40
        %v2442 = vpop.permute.xlu0 %2441
        %2443 = vrot.lane.b32.xlu0 %v745, 40
        %v2444 = vpop.permute.xlu0 %2443
        %2445 = vrot.lane.b32.xlu0 %v746, 40
        %v2446 = vpop.permute.xlu0 %2445
        %2447 = vrot.lane.b32.xlu0 %v747, 40
        %v2448 = vpop.permute.xlu0 %2447
        %2449 = vrot.lane.b32.xlu0 %v748, 40
        %v2450 = vpop.permute.xlu0 %2449
        %2451 = vrot.lane.b32.xlu0 %v749, 40
        %v2452 = vpop.permute.xlu0 %2451
        %2453 = vrot.lane.b32.xlu0 %v750, 40
        %v2454 = vpop.permute.xlu0 %2453
        %2471 = vrot.lane.b32.xlu0 %v752, 44
        %v2472 = vpop.permute.xlu0 %2471
        %2473 = vrot.lane.b32.xlu0 %v753, 44
        %v2474 = vpop.permute.xlu0 %2473
        %2475 = vrot.lane.b32.xlu0 %v754, 44
        %v2476 = vpop.permute.xlu0 %2475
        %2477 = vrot.lane.b32.xlu0 %v755, 44
        %v2478 = vpop.permute.xlu0 %2477
        %2479 = vrot.lane.b32.xlu0 %v756, 44
        %v2480 = vpop.permute.xlu0 %2479
        %2481 = vrot.lane.b32.xlu0 %v757, 44
        %v2482 = vpop.permute.xlu0 %2481
        %2483 = vrot.lane.b32.xlu0 %v758, 44
        %v2484 = vpop.permute.xlu0 %2483
        %2485 = vrot.lane.b32.xlu0 %v759, 44
        %v2486 = vpop.permute.xlu0 %2485
        %2503 = vrot.lane.b32.xlu0 %v760, 48
        %v2504 = vpop.permute.xlu0 %2503
        %2505 = vrot.lane.b32.xlu0 %v761, 48
        %v2506 = vpop.permute.xlu0 %2505
        %2507 = vrot.lane.b32.xlu0 %v762, 48
        %v2508 = vpop.permute.xlu0 %2507
        %2509 = vrot.lane.b32.xlu0 %v763, 48
        %v2510 = vpop.permute.xlu0 %2509
        %2511 = vrot.lane.b32.xlu0 %v764, 48
        %v2512 = vpop.permute.xlu0 %2511
        %2513 = vrot.lane.b32.xlu0 %v765, 48
        %v2514 = vpop.permute.xlu0 %2513
        %2515 = vrot.lane.b32.xlu0 %v766, 48
        %v2516 = vpop.permute.xlu0 %2515
        %2517 = vrot.lane.b32.xlu0 %v767, 48
        %v2518 = vpop.permute.xlu0 %2517
        %2535 = vrot.lane.b32.xlu0 %v768, 52
        %v2536 = vpop.permute.xlu0 %2535
        %2537 = vrot.lane.b32.xlu0 %v769, 52
        %v2538 = vpop.permute.xlu0 %2537
        %2539 = vrot.lane.b32.xlu0 %v770, 52
        %v2540 = vpop.permute.xlu0 %2539
        %2541 = vrot.lane.b32.xlu0 %v771, 52
        %v2542 = vpop.permute.xlu0 %2541
        %2543 = vrot.lane.b32.xlu0 %v772, 52
        %v2544 = vpop.permute.xlu0 %2543
        %2545 = vrot.lane.b32.xlu0 %v773, 52
        %v2546 = vpop.permute.xlu0 %2545
        %2547 = vrot.lane.b32.xlu0 %v774, 52
        %v2548 = vpop.permute.xlu0 %2547
        %2549 = vrot.lane.b32.xlu0 %v775, 52
        %v2550 = vpop.permute.xlu0 %2549
        %2567 = vrot.lane.b32.xlu0 %v776, 56
        %v2568 = vpop.permute.xlu0 %2567
        %2569 = vrot.lane.b32.xlu0 %v777, 56
        %v2570 = vpop.permute.xlu0 %2569
        %2571 = vrot.lane.b32.xlu0 %v778, 56
        %v2572 = vpop.permute.xlu0 %2571
        %2573 = vrot.lane.b32.xlu0 %v779, 56
        %v2574 = vpop.permute.xlu0 %2573
        %2575 = vrot.lane.b32.xlu0 %v780, 56
        %v2576 = vpop.permute.xlu0 %2575
        %2577 = vrot.lane.b32.xlu0 %v781, 56
        %v2578 = vpop.permute.xlu0 %2577
        %2579 = vrot.lane.b32.xlu0 %v782, 56
        %v2580 = vpop.permute.xlu0 %2579
        %2581 = vrot.lane.b32.xlu0 %v783, 56
        %v2582 = vpop.permute.xlu0 %2581
        %2599 = vrot.lane.b32.xlu0 %v784, 60
        %v2600 = vpop.permute.xlu0 %2599
        %2601 = vrot.lane.b32.xlu0 %v785, 60
        %v2602 = vpop.permute.xlu0 %2601
        %2603 = vrot.lane.b32.xlu0 %v786, 60
        %v2604 = vpop.permute.xlu0 %2603
        %2605 = vrot.lane.b32.xlu0 %v787, 60
        %v2606 = vpop.permute.xlu0 %2605
        %2607 = vrot.lane.b32.xlu0 %v788, 60
        %v2608 = vpop.permute.xlu0 %2607
        %2609 = vrot.lane.b32.xlu0 %v789, 60
        %v2610 = vpop.permute.xlu0 %2609
        %2611 = vrot.lane.b32.xlu0 %v790, 60
        %v2612 = vpop.permute.xlu0 %2611
        %2613 = vrot.lane.b32.xlu0 %v791, 60
        %v2614 = vpop.permute.xlu0 %2613
        %v2623 = vsel %vm1408, %v657, %v2152
        %v2624 = vsel %vm1408, %v658, %v2154
        %v2625 = vsel %vm1408, %v659, %v2156
        %v2626 = vsel %vm1408, %v660, %v2158
        %v2627 = vsel %vm1408, %v661, %v2160
        %v2628 = vsel %vm1408, %v662, %v2162
        %v2629 = vsel %vm1408, %v663, %v2164
        %v2630 = vsel %vm1408, %v664, %v2166
        %v2631 = vsel %vm1417, %v2623, %v2184
        %v2632 = vsel %vm1417, %v2624, %v2186
        %v2633 = vsel %vm1417, %v2625, %v2188
        %v2634 = vsel %vm1417, %v2626, %v2190
        %v2635 = vsel %vm1417, %v2627, %v2192
        %v2636 = vsel %vm1417, %v2628, %v2194
        %v2637 = vsel %vm1417, %v2629, %v2196
        %v2638 = vsel %vm1417, %v2630, %v2198
        %v2639 = vsel %vm1426, %v2631, %v2216
        %v2640 = vsel %vm1426, %v2632, %v2218
        %v2641 = vsel %vm1426, %v2633, %v2220
        %v2642 = vsel %vm1426, %v2634, %v2222
        %v2643 = vsel %vm1426, %v2635, %v2224
        %v2644 = vsel %vm1426, %v2636, %v2226
        %v2645 = vsel %vm1426, %v2637, %v2228
        %v2646 = vsel %vm1426, %v2638, %v2230
        %v2647 = vsel %vm1435, %v2639, %v2248
        %v2648 = vsel %vm1435, %v2640, %v2250
        %v2649 = vsel %vm1435, %v2641, %v2252
        %v2650 = vsel %vm1435, %v2642, %v2254
        %v2651 = vsel %vm1435, %v2643, %v2256
        %v2652 = vsel %vm1435, %v2644, %v2258
        %v2653 = vsel %vm1435, %v2645, %v2260
        %v2654 = vsel %vm1435, %v2646, %v2262
        %v2655 = vsel %vm1444, %v2647, %v2280
        %v2656 = vsel %vm1444, %v2648, %v2282
        %v2657 = vsel %vm1444, %v2649, %v2284
        %v2658 = vsel %vm1444, %v2650, %v2286
        %v2659 = vsel %vm1444, %v2651, %v2288
        %v2660 = vsel %vm1444, %v2652, %v2290
        %v2661 = vsel %vm1444, %v2653, %v2292
        %v2662 = vsel %vm1444, %v2654, %v2294
        %v2663 = vsel %vm1453, %v2655, %v2312
        %v2664 = vsel %vm1453, %v2656, %v2314
        %v2665 = vsel %vm1453, %v2657, %v2316
        %v2666 = vsel %vm1453, %v2658, %v2318
        %v2667 = vsel %vm1453, %v2659, %v2320
        %v2668 = vsel %vm1453, %v2660, %v2322
        %v2669 = vsel %vm1453, %v2661, %v2324
        %v2670 = vsel %vm1453, %v2662, %v2326
        %v2671 = vsel %vm1462, %v2663, %v2344
        %v2672 = vsel %vm1462, %v2664, %v2346
        %v2673 = vsel %vm1462, %v2665, %v2348
        %v2674 = vsel %vm1462, %v2666, %v2350
        %v2675 = vsel %vm1462, %v2667, %v2352
        %v2676 = vsel %vm1462, %v2668, %v2354
        %v2677 = vsel %vm1462, %v2669, %v2356
        %v2678 = vsel %vm1462, %v2670, %v2358
        %v2679 = vsel %vm1471, %v2671, %v2376
        %v2680 = vsel %vm1471, %v2672, %v2378
        %v2681 = vsel %vm1471, %v2673, %v2380
        %v2682 = vsel %vm1471, %v2674, %v2382
        %v2683 = vsel %vm1471, %v2675, %v2384
        %v2684 = vsel %vm1471, %v2676, %v2386
        %v2685 = vsel %vm1471, %v2677, %v2388
        %v2686 = vsel %vm1471, %v2678, %v2390
        %v2687 = vsel %vm1480, %v2679, %v2408
        %v2688 = vsel %vm1480, %v2680, %v2410
        %v2689 = vsel %vm1480, %v2681, %v2412
        %v2690 = vsel %vm1480, %v2682, %v2414
        %v2691 = vsel %vm1480, %v2683, %v2416
        %v2692 = vsel %vm1480, %v2684, %v2418
        %v2693 = vsel %vm1480, %v2685, %v2420
        %v2694 = vsel %vm1480, %v2686, %v2422
        %v2695 = vsel %vm1489, %v2687, %v2440
        %v2696 = vsel %vm1489, %v2688, %v2442
        %v2697 = vsel %vm1489, %v2689, %v2444
        %v2698 = vsel %vm1489, %v2690, %v2446
        %v2699 = vsel %vm1489, %v2691, %v2448
        %v2700 = vsel %vm1489, %v2692, %v2450
        %v2701 = vsel %vm1489, %v2693, %v2452
        %v2702 = vsel %vm1489, %v2694, %v2454
        %v2703 = vsel %vm1498, %v2695, %v2472
        %v2704 = vsel %vm1498, %v2696, %v2474
        %v2705 = vsel %vm1498, %v2697, %v2476
        %v2706 = vsel %vm1498, %v2698, %v2478
        %v2707 = vsel %vm1498, %v2699, %v2480
        %v2708 = vsel %vm1498, %v2700, %v2482
        %v2709 = vsel %vm1498, %v2701, %v2484
        %v2710 = vsel %vm1498, %v2702, %v2486
        %v2711 = vsel %vm1507, %v2703, %v2504
        %v2712 = vsel %vm1507, %v2704, %v2506
        %v2713 = vsel %vm1507, %v2705, %v2508
        %v2714 = vsel %vm1507, %v2706, %v2510
        %v2715 = vsel %vm1507, %v2707, %v2512
        %v2716 = vsel %vm1507, %v2708, %v2514
        %v2717 = vsel %vm1507, %v2709, %v2516
        %v2718 = vsel %vm1507, %v2710, %v2518
        %v2719 = vsel %vm1516, %v2711, %v2536
        %v2720 = vsel %vm1516, %v2712, %v2538
        %v2721 = vsel %vm1516, %v2713, %v2540
        %v2722 = vsel %vm1516, %v2714, %v2542
        %v2723 = vsel %vm1516, %v2715, %v2544
        %v2724 = vsel %vm1516, %v2716, %v2546
        %v2725 = vsel %vm1516, %v2717, %v2548
        %v2726 = vsel %vm1516, %v2718, %v2550
        %v2727 = vsel %vm1525, %v2719, %v2568
        %v2728 = vsel %vm1525, %v2720, %v2570
        %v2729 = vsel %vm1525, %v2721, %v2572
        %v2730 = vsel %vm1525, %v2722, %v2574
        %v2731 = vsel %vm1525, %v2723, %v2576
        %v2732 = vsel %vm1525, %v2724, %v2578
        %v2733 = vsel %vm1525, %v2725, %v2580
        %v2734 = vsel %vm1525, %v2726, %v2582
        %v2735 = vsel %vm1534, %v2727, %v2600
        %v2736 = vsel %vm1534, %v2728, %v2602
        %v2737 = vsel %vm1534, %v2729, %v2604
        %v2738 = vsel %vm1534, %v2730, %v2606
        %v2739 = vsel %vm1534, %v2731, %v2608
        %v2740 = vsel %vm1534, %v2732, %v2610
        %v2741 = vsel %vm1534, %v2733, %v2612
        %v2742 = vsel %vm1534, %v2734, %v2614
        %2751 = vrot.lane.b32.xlu0 %v802, 4
        %v2752 = vpop.permute.xlu0 %2751
        %2753 = vrot.lane.b32.xlu0 %v803, 4
        %v2754 = vpop.permute.xlu0 %2753
        %2755 = vrot.lane.b32.xlu0 %v804, 4
        %v2756 = vpop.permute.xlu0 %2755
        %2757 = vrot.lane.b32.xlu0 %v805, 4
        %v2758 = vpop.permute.xlu0 %2757
        %2759 = vrot.lane.b32.xlu0 %v806, 4
        %v2760 = vpop.permute.xlu0 %2759
        %2761 = vrot.lane.b32.xlu0 %v807, 4
        %v2762 = vpop.permute.xlu0 %2761
        %2763 = vrot.lane.b32.xlu0 %v808, 4
        %v2764 = vpop.permute.xlu0 %2763
        %2765 = vrot.lane.b32.xlu0 %v809, 4
        %v2766 = vpop.permute.xlu0 %2765
        %2783 = vrot.lane.b32.xlu0 %v811, 8
        %v2784 = vpop.permute.xlu0 %2783
        %2785 = vrot.lane.b32.xlu0 %v812, 8
        %v2786 = vpop.permute.xlu0 %2785
        %2787 = vrot.lane.b32.xlu0 %v813, 8
        %v2788 = vpop.permute.xlu0 %2787
        %2789 = vrot.lane.b32.xlu0 %v814, 8
        %v2790 = vpop.permute.xlu0 %2789
        %2791 = vrot.lane.b32.xlu0 %v815, 8
        %v2792 = vpop.permute.xlu0 %2791
        %2793 = vrot.lane.b32.xlu0 %v816, 8
        %v2794 = vpop.permute.xlu0 %2793
        %2795 = vrot.lane.b32.xlu0 %v817, 8
        %v2796 = vpop.permute.xlu0 %2795
        %2797 = vrot.lane.b32.xlu0 %v818, 8
        %v2798 = vpop.permute.xlu0 %2797
        %2815 = vrot.lane.b32.xlu0 %v820, 12
        %v2816 = vpop.permute.xlu0 %2815
        %2817 = vrot.lane.b32.xlu0 %v821, 12
        %v2818 = vpop.permute.xlu0 %2817
        %2819 = vrot.lane.b32.xlu0 %v822, 12
        %v2820 = vpop.permute.xlu0 %2819
        %2821 = vrot.lane.b32.xlu0 %v823, 12
        %v2822 = vpop.permute.xlu0 %2821
        %2823 = vrot.lane.b32.xlu0 %v824, 12
        %v2824 = vpop.permute.xlu0 %2823
        %2825 = vrot.lane.b32.xlu0 %v825, 12
        %v2826 = vpop.permute.xlu0 %2825
        %2827 = vrot.lane.b32.xlu0 %v826, 12
        %v2828 = vpop.permute.xlu0 %2827
        %2829 = vrot.lane.b32.xlu0 %v827, 12
        %v2830 = vpop.permute.xlu0 %2829
        %2847 = vrot.lane.b32.xlu0 %v828, 16
        %v2848 = vpop.permute.xlu0 %2847
        %2849 = vrot.lane.b32.xlu0 %v829, 16
        %v2850 = vpop.permute.xlu0 %2849
        %2851 = vrot.lane.b32.xlu0 %v830, 16
        %v2852 = vpop.permute.xlu0 %2851
        %2853 = vrot.lane.b32.xlu0 %v831, 16
        %v2854 = vpop.permute.xlu0 %2853
        %2855 = vrot.lane.b32.xlu0 %v832, 16
        %v2856 = vpop.permute.xlu0 %2855
        %2857 = vrot.lane.b32.xlu0 %v833, 16
        %v2858 = vpop.permute.xlu0 %2857
        %2859 = vrot.lane.b32.xlu0 %v834, 16
        %v2860 = vpop.permute.xlu0 %2859
        %2861 = vrot.lane.b32.xlu0 %v835, 16
        %v2862 = vpop.permute.xlu0 %2861
        %2879 = vrot.lane.b32.xlu0 %v836, 20
        %v2880 = vpop.permute.xlu0 %2879
        %2881 = vrot.lane.b32.xlu0 %v837, 20
        %v2882 = vpop.permute.xlu0 %2881
        %2883 = vrot.lane.b32.xlu0 %v838, 20
        %v2884 = vpop.permute.xlu0 %2883
        %2885 = vrot.lane.b32.xlu0 %v839, 20
        %v2886 = vpop.permute.xlu0 %2885
        %2887 = vrot.lane.b32.xlu0 %v840, 20
        %v2888 = vpop.permute.xlu0 %2887
        %2889 = vrot.lane.b32.xlu0 %v841, 20
        %v2890 = vpop.permute.xlu0 %2889
        %2891 = vrot.lane.b32.xlu0 %v842, 20
        %v2892 = vpop.permute.xlu0 %2891
        %2893 = vrot.lane.b32.xlu0 %v843, 20
        %v2894 = vpop.permute.xlu0 %2893
        %2911 = vrot.lane.b32.xlu0 %v844, 24
        %v2912 = vpop.permute.xlu0 %2911
        %2913 = vrot.lane.b32.xlu0 %v845, 24
        %v2914 = vpop.permute.xlu0 %2913
        %2915 = vrot.lane.b32.xlu0 %v846, 24
        %v2916 = vpop.permute.xlu0 %2915
        %2917 = vrot.lane.b32.xlu0 %v847, 24
        %v2918 = vpop.permute.xlu0 %2917
        %2919 = vrot.lane.b32.xlu0 %v848, 24
        %v2920 = vpop.permute.xlu0 %2919
        %2921 = vrot.lane.b32.xlu0 %v849, 24
        %v2922 = vpop.permute.xlu0 %2921
        %2923 = vrot.lane.b32.xlu0 %v850, 24
        %v2924 = vpop.permute.xlu0 %2923
        %2925 = vrot.lane.b32.xlu0 %v851, 24
        %v2926 = vpop.permute.xlu0 %2925
        %2943 = vrot.lane.b32.xlu0 %v852, 28
        %v2944 = vpop.permute.xlu0 %2943
        %2945 = vrot.lane.b32.xlu0 %v853, 28
        %v2946 = vpop.permute.xlu0 %2945
        %2947 = vrot.lane.b32.xlu0 %v854, 28
        %v2948 = vpop.permute.xlu0 %2947
        %2949 = vrot.lane.b32.xlu0 %v855, 28
        %v2950 = vpop.permute.xlu0 %2949
        %2951 = vrot.lane.b32.xlu0 %v856, 28
        %v2952 = vpop.permute.xlu0 %2951
        %2953 = vrot.lane.b32.xlu0 %v857, 28
        %v2954 = vpop.permute.xlu0 %2953
        %2955 = vrot.lane.b32.xlu0 %v858, 28
        %v2956 = vpop.permute.xlu0 %2955
        %2957 = vrot.lane.b32.xlu0 %v859, 28
        %v2958 = vpop.permute.xlu0 %2957
        %2975 = vrot.lane.b32.xlu0 %v861, 32
        %v2976 = vpop.permute.xlu0 %2975
        %2977 = vrot.lane.b32.xlu0 %v862, 32
        %v2978 = vpop.permute.xlu0 %2977
        %2979 = vrot.lane.b32.xlu0 %v863, 32
        %v2980 = vpop.permute.xlu0 %2979
        %2981 = vrot.lane.b32.xlu0 %v864, 32
        %v2982 = vpop.permute.xlu0 %2981
        %2983 = vrot.lane.b32.xlu0 %v865, 32
        %v2984 = vpop.permute.xlu0 %2983
        %2985 = vrot.lane.b32.xlu0 %v866, 32
        %v2986 = vpop.permute.xlu0 %2985
        %2987 = vrot.lane.b32.xlu0 %v867, 32
        %v2988 = vpop.permute.xlu0 %2987
        %2989 = vrot.lane.b32.xlu0 %v868, 32
        %v2990 = vpop.permute.xlu0 %2989
        %3007 = vrot.lane.b32.xlu0 %v870, 36
        %v3008 = vpop.permute.xlu0 %3007
        %3009 = vrot.lane.b32.xlu0 %v871, 36
        %v3010 = vpop.permute.xlu0 %3009
        %3011 = vrot.lane.b32.xlu0 %v872, 36
        %v3012 = vpop.permute.xlu0 %3011
        %3013 = vrot.lane.b32.xlu0 %v873, 36
        %v3014 = vpop.permute.xlu0 %3013
        %3015 = vrot.lane.b32.xlu0 %v874, 36
        %v3016 = vpop.permute.xlu0 %3015
        %3017 = vrot.lane.b32.xlu0 %v875, 36
        %v3018 = vpop.permute.xlu0 %3017
        %3019 = vrot.lane.b32.xlu0 %v876, 36
        %v3020 = vpop.permute.xlu0 %3019
        %3021 = vrot.lane.b32.xlu0 %v877, 36
        %v3022 = vpop.permute.xlu0 %3021
        %3039 = vrot.lane.b32.xlu0 %v879, 40
        %v3040 = vpop.permute.xlu0 %3039
        %3041 = vrot.lane.b32.xlu0 %v880, 40
        %v3042 = vpop.permute.xlu0 %3041
        %3043 = vrot.lane.b32.xlu0 %v881, 40
        %v3044 = vpop.permute.xlu0 %3043
        %3045 = vrot.lane.b32.xlu0 %v882, 40
        %v3046 = vpop.permute.xlu0 %3045
        %3047 = vrot.lane.b32.xlu0 %v883, 40
        %v3048 = vpop.permute.xlu0 %3047
        %3049 = vrot.lane.b32.xlu0 %v884, 40
        %v3050 = vpop.permute.xlu0 %3049
        %3051 = vrot.lane.b32.xlu0 %v885, 40
        %v3052 = vpop.permute.xlu0 %3051
        %3053 = vrot.lane.b32.xlu0 %v886, 40
        %v3054 = vpop.permute.xlu0 %3053
        %3071 = vrot.lane.b32.xlu0 %v888, 44
        %v3072 = vpop.permute.xlu0 %3071
        %3073 = vrot.lane.b32.xlu0 %v889, 44
        %v3074 = vpop.permute.xlu0 %3073
        %3075 = vrot.lane.b32.xlu0 %v890, 44
        %v3076 = vpop.permute.xlu0 %3075
        %3077 = vrot.lane.b32.xlu0 %v891, 44
        %v3078 = vpop.permute.xlu0 %3077
        %3079 = vrot.lane.b32.xlu0 %v892, 44
        %v3080 = vpop.permute.xlu0 %3079
        %3081 = vrot.lane.b32.xlu0 %v893, 44
        %v3082 = vpop.permute.xlu0 %3081
        %3083 = vrot.lane.b32.xlu0 %v894, 44
        %v3084 = vpop.permute.xlu0 %3083
        %3085 = vrot.lane.b32.xlu0 %v895, 44
        %v3086 = vpop.permute.xlu0 %3085
        %3103 = vrot.lane.b32.xlu0 %v896, 48
        %v3104 = vpop.permute.xlu0 %3103
        %3105 = vrot.lane.b32.xlu0 %v897, 48
        %v3106 = vpop.permute.xlu0 %3105
        %3107 = vrot.lane.b32.xlu0 %v898, 48
        %v3108 = vpop.permute.xlu0 %3107
        %3109 = vrot.lane.b32.xlu0 %v899, 48
        %v3110 = vpop.permute.xlu0 %3109
        %3111 = vrot.lane.b32.xlu0 %v900, 48
        %v3112 = vpop.permute.xlu0 %3111
        %3113 = vrot.lane.b32.xlu0 %v901, 48
        %v3114 = vpop.permute.xlu0 %3113
        %3115 = vrot.lane.b32.xlu0 %v902, 48
        %v3116 = vpop.permute.xlu0 %3115
        %3117 = vrot.lane.b32.xlu0 %v903, 48
        %v3118 = vpop.permute.xlu0 %3117
        %3135 = vrot.lane.b32.xlu0 %v904, 52
        %v3136 = vpop.permute.xlu0 %3135
        %3137 = vrot.lane.b32.xlu0 %v905, 52
        %v3138 = vpop.permute.xlu0 %3137
        %3139 = vrot.lane.b32.xlu0 %v906, 52
        %v3140 = vpop.permute.xlu0 %3139
        %3141 = vrot.lane.b32.xlu0 %v907, 52
        %v3142 = vpop.permute.xlu0 %3141
        %3143 = vrot.lane.b32.xlu0 %v908, 52
        %v3144 = vpop.permute.xlu0 %3143
        %3145 = vrot.lane.b32.xlu0 %v909, 52
        %v3146 = vpop.permute.xlu0 %3145
        %3147 = vrot.lane.b32.xlu0 %v910, 52
        %v3148 = vpop.permute.xlu0 %3147
        %3149 = vrot.lane.b32.xlu0 %v911, 52
        %v3150 = vpop.permute.xlu0 %3149
        %3167 = vrot.lane.b32.xlu0 %v912, 56
        %v3168 = vpop.permute.xlu0 %3167
        %3169 = vrot.lane.b32.xlu0 %v913, 56
        %v3170 = vpop.permute.xlu0 %3169
        %3171 = vrot.lane.b32.xlu0 %v914, 56
        %v3172 = vpop.permute.xlu0 %3171
        %3173 = vrot.lane.b32.xlu0 %v915, 56
        %v3174 = vpop.permute.xlu0 %3173
        %3175 = vrot.lane.b32.xlu0 %v916, 56
        %v3176 = vpop.permute.xlu0 %3175
        %3177 = vrot.lane.b32.xlu0 %v917, 56
        %v3178 = vpop.permute.xlu0 %3177
        %3179 = vrot.lane.b32.xlu0 %v918, 56
        %v3180 = vpop.permute.xlu0 %3179
        %3181 = vrot.lane.b32.xlu0 %v919, 56
        %v3182 = vpop.permute.xlu0 %3181
        %3199 = vrot.lane.b32.xlu0 %v920, 60
        %v3200 = vpop.permute.xlu0 %3199
        %3201 = vrot.lane.b32.xlu0 %v921, 60
        %v3202 = vpop.permute.xlu0 %3201
        %3203 = vrot.lane.b32.xlu0 %v922, 60
        %v3204 = vpop.permute.xlu0 %3203
        %3205 = vrot.lane.b32.xlu0 %v923, 60
        %v3206 = vpop.permute.xlu0 %3205
        %3207 = vrot.lane.b32.xlu0 %v924, 60
        %v3208 = vpop.permute.xlu0 %3207
        %3209 = vrot.lane.b32.xlu0 %v925, 60
        %v3210 = vpop.permute.xlu0 %3209
        %3211 = vrot.lane.b32.xlu0 %v926, 60
        %v3212 = vpop.permute.xlu0 %3211
        %3213 = vrot.lane.b32.xlu0 %v927, 60
        %v3214 = vpop.permute.xlu0 %3213
        %v3223 = vsel %vm1408, %v793, %v2752
        %v3224 = vsel %vm1408, %v794, %v2754
        %v3225 = vsel %vm1408, %v795, %v2756
        %v3226 = vsel %vm1408, %v796, %v2758
        %v3227 = vsel %vm1408, %v797, %v2760
        %v3228 = vsel %vm1408, %v798, %v2762
        %v3229 = vsel %vm1408, %v799, %v2764
        %v3230 = vsel %vm1408, %v800, %v2766
        %v3231 = vsel %vm1417, %v3223, %v2784
        %v3232 = vsel %vm1417, %v3224, %v2786
        %v3233 = vsel %vm1417, %v3225, %v2788
        %v3234 = vsel %vm1417, %v3226, %v2790
        %v3235 = vsel %vm1417, %v3227, %v2792
        %v3236 = vsel %vm1417, %v3228, %v2794
        %v3237 = vsel %vm1417, %v3229, %v2796
        %v3238 = vsel %vm1417, %v3230, %v2798
        %v3239 = vsel %vm1426, %v3231, %v2816
        %v3240 = vsel %vm1426, %v3232, %v2818
        %v3241 = vsel %vm1426, %v3233, %v2820
        %v3242 = vsel %vm1426, %v3234, %v2822
        %v3243 = vsel %vm1426, %v3235, %v2824
        %v3244 = vsel %vm1426, %v3236, %v2826
        %v3245 = vsel %vm1426, %v3237, %v2828
        %v3246 = vsel %vm1426, %v3238, %v2830
        %v3247 = vsel %vm1435, %v3239, %v2848
        %v3248 = vsel %vm1435, %v3240, %v2850
        %v3249 = vsel %vm1435, %v3241, %v2852
        %v3250 = vsel %vm1435, %v3242, %v2854
        %v3251 = vsel %vm1435, %v3243, %v2856
        %v3252 = vsel %vm1435, %v3244, %v2858
        %v3253 = vsel %vm1435, %v3245, %v2860
        %v3254 = vsel %vm1435, %v3246, %v2862
        %v3255 = vsel %vm1444, %v3247, %v2880
        %v3256 = vsel %vm1444, %v3248, %v2882
        %v3257 = vsel %vm1444, %v3249, %v2884
        %v3258 = vsel %vm1444, %v3250, %v2886
        %v3259 = vsel %vm1444, %v3251, %v2888
        %v3260 = vsel %vm1444, %v3252, %v2890
        %v3261 = vsel %vm1444, %v3253, %v2892
        %v3262 = vsel %vm1444, %v3254, %v2894
        %v3263 = vsel %vm1453, %v3255, %v2912
        %v3264 = vsel %vm1453, %v3256, %v2914
        %v3265 = vsel %vm1453, %v3257, %v2916
        %v3266 = vsel %vm1453, %v3258, %v2918
        %v3267 = vsel %vm1453, %v3259, %v2920
        %v3268 = vsel %vm1453, %v3260, %v2922
        %v3269 = vsel %vm1453, %v3261, %v2924
        %v3270 = vsel %vm1453, %v3262, %v2926
        %v3271 = vsel %vm1462, %v3263, %v2944
        %v3272 = vsel %vm1462, %v3264, %v2946
        %v3273 = vsel %vm1462, %v3265, %v2948
        %v3274 = vsel %vm1462, %v3266, %v2950
        %v3275 = vsel %vm1462, %v3267, %v2952
        %v3276 = vsel %vm1462, %v3268, %v2954
        %v3277 = vsel %vm1462, %v3269, %v2956
        %v3278 = vsel %vm1462, %v3270, %v2958
        %v3279 = vsel %vm1471, %v3271, %v2976
        %v3280 = vsel %vm1471, %v3272, %v2978
        %v3281 = vsel %vm1471, %v3273, %v2980
        %v3282 = vsel %vm1471, %v3274, %v2982
        %v3283 = vsel %vm1471, %v3275, %v2984
        %v3284 = vsel %vm1471, %v3276, %v2986
        %v3285 = vsel %vm1471, %v3277, %v2988
        %v3286 = vsel %vm1471, %v3278, %v2990
        %v3287 = vsel %vm1480, %v3279, %v3008
        %v3288 = vsel %vm1480, %v3280, %v3010
        %v3289 = vsel %vm1480, %v3281, %v3012
        %v3290 = vsel %vm1480, %v3282, %v3014
        %v3291 = vsel %vm1480, %v3283, %v3016
        %v3292 = vsel %vm1480, %v3284, %v3018
        %v3293 = vsel %vm1480, %v3285, %v3020
        %v3294 = vsel %vm1480, %v3286, %v3022
        %v3295 = vsel %vm1489, %v3287, %v3040
        %v3296 = vsel %vm1489, %v3288, %v3042
        %v3297 = vsel %vm1489, %v3289, %v3044
        %v3298 = vsel %vm1489, %v3290, %v3046
        %v3299 = vsel %vm1489, %v3291, %v3048
        %v3300 = vsel %vm1489, %v3292, %v3050
        %v3301 = vsel %vm1489, %v3293, %v3052
        %v3302 = vsel %vm1489, %v3294, %v3054
        %v3303 = vsel %vm1498, %v3295, %v3072
        %v3304 = vsel %vm1498, %v3296, %v3074
        %v3305 = vsel %vm1498, %v3297, %v3076
        %v3306 = vsel %vm1498, %v3298, %v3078
        %v3307 = vsel %vm1498, %v3299, %v3080
        %v3308 = vsel %vm1498, %v3300, %v3082
        %v3309 = vsel %vm1498, %v3301, %v3084
        %v3310 = vsel %vm1498, %v3302, %v3086
        %v3311 = vsel %vm1507, %v3303, %v3104
        %v3312 = vsel %vm1507, %v3304, %v3106
        %v3313 = vsel %vm1507, %v3305, %v3108
        %v3314 = vsel %vm1507, %v3306, %v3110
        %v3315 = vsel %vm1507, %v3307, %v3112
        %v3316 = vsel %vm1507, %v3308, %v3114
        %v3317 = vsel %vm1507, %v3309, %v3116
        %v3318 = vsel %vm1507, %v3310, %v3118
        %v3319 = vsel %vm1516, %v3311, %v3136
        %v3320 = vsel %vm1516, %v3312, %v3138
        %v3321 = vsel %vm1516, %v3313, %v3140
        %v3322 = vsel %vm1516, %v3314, %v3142
        %v3323 = vsel %vm1516, %v3315, %v3144
        %v3324 = vsel %vm1516, %v3316, %v3146
        %v3325 = vsel %vm1516, %v3317, %v3148
        %v3326 = vsel %vm1516, %v3318, %v3150
        %v3327 = vsel %vm1525, %v3319, %v3168
        %v3328 = vsel %vm1525, %v3320, %v3170
        %v3329 = vsel %vm1525, %v3321, %v3172
        %v3330 = vsel %vm1525, %v3322, %v3174
        %v3331 = vsel %vm1525, %v3323, %v3176
        %v3332 = vsel %vm1525, %v3324, %v3178
        %v3333 = vsel %vm1525, %v3325, %v3180
        %v3334 = vsel %vm1525, %v3326, %v3182
        %v3335 = vsel %vm1534, %v3327, %v3200
        %v3336 = vsel %vm1534, %v3328, %v3202
        %v3337 = vsel %vm1534, %v3329, %v3204
        %v3338 = vsel %vm1534, %v3330, %v3206
        %v3339 = vsel %vm1534, %v3331, %v3208
        %v3340 = vsel %vm1534, %v3332, %v3210
        %v3341 = vsel %vm1534, %v3333, %v3212
        %v3342 = vsel %vm1534, %v3334, %v3214
        %3351 = vrot.lane.b32.xlu0 %v2135, 64
        %v3352 = vpop.permute.xlu0 %3351
        %3353 = vrot.lane.b32.xlu0 %v2136, 64
        %v3354 = vpop.permute.xlu0 %3353
        %3355 = vrot.lane.b32.xlu0 %v2137, 64
        %v3356 = vpop.permute.xlu0 %3355
        %3357 = vrot.lane.b32.xlu0 %v2138, 64
        %v3358 = vpop.permute.xlu0 %3357
        %3359 = vrot.lane.b32.xlu0 %v2139, 64
        %v3360 = vpop.permute.xlu0 %3359
        %3361 = vrot.lane.b32.xlu0 %v2140, 64
        %v3362 = vpop.permute.xlu0 %3361
        %3363 = vrot.lane.b32.xlu0 %v2141, 64
        %v3364 = vpop.permute.xlu0 %3363
        %3365 = vrot.lane.b32.xlu0 %v2142, 64
        %v3366 = vpop.permute.xlu0 %3365
        %3383 = vrot.lane.b32.xlu0 %v3335, 64
        %v3384 = vpop.permute.xlu0 %3383
        %3385 = vrot.lane.b32.xlu0 %v3336, 64
        %v3386 = vpop.permute.xlu0 %3385
        %3387 = vrot.lane.b32.xlu0 %v3337, 64
        %v3388 = vpop.permute.xlu0 %3387
        %3389 = vrot.lane.b32.xlu0 %v3338, 64
        %v3390 = vpop.permute.xlu0 %3389
        %3391 = vrot.lane.b32.xlu0 %v3339, 64
        %v3392 = vpop.permute.xlu0 %3391
        %3393 = vrot.lane.b32.xlu0 %v3340, 64
        %v3394 = vpop.permute.xlu0 %3393
        %3395 = vrot.lane.b32.xlu0 %v3341, 64
        %v3396 = vpop.permute.xlu0 %3395
        %3397 = vrot.lane.b32.xlu0 %v3342, 64
        %v3398 = vpop.permute.xlu0 %3397
        %vm3407 = vcmask 523264
        %v3408 = vsel %vm3407, %v1535, %v3352
        %v3409 = vsel %vm3407, %v1536, %v3354
        %v3410 = vsel %vm3407, %v1537, %v3356
        %v3411 = vsel %vm3407, %v1538, %v3358
        %v3412 = vsel %vm3407, %v1539, %v3360
        %v3413 = vsel %vm3407, %v1540, %v3362
        %v3414 = vsel %vm3407, %v1541, %v3364
        %v3415 = vsel %vm3407, %v1542, %v3366
        %v3416 = vsel %vm3407, %v2735, %v3384
        %v3417 = vsel %vm3407, %v2736, %v3386
        %v3418 = vsel %vm3407, %v2737, %v3388
        %v3419 = vsel %vm3407, %v2738, %v3390
        %v3420 = vsel %vm3407, %v2739, %v3392
        %v3421 = vsel %vm3407, %v2740, %v3394
        %v3422 = vsel %vm3407, %v2741, %v3396
        %v3423 = vsel %vm3407, %v2742, %v3398
        %v3424 = vpack.c.bf16 %v3409, %v3408
        %v3425 = vpack.c.bf16 %v3417, %v3416
        %v3426 = vpack.c.bf16 %v3411, %v3410
        %v3427 = vpack.c.bf16 %v3419, %v3418
        %v3428 = vpack.c.bf16 %v3413, %v3412
        %v3429 = vpack.c.bf16 %v3421, %v3420
        %v3430 = vpack.c.bf16 %v3415, %v3414
        %v3431 = vpack.c.bf16 %v3423, %v3422
        %v3432 = vld [vmem:[%s1] sm:$0xf]
        %v3433 = vld [vmem:[%s1 + $0x4] sm:$0xf]
        %v3434 = vld [vmem:[%s1 + $0x8] sm:$0xf]
        %v3435 = vld [vmem:[%s1 + $0xc] sm:$0xf]
        %v3436 = vld [vmem:[%s1 + $0x10] sm:$0xf]
        %v3437 = vld [vmem:[%s1 + $0x14] sm:$0xf]
        %v3438 = vld [vmem:[%s1 + $0x18] sm:$0xf]
        %v3439 = vld [vmem:[%s1 + $0x1c] sm:$0xf]
        %v3440 = vld [vmem:[%s1 + $0x20] sm:$0xf]
        %v3441 = vld [vmem:[%s1 + $0x24] sm:$0xf]
        %v3442 = vld [vmem:[%s1 + $0x28] sm:$0xf]
        %v3443 = vld [vmem:[%s1 + $0x2c] sm:$0xf]
        %v3444 = vld [vmem:[%s1 + $0x30] sm:$0xf]
        %v3445 = vld [vmem:[%s1 + $0x34] sm:$0xf]
        %v3446 = vld [vmem:[%s1 + $0x38] sm:$0xf]
        %v3447 = vld [vmem:[%s1 + $0x3c] sm:$0xf]
        %v3448 = vld [vmem:[%s1 + $0x40] sm:$0xf]
        %v3449 = vld [vmem:[%s1 + $0x44] sm:$0xf]
        %v3450 = vld [vmem:[%s1 + $0x48] sm:$0xf]
        %v3451 = vld [vmem:[%s1 + $0x4c] sm:$0xf]
        %v3452 = vld [vmem:[%s1 + $0x50] sm:$0xf]
        %v3453 = vld [vmem:[%s1 + $0x54] sm:$0xf]
        %v3454 = vld [vmem:[%s1 + $0x58] sm:$0xf]
        %v3455 = vld [vmem:[%s1 + $0x5c] sm:$0xf]
        %v3456 = vld [vmem:[%s1 + $0x60] sm:$0xf]
        %v3457 = vld [vmem:[%s1 + $0x64] sm:$0xf]
        %v3458 = vld [vmem:[%s1 + $0x68] sm:$0xf]
        %v3459 = vld [vmem:[%s1 + $0x6c] sm:$0xf]
        %v3460 = vld [vmem:[%s1 + $0x70] sm:$0xf]
        %v3461 = vld [vmem:[%s1 + $0x74] sm:$0xf]
        %v3462 = vld [vmem:[%s1 + $0x78] sm:$0xf]
        %v3463 = vld [vmem:[%s1 + $0x7c] sm:$0xf]
        %v3464 = vld [vmem:[%s2] sm:$0x1]
        %v3466 = vperm.slane %v3464, 0
        %v3500 = vunpack.c.l.b16 %v3432
        %v3501 = vunpack.c.l.b16 %v3433
        %v3502 = vunpack.c.l.b16 %v3434
        %v3503 = vunpack.c.l.b16 %v3435
        %v3504 = vunpack.c.l.b16 %v3436
        %v3505 = vunpack.c.l.b16 %v3437
        %v3506 = vunpack.c.l.b16 %v3438
        %v3507 = vunpack.c.l.b16 %v3439
        %v3508 = vunpack.c.l.b16 %v3440
        %v3509 = vunpack.c.l.b16 %v3441
        %v3510 = vunpack.c.l.b16 %v3442
        %v3511 = vunpack.c.l.b16 %v3443
        %v3512 = vunpack.c.l.b16 %v3444
        %v3513 = vunpack.c.l.b16 %v3445
        %v3514 = vunpack.c.l.b16 %v3446
        %v3515 = vunpack.c.l.b16 %v3447
        %v3516 = vunpack.c.l.b16 %v3448
        %v3517 = vunpack.c.l.b16 %v3449
        %v3518 = vunpack.c.l.b16 %v3450
        %v3519 = vunpack.c.l.b16 %v3451
        %v3520 = vunpack.c.l.b16 %v3452
        %v3521 = vunpack.c.l.b16 %v3453
        %v3522 = vunpack.c.l.b16 %v3454
        %v3523 = vunpack.c.l.b16 %v3455
        %v3524 = vunpack.c.l.b16 %v3456
        %v3525 = vunpack.c.l.b16 %v3457
        %v3526 = vunpack.c.l.b16 %v3458
        %v3527 = vunpack.c.l.b16 %v3459
        %v3528 = vunpack.c.l.b16 %v3460
        %v3529 = vunpack.c.l.b16 %v3461
        %v3530 = vunpack.c.l.b16 %v3462
        %v3531 = vunpack.c.l.b16 %v3463
        %v3532 = vpack.c.b16 %v3501, %v3500
        %v3533 = vpack.c.b16 %v3503, %v3502
        %v3534 = vpack.c.b16 %v3505, %v3504
        %v3535 = vpack.c.b16 %v3507, %v3506
        %v3536 = vpack.c.b16 %v3509, %v3508
        %v3537 = vpack.c.b16 %v3511, %v3510
        %v3538 = vpack.c.b16 %v3513, %v3512
        %v3539 = vpack.c.b16 %v3515, %v3514
        %v3540 = vpack.c.b16 %v3517, %v3516
        %v3541 = vpack.c.b16 %v3519, %v3518
        %v3542 = vpack.c.b16 %v3521, %v3520
        %v3543 = vpack.c.b16 %v3523, %v3522
        %v3544 = vpack.c.b16 %v3525, %v3524
        %v3545 = vpack.c.b16 %v3527, %v3526
        %v3546 = vpack.c.b16 %v3529, %v3528
        %v3547 = vpack.c.b16 %v3531, %v3530
        %3564 = vmatpush.bf16.msra.mxu0 %v3539
        %3565 = vmatpush.bf16.msra.mxu0 %v3538
        %3566 = vmatpush.bf16.msra.mxu0 %v3537
        %3567 = vmatpush.bf16.msra.mxu0 %v3536
        %3568 = vmatpush.bf16.msra.mxu0 %v3535
        %3569 = vmatpush.bf16.msra.mxu0 %v3534
        %3570 = vmatpush.bf16.msra.mxu0 %v3533
        %3571 = vmatpush.bf16.msra.mxu0 %v3532
        %3572 = vmatmul.bf16.gmra.mxu0 %v3424
        %v3573 = vpop.f32.mrf.mxu0
        %v3574 = vadd.f32 %v3466, %v3573
        %v3575 = vpop.f32.mrf.mxu0
        %v3576 = vadd.f32 %v3466, %v3575
        %3577 = vmatmul.bf16.gmra.mxu0 %v3426
        %v3578 = vpop.f32.mrf.mxu0
        %v3579 = vadd.f32 %v3466, %v3578
        %v3580 = vpop.f32.mrf.mxu0
        %v3581 = vadd.f32 %v3466, %v3580
        %3582 = vmatmul.bf16.gmra.mxu0 %v3428
        %v3583 = vpop.f32.mrf.mxu0
        %v3584 = vadd.f32 %v3466, %v3583
        %v3585 = vpop.f32.mrf.mxu0
        %v3586 = vadd.f32 %v3466, %v3585
        %3587 = vmatmul.bf16.gmra.mxu0 %v3430
        %v3588 = vpop.f32.mrf.mxu0
        %v3589 = vadd.f32 %v3466, %v3588
        %v3590 = vpop.f32.mrf.mxu0
        %v3591 = vadd.f32 %v3466, %v3590
        %3592 = vdwg.mxu0
        %3593 = vmatpush.bf16.msra.mxu0 %v3547
        %3594 = vmatpush.bf16.msra.mxu0 %v3546
        %3595 = vmatpush.bf16.msra.mxu0 %v3545
        %3596 = vmatpush.bf16.msra.mxu0 %v3544
        %3597 = vmatpush.bf16.msra.mxu0 %v3543
        %3598 = vmatpush.bf16.msra.mxu0 %v3542
        %3599 = vmatpush.bf16.msra.mxu0 %v3541
        %3600 = vmatpush.bf16.msra.mxu0 %v3540
        %3601 = vmatmul.bf16.gmra.mxu0 %v3425
        %v3602 = vpop.f32.mrf.mxu0
        %v3603 = vadd.f32 %v3574, %v3602
        %v3604 = vpop.f32.mrf.mxu0
        %v3605 = vadd.f32 %v3576, %v3604
        %3606 = vmatmul.bf16.gmra.mxu0 %v3427
        %v3607 = vpop.f32.mrf.mxu0
        %v3608 = vadd.f32 %v3579, %v3607
        %v3609 = vpop.f32.mrf.mxu0
        %v3610 = vadd.f32 %v3581, %v3609
        %3611 = vmatmul.bf16.gmra.mxu0 %v3429
        %v3612 = vpop.f32.mrf.mxu0
        %v3613 = vadd.f32 %v3584, %v3612
        %v3614 = vpop.f32.mrf.mxu0
        %v3615 = vadd.f32 %v3586, %v3614
        %3616 = vmatmul.bf16.gmra.mxu0 %v3431
        %v3617 = vpop.f32.mrf.mxu0
        %v3618 = vadd.f32 %v3589, %v3617
        %v3619 = vpop.f32.mrf.mxu0
        %v3620 = vadd.f32 %v3591, %v3619
        %3621 = vdwg.mxu0
        %v3622 = vmax.f32 %v3603, 0.0
        %v3623 = vmax.f32 %v3605, 0.0
        %v3624 = vmax.f32 %v3608, 0.0
        %v3625 = vmax.f32 %v3610, 0.0
        %v3626 = vmax.f32 %v3613, 0.0
        %v3627 = vmax.f32 %v3615, 0.0
        %v3628 = vmax.f32 %v3618, 0.0
        %v3629 = vmax.f32 %v3620, 0.0
        %v3631 = vrot.slane %v3622, 1
        %v3633 = vrot.slane %v3622, 2
        %v3636 = vrot.slane %v3624, 5
        %v3638 = vrot.slane %v3624, 6
        %v3640 = vrot.slane %v3624, 7
        %v3643 = vrot.slane %v3626, 2
        %v3645 = vrot.slane %v3626, 3
        %v3647 = vrot.slane %v3626, 4
        %vm3649 = vcmask 1040384
        %v3650 = vsel %vm3649, %v3622, %v3631
        %vm3651 = vcmask 1041408
        %v3652 = vsel %vm3651, %v3650, %v3633
        %vm3653 = vcmask 1042432
        %v3654 = vsel %vm3653, %v3652, %v3636
        %vm3655 = vcmask 1043456
        %v3656 = vsel %vm3655, %v3654, %v3638
        %vm3657 = vcmask 1044480
        %v3658 = vsel %vm3657, %v3656, %v3640
        %vm3659 = vcmask 1045504
        %v3660 = vsel %vm3659, %v3658, %v3643
        %vm3661 = vcmask 1046528
        %v3662 = vsel %vm3661, %v3660, %v3645
        %v3663 = vrot.slane %v3622, 3
        %v3665 = vrot.slane %v3626, 5
        %v3666 = vsel %vm3649, %v3631, %v3633
        %v3667 = vsel %vm3651, %v3666, %v3663
        %v3668 = vsel %vm3653, %v3667, %v3638
        %v3669 = vsel %vm3655, %v3668, %v3640
        %v3670 = vsel %vm3657, %v3669, %v3624
        %v3671 = vsel %vm3659, %v3670, %v3645
        %v3672 = vsel %vm3661, %v3671, %v3647
        %v3673 = vrot.slane %v3622, 4
        %v3675 = vrot.slane %v3624, 1
        %v3678 = vrot.slane %v3626, 6
        %v3679 = vsel %vm3649, %v3633, %v3663
        %v3680 = vsel %vm3651, %v3679, %v3673
        %v3681 = vsel %vm3653, %v3680, %v3640
        %v3682 = vsel %vm3655, %v3681, %v3624
        %v3683 = vsel %vm3657, %v3682, %v3675
        %v3684 = vsel %vm3659, %v3683, %v3647
        %v3685 = vsel %vm3661, %v3684, %v3665
        %v3686 = vrot.slane %v3622, 5
        %v3688 = vrot.slane %v3624, 2
        %v3691 = vrot.slane %v3626, 7
        %v3692 = vsel %vm3649, %v3663, %v3673
        %v3693 = vsel %vm3651, %v3692, %v3686
        %v3694 = vsel %vm3653, %v3693, %v3624
        %v3695 = vsel %vm3655, %v3694, %v3675
        %v3696 = vsel %vm3657, %v3695, %v3688
        %v3697 = vsel %vm3659, %v3696, %v3665
        %v3698 = vsel %vm3661, %v3697, %v3678
        %v3700 = vrot.slane %v3623, 1
        %v3702 = vrot.slane %v3623, 2
        %v3705 = vrot.slane %v3625, 5
        %v3707 = vrot.slane %v3625, 6
        %v3709 = vrot.slane %v3625, 7
        %v3712 = vrot.slane %v3627, 2
        %v3714 = vrot.slane %v3627, 3
        %v3716 = vrot.slane %v3627, 4
        %v3718 = vsel %vm3649, %v3623, %v3700
        %v3719 = vsel %vm3651, %v3718, %v3702
        %v3720 = vsel %vm3653, %v3719, %v3705
        %v3721 = vsel %vm3655, %v3720, %v3707
        %v3722 = vsel %vm3657, %v3721, %v3709
        %v3723 = vsel %vm3659, %v3722, %v3712
        %v3724 = vsel %vm3661, %v3723, %v3714
        %v3725 = vrot.slane %v3623, 3
        %v3727 = vrot.slane %v3627, 5
        %v3728 = vsel %vm3649, %v3700, %v3702
        %v3729 = vsel %vm3651, %v3728, %v3725
        %v3730 = vsel %vm3653, %v3729, %v3707
        %v3731 = vsel %vm3655, %v3730, %v3709
        %v3732 = vsel %vm3657, %v3731, %v3625
        %v3733 = vsel %vm3659, %v3732, %v3714
        %v3734 = vsel %vm3661, %v3733, %v3716
        %v3735 = vrot.slane %v3623, 4
        %v3737 = vrot.slane %v3625, 1
        %v3740 = vrot.slane %v3627, 6
        %v3741 = vsel %vm3649, %v3702, %v3725
        %v3742 = vsel %vm3651, %v3741, %v3735
        %v3743 = vsel %vm3653, %v3742, %v3709
        %v3744 = vsel %vm3655, %v3743, %v3625
        %v3745 = vsel %vm3657, %v3744, %v3737
        %v3746 = vsel %vm3659, %v3745, %v3716
        %v3747 = vsel %vm3661, %v3746, %v3727
        %v3748 = vrot.slane %v3623, 5
        %v3750 = vrot.slane %v3625, 2
        %v3753 = vrot.slane %v3627, 7
        %v3754 = vsel %vm3649, %v3725, %v3735
        %v3755 = vsel %vm3651, %v3754, %v3748
        %v3756 = vsel %vm3653, %v3755, %v3625
        %v3757 = vsel %vm3655, %v3756, %v3737
        %v3758 = vsel %vm3657, %v3757, %v3750
        %v3759 = vsel %vm3659, %v3758, %v3727
        %v3760 = vsel %vm3661, %v3759, %v3740
        %v3763 = vrot.slane %v3628, 2
        %v3765 = vrot.slane %v3628, 3
        %v3767 = vrot.slane %v3628, 4
        %v3769 = vsel %vm3649, %v3624, %v3675
        %v3770 = vsel %vm3651, %v3769, %v3688
        %v3771 = vsel %vm3653, %v3770, %v3665
        %v3772 = vsel %vm3655, %v3771, %v3678
        %v3773 = vsel %vm3657, %v3772, %v3691
        %v3774 = vsel %vm3659, %v3773, %v3763
        %v3775 = vsel %vm3661, %v3774, %v3765
        %v3776 = vrot.slane %v3624, 3
        %v3778 = vrot.slane %v3628, 5
        %v3779 = vsel %vm3649, %v3675, %v3688
        %v3780 = vsel %vm3651, %v3779, %v3776
        %v3781 = vsel %vm3653, %v3780, %v3678
        %v3782 = vsel %vm3655, %v3781, %v3691
        %v3783 = vsel %vm3657, %v3782, %v3626
        %v3784 = vsel %vm3659, %v3783, %v3765
        %v3785 = vsel %vm3661, %v3784, %v3767
        %v3786 = vrot.slane %v3624, 4
        %v3788 = vrot.slane %v3626, 1
        %v3791 = vrot.slane %v3628, 6
        %v3792 = vsel %vm3649, %v3688, %v3776
        %v3793 = vsel %vm3651, %v3792, %v3786
        %v3794 = vsel %vm3653, %v3793, %v3691
        %v3795 = vsel %vm3655, %v3794, %v3626
        %v3796 = vsel %vm3657, %v3795, %v3788
        %v3797 = vsel %vm3659, %v3796, %v3767
        %v3798 = vsel %vm3661, %v3797, %v3778
        %v3800 = vrot.slane %v3628, 7
        %v3801 = vsel %vm3649, %v3776, %v3786
        %v3802 = vsel %vm3651, %v3801, %v3636
        %v3803 = vsel %vm3653, %v3802, %v3626
        %v3804 = vsel %vm3655, %v3803, %v3788
        %v3805 = vsel %vm3657, %v3804, %v3643
        %v3806 = vsel %vm3659, %v3805, %v3778
        %v3807 = vsel %vm3661, %v3806, %v3791
        %v3810 = vrot.slane %v3629, 2
        %v3812 = vrot.slane %v3629, 3
        %v3814 = vrot.slane %v3629, 4
        %v3816 = vsel %vm3649, %v3625, %v3737
        %v3817 = vsel %vm3651, %v3816, %v3750
        %v3818 = vsel %vm3653, %v3817, %v3727
        %v3819 = vsel %vm3655, %v3818, %v3740
        %v3820 = vsel %vm3657, %v3819, %v3753
        %v3821 = vsel %vm3659, %v3820, %v3810
        %v3822 = vsel %vm3661, %v3821, %v3812
        %v3823 = vrot.slane %v3625, 3
        %v3825 = vrot.slane %v3629, 5
        %v3826 = vsel %vm3649, %v3737, %v3750
        %v3827 = vsel %vm3651, %v3826, %v3823
        %v3828 = vsel %vm3653, %v3827, %v3740
        %v3829 = vsel %vm3655, %v3828, %v3753
        %v3830 = vsel %vm3657, %v3829, %v3627
        %v3831 = vsel %vm3659, %v3830, %v3812
        %v3832 = vsel %vm3661, %v3831, %v3814
        %v3833 = vrot.slane %v3625, 4
        %v3835 = vrot.slane %v3627, 1
        %v3838 = vrot.slane %v3629, 6
        %v3839 = vsel %vm3649, %v3750, %v3823
        %v3840 = vsel %vm3651, %v3839, %v3833
        %v3841 = vsel %vm3653, %v3840, %v3753
        %v3842 = vsel %vm3655, %v3841, %v3627
        %v3843 = vsel %vm3657, %v3842, %v3835
        %v3844 = vsel %vm3659, %v3843, %v3814
        %v3845 = vsel %vm3661, %v3844, %v3825
        %v3847 = vrot.slane %v3629, 7
        %v3848 = vsel %vm3649, %v3823, %v3833
        %v3849 = vsel %vm3651, %v3848, %v3705
        %v3850 = vsel %vm3653, %v3849, %v3627
        %v3851 = vsel %vm3655, %v3850, %v3835
        %v3852 = vsel %vm3657, %v3851, %v3712
        %v3853 = vsel %vm3659, %v3852, %v3825
        %v3854 = vsel %vm3661, %v3853, %v3838
        %3856 = vrot.lane.b32.xlu0 %v3672, 32
        %v3857 = vpop.permute.xlu0 %3856
        %3858 = vrot.lane.b32.xlu0 %v3665, 32
        %v3859 = vpop.permute.xlu0 %3858
        %3863 = vrot.lane.b32.xlu0 %v3685, 64
        %v3864 = vpop.permute.xlu0 %3863
        %3865 = vrot.lane.b32.xlu0 %v3678, 64
        %v3866 = vpop.permute.xlu0 %3865
        %3870 = vrot.lane.b32.xlu0 %v3698, 96
        %v3871 = vpop.permute.xlu0 %3870
        %3872 = vrot.lane.b32.xlu0 %v3691, 96
        %v3873 = vpop.permute.xlu0 %3872
        %3877 = vrot.lane.b32.xlu0 %v3734, 32
        %v3878 = vpop.permute.xlu0 %3877
        %3879 = vrot.lane.b32.xlu0 %v3727, 32
        %v3880 = vpop.permute.xlu0 %3879
        %3884 = vrot.lane.b32.xlu0 %v3747, 64
        %v3885 = vpop.permute.xlu0 %3884
        %3886 = vrot.lane.b32.xlu0 %v3740, 64
        %v3887 = vpop.permute.xlu0 %3886
        %3891 = vrot.lane.b32.xlu0 %v3760, 96
        %v3892 = vpop.permute.xlu0 %3891
        %3893 = vrot.lane.b32.xlu0 %v3753, 96
        %v3894 = vpop.permute.xlu0 %3893
        %3898 = vrot.lane.b32.xlu0 %v3785, 32
        %v3899 = vpop.permute.xlu0 %3898
        %3900 = vrot.lane.b32.xlu0 %v3778, 32
        %v3901 = vpop.permute.xlu0 %3900
        %3905 = vrot.lane.b32.xlu0 %v3798, 64
        %v3906 = vpop.permute.xlu0 %3905
        %3907 = vrot.lane.b32.xlu0 %v3791, 64
        %v3908 = vpop.permute.xlu0 %3907
        %3912 = vrot.lane.b32.xlu0 %v3807, 96
        %v3913 = vpop.permute.xlu0 %3912
        %3914 = vrot.lane.b32.xlu0 %v3800, 96
        %v3915 = vpop.permute.xlu0 %3914
        %3919 = vrot.lane.b32.xlu0 %v3832, 32
        %v3920 = vpop.permute.xlu0 %3919
        %3921 = vrot.lane.b32.xlu0 %v3825, 32
        %v3922 = vpop.permute.xlu0 %3921
        %3926 = vrot.lane.b32.xlu0 %v3845, 64
        %v3927 = vpop.permute.xlu0 %3926
        %3928 = vrot.lane.b32.xlu0 %v3838, 64
        %v3929 = vpop.permute.xlu0 %3928
        %3933 = vrot.lane.b32.xlu0 %v3854, 96
        %v3934 = vpop.permute.xlu0 %3933
        %3935 = vrot.lane.b32.xlu0 %v3847, 96
        %v3936 = vpop.permute.xlu0 %3935
        %v3939 = vsel %vm1471, %v3662, %v3857
        %v3940 = vsel %vm1471, %v3647, %v3859
        %v3941 = vsel %vm3407, %v3939, %v3864
        %v3942 = vsel %vm3407, %v3940, %v3866
        %vm3943 = vcmask 785408
        %v3944 = vsel %vm3943, %v3941, %v3871
        %v3945 = vsel %vm3943, %v3942, %v3873
        %v3946 = vsel %vm1471, %v3724, %v3878
        %v3947 = vsel %vm1471, %v3716, %v3880
        %v3948 = vsel %vm3407, %v3946, %v3885
        %v3949 = vsel %vm3407, %v3947, %v3887
        %v3950 = vsel %vm3943, %v3948, %v3892
        %v3951 = vsel %vm3943, %v3949, %v3894
        %v3952 = vsel %vm1471, %v3775, %v3899
        %v3953 = vsel %vm1471, %v3767, %v3901
        %v3954 = vsel %vm3407, %v3952, %v3906
        %v3955 = vsel %vm3407, %v3953, %v3908
        %v3956 = vsel %vm3943, %v3954, %v3913
        %v3957 = vsel %vm3943, %v3955, %v3915
        %v3958 = vsel %vm1471, %v3822, %v3920
        %v3959 = vsel %vm1471, %v3814, %v3922
        %v3960 = vsel %vm3407, %v3958, %v3927
        %v3961 = vsel %vm3407, %v3959, %v3929
        %v3962 = vsel %vm3943, %v3960, %v3934
        %v3963 = vsel %vm3943, %v3961, %v3936
        %v3964 = vpack.c.bf16 %v3945, %v3944
        %v3965 = vpack.c.bf16 %v3951, %v3950
        %v3966 = vpack.c.bf16 %v3957, %v3956
        %v3967 = vpack.c.bf16 %v3963, %v3962
        %v3968 = vld [vmem:[%s3] sm:$0xf]
        %v3969 = vld [vmem:[%s3 + $0x4] sm:$0xf]
        %v3970 = vld [vmem:[%s3 + $0x8] sm:$0xf]
        %v3971 = vld [vmem:[%s3 + $0xc] sm:$0xf]
        %v3972 = vld [vmem:[%s3 + $0x10] sm:$0xf]
        %v3973 = vld [vmem:[%s3 + $0x14] sm:$0xf]
        %v3974 = vld [vmem:[%s3 + $0x18] sm:$0xf]
        %v3975 = vld [vmem:[%s3 + $0x1c] sm:$0xf]
        %v3976 = vld [vmem:[%s3 + $0x20] sm:$0xf]
        %v3977 = vld [vmem:[%s3 + $0x24] sm:$0xf]
        %v3978 = vld [vmem:[%s3 + $0x28] sm:$0xf]
        %v3979 = vld [vmem:[%s3 + $0x2c] sm:$0xf]
        %v3980 = vld [vmem:[%s3 + $0x30] sm:$0xf]
        %v3981 = vld [vmem:[%s3 + $0x34] sm:$0xf]
        %v3982 = vld [vmem:[%s3 + $0x38] sm:$0xf]
        %v3983 = vld [vmem:[%s3 + $0x3c] sm:$0xf]
        %v3984 = vld [vmem:[%s3 + $0x40] sm:$0xf]
        %v3985 = vld [vmem:[%s3 + $0x44] sm:$0xf]
        %v3986 = vld [vmem:[%s3 + $0x48] sm:$0xf]
        %v3987 = vld [vmem:[%s3 + $0x4c] sm:$0xf]
        %v3988 = vld [vmem:[%s3 + $0x50] sm:$0xf]
        %v3989 = vld [vmem:[%s3 + $0x54] sm:$0xf]
        %v3990 = vld [vmem:[%s3 + $0x58] sm:$0xf]
        %v3991 = vld [vmem:[%s3 + $0x5c] sm:$0xf]
        %v3992 = vld [vmem:[%s3 + $0x60] sm:$0xf]
        %v3993 = vld [vmem:[%s3 + $0x64] sm:$0xf]
        %v3994 = vld [vmem:[%s3 + $0x68] sm:$0xf]
        %v3995 = vld [vmem:[%s3 + $0x6c] sm:$0xf]
        %v3996 = vld [vmem:[%s3 + $0x70] sm:$0xf]
        %v3997 = vld [vmem:[%s3 + $0x74] sm:$0xf]
        %v3998 = vld [vmem:[%s3 + $0x78] sm:$0xf]
        %v3999 = vld [vmem:[%s3 + $0x7c] sm:$0xf]
        %v4000 = vld [vmem:[%s3 + $0x80] sm:$0xf]
        %v4001 = vld [vmem:[%s3 + $0x84] sm:$0xf]
        %v4002 = vld [vmem:[%s3 + $0x88] sm:$0xf]
        %v4003 = vld [vmem:[%s3 + $0x8c] sm:$0xf]
        %v4004 = vld [vmem:[%s3 + $0x90] sm:$0xf]
        %v4005 = vld [vmem:[%s3 + $0x94] sm:$0xf]
        %v4006 = vld [vmem:[%s3 + $0x98] sm:$0xf]
        %v4007 = vld [vmem:[%s3 + $0x9c] sm:$0xf]
        %v4008 = vld [vmem:[%s3 + $0xa0] sm:$0xf]
        %v4009 = vld [vmem:[%s3 + $0xa4] sm:$0xf]
        %v4010 = vld [vmem:[%s3 + $0xa8] sm:$0xf]
        %v4011 = vld [vmem:[%s3 + $0xac] sm:$0xf]
        %v4012 = vld [vmem:[%s3 + $0xb0] sm:$0xf]
        %v4013 = vld [vmem:[%s3 + $0xb4] sm:$0xf]
        %v4014 = vld [vmem:[%s3 + $0xb8] sm:$0xf]
        %v4015 = vld [vmem:[%s3 + $0xbc] sm:$0xf]
        %v4016 = vld [vmem:[%s3 + $0xc0] sm:$0xf]
        %v4017 = vld [vmem:[%s3 + $0xc4] sm:$0xf]
        %v4018 = vld [vmem:[%s3 + $0xc8] sm:$0xf]
        %v4019 = vld [vmem:[%s3 + $0xcc] sm:$0xf]
        %v4020 = vld [vmem:[%s3 + $0xd0] sm:$0xf]
        %v4021 = vld [vmem:[%s3 + $0xd4] sm:$0xf]
        %v4022 = vld [vmem:[%s3 + $0xd8] sm:$0xf]
        %v4023 = vld [vmem:[%s3 + $0xdc] sm:$0xf]
        %v4024 = vld [vmem:[%s3 + $0xe0] sm:$0xf]
        %v4025 = vld [vmem:[%s3 + $0xe4] sm:$0xf]
        %v4026 = vld [vmem:[%s3 + $0xe8] sm:$0xf]
        %v4027 = vld [vmem:[%s3 + $0xec] sm:$0xf]
        %v4028 = vld [vmem:[%s3 + $0xf0] sm:$0xf]
        %v4029 = vld [vmem:[%s3 + $0xf4] sm:$0xf]
        %v4030 = vld [vmem:[%s3 + $0xf8] sm:$0xf]
        %v4031 = vld [vmem:[%s3 + $0xfc] sm:$0xf]
        %v4032 = vld [vmem:[%s4] sm:$0x1]
        %v4034 = vperm.slane %v4032, 0
        %v4100 = vunpack.c.l.b16 %v3968
        %v4101 = vunpack.c.l.b16 %v3969
        %v4102 = vunpack.c.l.b16 %v3970
        %v4103 = vunpack.c.l.b16 %v3971
        %v4104 = vunpack.c.l.b16 %v3972
        %v4105 = vunpack.c.l.b16 %v3973
        %v4106 = vunpack.c.l.b16 %v3974
        %v4107 = vunpack.c.l.b16 %v3975
        %v4108 = vunpack.c.l.b16 %v3976
        %v4109 = vunpack.c.l.b16 %v3977
        %v4110 = vunpack.c.l.b16 %v3978
        %v4111 = vunpack.c.l.b16 %v3979
        %v4112 = vunpack.c.l.b16 %v3980
        %v4113 = vunpack.c.l.b16 %v3981
        %v4114 = vunpack.c.l.b16 %v3982
        %v4115 = vunpack.c.l.b16 %v3983
        %v4116 = vunpack.c.l.b16 %v3984
        %v4117 = vunpack.c.l.b16 %v3985
        %v4118 = vunpack.c.l.b16 %v3986
        %v4119 = vunpack.c.l.b16 %v3987
        %v4120 = vunpack.c.l.b16 %v3988
        %v4121 = vunpack.c.l.b16 %v3989
        %v4122 = vunpack.c.l.b16 %v3990
        %v4123 = vunpack.c.l.b16 %v3991
        %v4124 = vunpack.c.l.b16 %v3992
        %v4125 = vunpack.c.l.b16 %v3993
        %v4126 = vunpack.c.l.b16 %v3994
        %v4127 = vunpack.c.l.b16 %v3995
        %v4128 = vunpack.c.l.b16 %v3996
        %v4129 = vunpack.c.l.b16 %v3997
        %v4130 = vunpack.c.l.b16 %v3998
        %v4131 = vunpack.c.l.b16 %v3999
        %v4132 = vunpack.c.l.b16 %v4000
        %v4133 = vunpack.c.l.b16 %v4001
        %v4134 = vunpack.c.l.b16 %v4002
        %v4135 = vunpack.c.l.b16 %v4003
        %v4136 = vunpack.c.l.b16 %v4004
        %v4137 = vunpack.c.l.b16 %v4005
        %v4138 = vunpack.c.l.b16 %v4006
        %v4139 = vunpack.c.l.b16 %v4007
        %v4140 = vunpack.c.l.b16 %v4008
        %v4141 = vunpack.c.l.b16 %v4009
        %v4142 = vunpack.c.l.b16 %v4010
        %v4143 = vunpack.c.l.b16 %v4011
        %v4144 = vunpack.c.l.b16 %v4012
        %v4145 = vunpack.c.l.b16 %v4013
        %v4146 = vunpack.c.l.b16 %v4014
        %v4147 = vunpack.c.l.b16 %v4015
        %v4148 = vunpack.c.l.b16 %v4016
        %v4149 = vunpack.c.l.b16 %v4017
        %v4150 = vunpack.c.l.b16 %v4018
        %v4151 = vunpack.c.l.b16 %v4019
        %v4152 = vunpack.c.l.b16 %v4020
        %v4153 = vunpack.c.l.b16 %v4021
        %v4154 = vunpack.c.l.b16 %v4022
        %v4155 = vunpack.c.l.b16 %v4023
        %v4156 = vunpack.c.l.b16 %v4024
        %v4157 = vunpack.c.l.b16 %v4025
        %v4158 = vunpack.c.l.b16 %v4026
        %v4159 = vunpack.c.l.b16 %v4027
        %v4160 = vunpack.c.l.b16 %v4028
        %v4161 = vunpack.c.l.b16 %v4029
        %v4162 = vunpack.c.l.b16 %v4030
        %v4163 = vunpack.c.l.b16 %v4031
        %v4164 = vpack.c.b16 %v4101, %v4100
        %v4165 = vpack.c.b16 %v4103, %v4102
        %v4166 = vpack.c.b16 %v4105, %v4104
        %v4167 = vpack.c.b16 %v4107, %v4106
        %v4168 = vpack.c.b16 %v4109, %v4108
        %v4169 = vpack.c.b16 %v4111, %v4110
        %v4170 = vpack.c.b16 %v4113, %v4112
        %v4171 = vpack.c.b16 %v4115, %v4114
        %v4172 = vpack.c.b16 %v4117, %v4116
        %v4173 = vpack.c.b16 %v4119, %v4118
        %v4174 = vpack.c.b16 %v4121, %v4120
        %v4175 = vpack.c.b16 %v4123, %v4122
        %v4176 = vpack.c.b16 %v4125, %v4124
        %v4177 = vpack.c.b16 %v4127, %v4126
        %v4178 = vpack.c.b16 %v4129, %v4128
        %v4179 = vpack.c.b16 %v4131, %v4130
        %v4180 = vpack.c.b16 %v4133, %v4132
        %v4181 = vpack.c.b16 %v4135, %v4134
        %v4182 = vpack.c.b16 %v4137, %v4136
        %v4183 = vpack.c.b16 %v4139, %v4138
        %v4184 = vpack.c.b16 %v4141, %v4140
        %v4185 = vpack.c.b16 %v4143, %v4142
        %v4186 = vpack.c.b16 %v4145, %v4144
        %v4187 = vpack.c.b16 %v4147, %v4146
        %v4188 = vpack.c.b16 %v4149, %v4148
        %v4189 = vpack.c.b16 %v4151, %v4150
        %v4190 = vpack.c.b16 %v4153, %v4152
        %v4191 = vpack.c.b16 %v4155, %v4154
        %v4192 = vpack.c.b16 %v4157, %v4156
        %v4193 = vpack.c.b16 %v4159, %v4158
        %v4194 = vpack.c.b16 %v4161, %v4160
        %v4195 = vpack.c.b16 %v4163, %v4162
        %4228 = vmatpush.bf16.msra.mxu0 %v4171
        %4229 = vmatpush.bf16.msra.mxu0 %v4170
        %4230 = vmatpush.bf16.msra.mxu0 %v4169
        %4231 = vmatpush.bf16.msra.mxu0 %v4168
        %4232 = vmatpush.bf16.msra.mxu0 %v4167
        %4233 = vmatpush.bf16.msra.mxu0 %v4166
        %4234 = vmatpush.bf16.msra.mxu0 %v4165
        %4235 = vmatpush.bf16.msra.mxu0 %v4164
        %4236 = vmatmul.bf16.gmra.mxu0 %v3964
        %v4237 = vpop.f32.mrf.mxu0
        %v4238 = vadd.f32 %v4034, %v4237
        %v4239 = vpop.f32.mrf.mxu0
        %v4240 = vadd.f32 %v4034, %v4239
        %4241 = vdwg.mxu0
        %4242 = vmatpush.bf16.msra.mxu0 %v4179
        %4243 = vmatpush.bf16.msra.mxu0 %v4178
        %4244 = vmatpush.bf16.msra.mxu0 %v4177
        %4245 = vmatpush.bf16.msra.mxu0 %v4176
        %4246 = vmatpush.bf16.msra.mxu0 %v4175
        %4247 = vmatpush.bf16.msra.mxu0 %v4174
        %4248 = vmatpush.bf16.msra.mxu0 %v4173
        %4249 = vmatpush.bf16.msra.mxu0 %v4172
        %4250 = vmatmul.bf16.gmra.mxu0 %v3965
        %v4251 = vpop.f32.mrf.mxu0
        %v4252 = vadd.f32 %v4238, %v4251
        %v4253 = vpop.f32.mrf.mxu0
        %v4254 = vadd.f32 %v4240, %v4253
        %4255 = vdwg.mxu0
        %4256 = vmatpush.bf16.msra.mxu0 %v4187
        %4257 = vmatpush.bf16.msra.mxu0 %v4186
        %4258 = vmatpush.bf16.msra.mxu0 %v4185
        %4259 = vmatpush.bf16.msra.mxu0 %v4184
        %4260 = vmatpush.bf16.msra.mxu0 %v4183
        %4261 = vmatpush.bf16.msra.mxu0 %v4182
        %4262 = vmatpush.bf16.msra.mxu0 %v4181
        %4263 = vmatpush.bf16.msra.mxu0 %v4180
        %4264 = vmatmul.bf16.gmra.mxu0 %v3966
        %v4265 = vpop.f32.mrf.mxu0
        %v4266 = vadd.f32 %v4252, %v4265
        %v4267 = vpop.f32.mrf.mxu0
        %v4268 = vadd.f32 %v4254, %v4267
        %4269 = vdwg.mxu0
        %4270 = vmatpush.bf16.msra.mxu0 %v4195
        %4271 = vmatpush.bf16.msra.mxu0 %v4194
        %4272 = vmatpush.bf16.msra.mxu0 %v4193
        %4273 = vmatpush.bf16.msra.mxu0 %v4192
        %4274 = vmatpush.bf16.msra.mxu0 %v4191
        %4275 = vmatpush.bf16.msra.mxu0 %v4190
        %4276 = vmatpush.bf16.msra.mxu0 %v4189
        %4277 = vmatpush.bf16.msra.mxu0 %v4188
        %4278 = vmatmul.bf16.gmra.mxu0 %v3967
        %v4279 = vpop.f32.mrf.mxu0
        %v4280 = vadd.f32 %v4266, %v4279
        %v4281 = vpop.f32.mrf.mxu0
        %v4282 = vadd.f32 %v4268, %v4281
        %4283 = vdwg.mxu0
        %v4284 = vmax.f32 %v4280, 0.0
        %v4285 = vmax.f32 %v4282, 0.0
        %v4287 = vrot.slane %v4284, 1
        %4288 = vrot.lane.b32.xlu0 %v4287, 64
        %v4289 = vpop.permute.xlu0 %4288
        %v4291 = vrot.slane %v4284, 2
        %v4293 = vrot.slane %v4284, 3
        %4294 = vrot.lane.b32.xlu0 %v4293, 64
        %v4295 = vpop.permute.xlu0 %4294
        %v4297 = vrot.slane %v4284, 4
        %v4299 = vrot.slane %v4284, 5
        %4300 = vrot.lane.b32.xlu0 %v4299, 64
        %v4301 = vpop.permute.xlu0 %4300
        %v4303 = vrot.slane %v4284, 6
        %v4305 = vrot.slane %v4284, 7
        %4306 = vrot.lane.b32.xlu0 %v4305, 64
        %v4307 = vpop.permute.xlu0 %4306
        %v4309 = vsel %vm3407, %v4284, %v4289
        %v4310 = vsel %vm3407, %v4291, %v4295
        %v4311 = vsel %vm3407, %v4297, %v4301
        %v4312 = vsel %vm3407, %v4303, %v4307
        %v4313 = vpack.c.bf16 %v4309, %v4309
        %v4314 = vpack.c.bf16 %v4310, %v4310
        %v4315 = vpack.c.bf16 %v4311, %v4311
        %v4316 = vpack.c.bf16 %v4312, %v4312
        %v4317 = vpack.c.bf16 %v4285, %v4285
        %v4318 = vld [vmem:[%s5] sm:$0xf]
        %v4319 = vld [vmem:[%s5 + $0x4] sm:$0xf]
        %v4320 = vld [vmem:[%s5 + $0x8] sm:$0xf]
        %v4321 = vld [vmem:[%s5 + $0xc] sm:$0xf]
        %v4322 = vld [vmem:[%s5 + $0x10] sm:$0xf]
        %v4323 = vld [vmem:[%s5 + $0x14] sm:$0xf]
        %v4324 = vld [vmem:[%s5 + $0x18] sm:$0xf]
        %v4325 = vld [vmem:[%s5 + $0x1c] sm:$0xf]
        %v4326 = vld [vmem:[%s5 + $0x20] sm:$0xf]
        %v4327 = vld [vmem:[%s5 + $0x24] sm:$0xf]
        %v4328 = vld [vmem:[%s5 + $0x28] sm:$0xf]
        %v4329 = vld [vmem:[%s5 + $0x2c] sm:$0xf]
        %v4330 = vld [vmem:[%s5 + $0x30] sm:$0xf]
        %v4331 = vld [vmem:[%s5 + $0x34] sm:$0xf]
        %v4332 = vld [vmem:[%s5 + $0x38] sm:$0xf]
        %v4333 = vld [vmem:[%s5 + $0x3c] sm:$0xf]
        %v4334 = vld [vmem:[%s5 + $0x40] sm:$0xf]
        %v4335 = vld [vmem:[%s5 + $0x44] sm:$0xf]
        %v4336 = vld [vmem:[%s5 + $0x48] sm:$0xf]
        %v4337 = vld [vmem:[%s5 + $0x4c] sm:$0xf]
        %v4338 = vld [vmem:[%s5 + $0x50] sm:$0xf]
        %v4339 = vld [vmem:[%s5 + $0x54] sm:$0xf]
        %v4340 = vld [vmem:[%s5 + $0x58] sm:$0xf]
        %v4341 = vld [vmem:[%s5 + $0x5c] sm:$0xf]
        %v4342 = vld [vmem:[%s5 + $0x60] sm:$0xf]
        %v4343 = vld [vmem:[%s5 + $0x64] sm:$0xf]
        %v4344 = vld [vmem:[%s5 + $0x68] sm:$0xf]
        %v4345 = vld [vmem:[%s5 + $0x6c] sm:$0xf]
        %v4346 = vld [vmem:[%s5 + $0x70] sm:$0xf]
        %v4347 = vld [vmem:[%s5 + $0x74] sm:$0xf]
        %v4348 = vld [vmem:[%s5 + $0x78] sm:$0xf]
        %v4349 = vld [vmem:[%s5 + $0x7c] sm:$0xf]
        %v4350 = vld [vmem:[%s5 + $0x80] sm:$0xf]
        %v4351 = vld [vmem:[%s5 + $0x84] sm:$0xf]
        %v4352 = vld [vmem:[%s5 + $0x88] sm:$0xf]
        %v4353 = vld [vmem:[%s5 + $0x8c] sm:$0xf]
        %v4354 = vld [vmem:[%s5 + $0x90] sm:$0xf]
        %v4355 = vld [vmem:[%s5 + $0x94] sm:$0xf]
        %v4356 = vld [vmem:[%s5 + $0x98] sm:$0xf]
        %v4357 = vld [vmem:[%s5 + $0x9c] sm:$0xf]
        %v4358 = vld [vmem:[%s5 + $0xa0] sm:$0xf]
        %v4359 = vld [vmem:[%s5 + $0xa4] sm:$0xf]
        %v4360 = vld [vmem:[%s5 + $0xa8] sm:$0xf]
        %v4361 = vld [vmem:[%s5 + $0xac] sm:$0xf]
        %v4362 = vld [vmem:[%s5 + $0xb0] sm:$0xf]
        %v4363 = vld [vmem:[%s5 + $0xb4] sm:$0xf]
        %v4364 = vld [vmem:[%s5 + $0xb8] sm:$0xf]
        %v4365 = vld [vmem:[%s5 + $0xbc] sm:$0xf]
        %v4366 = vld [vmem:[%s5 + $0xc0] sm:$0xf]
        %v4367 = vld [vmem:[%s5 + $0xc4] sm:$0xf]
        %v4368 = vld [vmem:[%s5 + $0xc8] sm:$0xf]
        %v4369 = vld [vmem:[%s5 + $0xcc] sm:$0xf]
        %v4370 = vld [vmem:[%s5 + $0xd0] sm:$0xf]
        %v4371 = vld [vmem:[%s5 + $0xd4] sm:$0xf]
        %v4372 = vld [vmem:[%s5 + $0xd8] sm:$0xf]
        %v4373 = vld [vmem:[%s5 + $0xdc] sm:$0xf]
        %v4374 = vld [vmem:[%s5 + $0xe0] sm:$0xf]
        %v4375 = vld [vmem:[%s5 + $0xe4] sm:$0xf]
        %v4376 = vld [vmem:[%s5 + $0xe8] sm:$0xf]
        %v4377 = vld [vmem:[%s5 + $0xec] sm:$0xf]
        %v4378 = vld [vmem:[%s5 + $0xf0] sm:$0xf]
        %v4379 = vld [vmem:[%s5 + $0xf4] sm:$0xf]
        %v4380 = vld [vmem:[%s5 + $0xf8] sm:$0xf]
        %v4381 = vld [vmem:[%s5 + $0xfc] sm:$0xf]
        %v4382 = vld [vmem:[%s5 + $0x100] sm:$0xf]
        %v4383 = vld [vmem:[%s5 + $0x104] sm:$0xf]
        %v4384 = vld [vmem:[%s5 + $0x108] sm:$0xf]
        %v4385 = vld [vmem:[%s5 + $0x10c] sm:$0xf]
        %v4386 = vld [vmem:[%s5 + $0x110] sm:$0xf]
        %v4387 = vld [vmem:[%s5 + $0x114] sm:$0xf]
        %v4388 = vld [vmem:[%s5 + $0x118] sm:$0xf]
        %v4389 = vld [vmem:[%s5 + $0x11c] sm:$0xf]
        %v4390 = vld [vmem:[%s6] sm:$0x1]
        %v4463 = vunpack.c.l.b16 %v4318
        %v4464 = vunpack.c.l.b16 %v4319
        %v4465 = vunpack.c.l.b16 %v4320
        %v4466 = vunpack.c.l.b16 %v4321
        %v4467 = vunpack.c.l.b16 %v4322
        %v4468 = vunpack.c.l.b16 %v4323
        %v4469 = vunpack.c.l.b16 %v4324
        %v4470 = vunpack.c.l.b16 %v4325
        %v4471 = vunpack.c.l.b16 %v4326
        %v4472 = vunpack.c.l.b16 %v4327
        %v4473 = vunpack.c.l.b16 %v4328
        %v4474 = vunpack.c.l.b16 %v4329
        %v4475 = vunpack.c.l.b16 %v4330
        %v4476 = vunpack.c.l.b16 %v4331
        %v4477 = vunpack.c.l.b16 %v4332
        %v4478 = vunpack.c.l.b16 %v4333
        %v4479 = vunpack.c.l.b16 %v4334
        %v4480 = vunpack.c.l.b16 %v4335
        %v4481 = vunpack.c.l.b16 %v4336
        %v4482 = vunpack.c.l.b16 %v4337
        %v4483 = vunpack.c.l.b16 %v4338
        %v4484 = vunpack.c.l.b16 %v4339
        %v4485 = vunpack.c.l.b16 %v4340
        %v4486 = vunpack.c.l.b16 %v4341
        %v4487 = vunpack.c.l.b16 %v4342
        %v4488 = vunpack.c.l.b16 %v4343
        %v4489 = vunpack.c.l.b16 %v4344
        %v4490 = vunpack.c.l.b16 %v4345
        %v4491 = vunpack.c.l.b16 %v4346
        %v4492 = vunpack.c.l.b16 %v4347
        %v4493 = vunpack.c.l.b16 %v4348
        %v4494 = vunpack.c.l.b16 %v4349
        %v4495 = vunpack.c.l.b16 %v4350
        %v4496 = vunpack.c.l.b16 %v4351
        %v4497 = vunpack.c.l.b16 %v4352
        %v4498 = vunpack.c.l.b16 %v4353
        %v4499 = vunpack.c.l.b16 %v4354
        %v4500 = vunpack.c.l.b16 %v4355
        %v4501 = vunpack.c.l.b16 %v4356
        %v4502 = vunpack.c.l.b16 %v4357
        %v4503 = vunpack.c.l.b16 %v4358
        %v4504 = vunpack.c.l.b16 %v4359
        %v4505 = vunpack.c.l.b16 %v4360
        %v4506 = vunpack.c.l.b16 %v4361
        %v4507 = vunpack.c.l.b16 %v4362
        %v4508 = vunpack.c.l.b16 %v4363
        %v4509 = vunpack.c.l.b16 %v4364
        %v4510 = vunpack.c.l.b16 %v4365
        %v4511 = vunpack.c.l.b16 %v4366
        %v4512 = vunpack.c.l.b16 %v4367
        %v4513 = vunpack.c.l.b16 %v4368
        %v4514 = vunpack.c.l.b16 %v4369
        %v4515 = vunpack.c.l.b16 %v4370
        %v4516 = vunpack.c.l.b16 %v4371
        %v4517 = vunpack.c.l.b16 %v4372
        %v4518 = vunpack.c.l.b16 %v4373
        %v4519 = vunpack.c.l.b16 %v4374
        %v4520 = vunpack.c.l.b16 %v4375
        %v4521 = vunpack.c.l.b16 %v4376
        %v4522 = vunpack.c.l.b16 %v4377
        %v4523 = vunpack.c.l.b16 %v4378
        %v4524 = vunpack.c.l.b16 %v4379
        %v4525 = vunpack.c.l.b16 %v4380
        %v4526 = vunpack.c.l.b16 %v4381
        %v4527 = vunpack.c.l.b16 %v4382
        %v4528 = vunpack.c.l.b16 %v4383
        %v4529 = vunpack.c.l.b16 %v4384
        %v4530 = vunpack.c.l.b16 %v4385
        %v4531 = vunpack.c.l.b16 %v4386
        %v4532 = vunpack.c.l.b16 %v4387
        %v4533 = vunpack.c.l.b16 %v4388
        %v4534 = vunpack.c.l.b16 %v4389
        %v4535 = vpack.c.b16 %v4464, %v4463
        %v4536 = vpack.c.b16 %v4466, %v4465
        %v4537 = vpack.c.b16 %v4468, %v4467
        %v4538 = vpack.c.b16 %v4470, %v4469
        %v4539 = vpack.c.b16 %v4472, %v4471
        %v4540 = vpack.c.b16 %v4474, %v4473
        %v4541 = vpack.c.b16 %v4476, %v4475
        %v4542 = vpack.c.b16 %v4478, %v4477
        %v4543 = vpack.c.b16 %v4480, %v4479
        %v4544 = vpack.c.b16 %v4482, %v4481
        %v4545 = vpack.c.b16 %v4484, %v4483
        %v4546 = vpack.c.b16 %v4486, %v4485
        %v4547 = vpack.c.b16 %v4488, %v4487
        %v4548 = vpack.c.b16 %v4490, %v4489
        %v4549 = vpack.c.b16 %v4492, %v4491
        %v4550 = vpack.c.b16 %v4494, %v4493
        %v4551 = vpack.c.b16 %v4496, %v4495
        %v4552 = vpack.c.b16 %v4498, %v4497
        %v4553 = vpack.c.b16 %v4500, %v4499
        %v4554 = vpack.c.b16 %v4502, %v4501
        %v4555 = vpack.c.b16 %v4504, %v4503
        %v4556 = vpack.c.b16 %v4506, %v4505
        %v4557 = vpack.c.b16 %v4508, %v4507
        %v4558 = vpack.c.b16 %v4510, %v4509
        %v4559 = vpack.c.b16 %v4512, %v4511
        %v4560 = vpack.c.b16 %v4514, %v4513
        %v4561 = vpack.c.b16 %v4516, %v4515
        %v4562 = vpack.c.b16 %v4518, %v4517
        %v4563 = vpack.c.b16 %v4520, %v4519
        %v4564 = vpack.c.b16 %v4522, %v4521
        %v4565 = vpack.c.b16 %v4524, %v4523
        %v4566 = vpack.c.b16 %v4526, %v4525
        %v4567 = vpack.c.b16 %v4528, %v4527
        %v4568 = vpack.c.b16 %v4530, %v4529
        %v4569 = vpack.c.b16 %v4532, %v4531
        %v4570 = vpack.c.b16 %v4534, %v4533
        %v4608 = vsel %vm3407, %v4317, 0
        %4610 = vmatpush.bf16.msra.mxu0 %v4542
        %4611 = vmatpush.bf16.msra.mxu0 %v4541
        %4612 = vmatpush.bf16.msra.mxu0 %v4540
        %4613 = vmatpush.bf16.msra.mxu0 %v4539
        %4614 = vmatpush.bf16.msra.mxu0 %v4538
        %4615 = vmatpush.bf16.msra.mxu0 %v4537
        %4616 = vmatpush.bf16.msra.mxu0 %v4536
        %4617 = vmatpush.bf16.msra.mxu0 %v4535
        %4618 = vmatmul.bf16.gmra.mxu0 %v4313
        %v4619 = vpop.f32.mrf.mxu0
        %v4620 = vadd.f32 %v4390, %v4619
        %v4621 = vpop.f32.mrf.mxu0
        %4622 = vdwg.mxu0
        %4623 = vmatpush.bf16.msra.mxu0 %v4550
        %4624 = vmatpush.bf16.msra.mxu0 %v4549
        %4625 = vmatpush.bf16.msra.mxu0 %v4548
        %4626 = vmatpush.bf16.msra.mxu0 %v4547
        %4627 = vmatpush.bf16.msra.mxu0 %v4546
        %4628 = vmatpush.bf16.msra.mxu0 %v4545
        %4629 = vmatpush.bf16.msra.mxu0 %v4544
        %4630 = vmatpush.bf16.msra.mxu0 %v4543
        %4631 = vmatmul.bf16.gmra.mxu0 %v4314
        %v4632 = vpop.f32.mrf.mxu0
        %v4633 = vadd.f32 %v4620, %v4632
        %v4634 = vpop.f32.mrf.mxu0
        %4635 = vdwg.mxu0
        %4636 = vmatpush.bf16.msra.mxu0 %v4558
        %4637 = vmatpush.bf16.msra.mxu0 %v4557
        %4638 = vmatpush.bf16.msra.mxu0 %v4556
        %4639 = vmatpush.bf16.msra.mxu0 %v4555
        %4640 = vmatpush.bf16.msra.mxu0 %v4554
        %4641 = vmatpush.bf16.msra.mxu0 %v4553
        %4642 = vmatpush.bf16.msra.mxu0 %v4552
        %4643 = vmatpush.bf16.msra.mxu0 %v4551
        %4644 = vmatmul.bf16.gmra.mxu0 %v4315
        %v4645 = vpop.f32.mrf.mxu0
        %v4646 = vadd.f32 %v4633, %v4645
        %v4647 = vpop.f32.mrf.mxu0
        %4648 = vdwg.mxu0
        %4649 = vmatpush.bf16.msra.mxu0 %v4566
        %4650 = vmatpush.bf16.msra.mxu0 %v4565
        %4651 = vmatpush.bf16.msra.mxu0 %v4564
        %4652 = vmatpush.bf16.msra.mxu0 %v4563
        %4653 = vmatpush.bf16.msra.mxu0 %v4562
        %4654 = vmatpush.bf16.msra.mxu0 %v4561
        %4655 = vmatpush.bf16.msra.mxu0 %v4560
        %4656 = vmatpush.bf16.msra.mxu0 %v4559
        %4657 = vmatmul.bf16.gmra.mxu0 %v4316
        %v4658 = vpop.f32.mrf.mxu0
        %v4659 = vadd.f32 %v4646, %v4658
        %v4660 = vpop.f32.mrf.mxu0
        %4661 = vdwg.mxu0
        %4662 = vmatpush.bf16.msra.mxu0 0
        %4663 = vmatpush.bf16.msra.mxu0 0
        %4664 = vmatpush.bf16.msra.mxu0 0
        %4665 = vmatpush.bf16.msra.mxu0 0
        %4666 = vmatpush.bf16.msra.mxu0 %v4570
        %4667 = vmatpush.bf16.msra.mxu0 %v4569
        %4668 = vmatpush.bf16.msra.mxu0 %v4568
        %4669 = vmatpush.bf16.msra.mxu0 %v4567
        %4670 = vmatmul.bf16.gmra.mxu0 %v4608
        %v4671 = vpop.f32.mrf.mxu0
        %v4672 = vadd.f32 %v4659, %v4671
        %v4673 = vpop.f32.mrf.mxu0
        %4674 = vdwg.mxu0
        %v4675 = vmax.f32 %v4672, 0.0
        %v4676 = vpack.c.bf16 %v4675, %v4675
        %v4677 = vld [vmem:[%s7] sm:$0xf]
        %v4678 = vld [vmem:[%s7 + $0x4] sm:$0xf]
        %v4679 = vld [vmem:[%s7 + $0x8] sm:$0xf]
        %v4680 = vld [vmem:[%s7 + $0xc] sm:$0xf]
        %v4681 = vld [vmem:[%s7 + $0x10] sm:$0xf]
        %v4682 = vld [vmem:[%s7 + $0x14] sm:$0xf]
        %v4683 = vld [vmem:[%s7 + $0x18] sm:$0xf]
        %v4684 = vld [vmem:[%s7 + $0x1c] sm:$0xf]
        %v4685 = vld [vmem:[%s8] sm:$0x1]
        %v4694 = vunpack.c.l.b16 %v4677
        %v4695 = vunpack.c.l.b16 %v4678
        %v4696 = vunpack.c.l.b16 %v4679
        %v4697 = vunpack.c.l.b16 %v4680
        %v4698 = vunpack.c.l.b16 %v4681
        %v4699 = vunpack.c.l.b16 %v4682
        %v4700 = vunpack.c.l.b16 %v4683
        %v4701 = vunpack.c.l.b16 %v4684
        %v4702 = vpack.c.b16 %v4695, %v4694
        %v4703 = vpack.c.b16 %v4697, %v4696
        %v4704 = vpack.c.b16 %v4699, %v4698
        %v4705 = vpack.c.b16 %v4701, %v4700
        %v4711 = vsel %vm3407, %v4676, 0
        %4713 = vmatpush.bf16.msra.mxu0 0
        %4714 = vmatpush.bf16.msra.mxu0 0
        %4715 = vmatpush.bf16.msra.mxu0 0
        %4716 = vmatpush.bf16.msra.mxu0 0
        %4717 = vmatpush.bf16.msra.mxu0 %v4705
        %4718 = vmatpush.bf16.msra.mxu0 %v4704
        %4719 = vmatpush.bf16.msra.mxu0 %v4703
        %4720 = vmatpush.bf16.msra.mxu0 %v4702
        %4721 = vmatmul.bf16.gmra.mxu0 %v4711
        %v4722 = vpop.f32.mrf.mxu0
        %v4723 = vadd.f32 %v4685, %v4722
        %v4724 = vpop.f32.mrf.mxu0
        %4725 = vdwg.mxu0
        %vm4726 = vcmp.gt.f32.partialorder %v4723, 0.0
        %v4727 = vmul.f32 %v4723, 0.01
        %v4728 = vsel %vm4726, %v4723, %v4727
        %v4729 = vpack.c.bf16 %v4728, %v4728
        %v4730 = vld [vmem:[%s9] sm:$0xf]
        %v4731 = vld [vmem:[%s9 + $0x4] sm:$0xf]
        %v4732 = vld [vmem:[%s9 + $0x8] sm:$0xf]
        %v4733 = vld [vmem:[%s9 + $0xc] sm:$0xf]
        %v4734 = vld [vmem:[%s9 + $0x10] sm:$0xf]
        %v4735 = vld [vmem:[%s9 + $0x14] sm:$0xf]
        %v4736 = vld [vmem:[%s9 + $0x18] sm:$0xf]
        %v4737 = vld [vmem:[%s9 + $0x1c] sm:$0xf]
        %v4738 = vld [vmem:[%s9 + $0x20] sm:$0xf]
        %v4739 = vld [vmem:[%s9 + $0x24] sm:$0xf]
        %v4740 = vld [vmem:[%s9 + $0x28] sm:$0xf]
        %v4741 = vld [vmem:[%s9 + $0x2c] sm:$0xf]
        %v4742 = vld [vmem:[%s9 + $0x30] sm:$0xf]
        %v4743 = vld [vmem:[%s9 + $0x34] sm:$0xf]
        %v4744 = vld [vmem:[%s9 + $0x38] sm:$0xf]
        %v4745 = vld [vmem:[%s9 + $0x3c] sm:$0xf]
        %v4746 = vld [vmem:[%s10] sm:$0x1]
        %v4763 = vunpack.c.l.b16 %v4730
        %v4764 = vunpack.c.l.b16 %v4731
        %v4765 = vunpack.c.l.b16 %v4732
        %v4766 = vunpack.c.l.b16 %v4733
        %v4767 = vunpack.c.l.b16 %v4734
        %v4768 = vunpack.c.l.b16 %v4735
        %v4769 = vunpack.c.l.b16 %v4736
        %v4770 = vunpack.c.l.b16 %v4737
        %v4771 = vunpack.c.l.b16 %v4738
        %v4772 = vunpack.c.l.b16 %v4739
        %v4773 = vunpack.c.l.b16 %v4740
        %v4774 = vunpack.c.l.b16 %v4741
        %v4775 = vunpack.c.l.b16 %v4742
        %v4776 = vunpack.c.l.b16 %v4743
        %v4777 = vunpack.c.l.b16 %v4744
        %v4778 = vunpack.c.l.b16 %v4745
        %v4779 = vpack.c.b16 %v4764, %v4763
        %v4780 = vpack.c.b16 %v4766, %v4765
        %v4781 = vpack.c.b16 %v4768, %v4767
        %v4782 = vpack.c.b16 %v4770, %v4769
        %v4783 = vpack.c.b16 %v4772, %v4771
        %v4784 = vpack.c.b16 %v4774, %v4773
        %v4785 = vpack.c.b16 %v4776, %v4775
        %v4786 = vpack.c.b16 %v4778, %v4777
        %4795 = vmatpush.bf16.msra.mxu0 %v4786
        %4796 = vmatpush.bf16.msra.mxu0 %v4785
        %4797 = vmatpush.bf16.msra.mxu0 %v4784
        %4798 = vmatpush.bf16.msra.mxu0 %v4783
        %4799 = vmatpush.bf16.msra.mxu0 %v4782
        %4800 = vmatpush.bf16.msra.mxu0 %v4781
        %4801 = vmatpush.bf16.msra.mxu0 %v4780
        %4802 = vmatpush.bf16.msra.mxu0 %v4779
        %4803 = vmatmul.bf16.gmra.mxu0 %v4729
        %v4804 = vpop.f32.mrf.mxu0
        %v4805 = vadd.f32 %v4746, %v4804
        %v4806 = vpop.f32.mrf.mxu0
        %4807 = vdwg.mxu0
        %4808 = vst [vmem:[%s378] sm:$0x1] %v4805
        %s4809 = sand.u32 %s269, 1
        %s4810 = scalar_lea.sflag [#allocation3], %s4809
        %s4811 = sand.u32 %s269, 1
        %s4812 = scalar_lea.vmem [#allocation2], %s4811
        // Predicated region
        $region65: #{simple_cnn_forward.1} parent=63 // pred_check
          %p4813 = pneg %p279
        $region66: #{simple_cnn_forward.1} parent=63 // pred_check_branch
          %4815 = sbr.rel (%p4813) target = $region68
        $region67: #{simple_cnn_forward.1} parent=63 // pred_region
          %4817 = vsyncadd %s4810, 0
          %s4818 = scalar_lea.hbm %s11, %s25
          %s4820 = sshll.u32 %s4812, 4
          %s4821 = int_to_ptr.vmem [resolvable:$true] %s4820
          %s4822 = sshll.u32 %s4818, 4
          %s4823 = int_to_ptr.hbm [resolvable:$true] %s4822
          %4825 = dma.vmem_to_hbm [thread:$0]  %s4821, 16, %s4823, %s4810
        $region68: #{simple_cnn_forward.1} parent=63 // pred_fallthru
          _
      $region64: #{simple_cnn_forward.1} parent=5 // pred_fallthru
        _
      %p4826 = scmp.le.s32.totalorder 2, %s20
      // Predicated region
      $region69: #{simple_cnn_forward.1} parent=5 // pred_check
        %p4827 = pneg %p4826
      $region70: #{simple_cnn_forward.1} parent=5 // pred_check_branch
        %4829 = sbr.rel (%p4827) target = $region72
      $region71: #{simple_cnn_forward.1} parent=5 // pred_region
        %s4830 = ssub.s32 %s20, 2
        // Predicated region
        $region73: #{simple_cnn_forward.1} parent=71 // pred_check
          %p4831 = pneg %p285
        $region74: #{simple_cnn_forward.1} parent=71 // pred_check_branch
          %4833 = sbr.rel (%p4831) target = $region76
        $region75: #{simple_cnn_forward.1} parent=71 // pred_region
          %s4834 = sand.u32 %s270, 1
          %s4835 = scalar_lea.sflag [#allocation3], %s4834
          %s4836 = sand.u32 %s270, 1
          %s4837 = scalar_lea.vmem [#allocation2], %s4836
          %4839 = dma.done %s4835, 16
        $region76: #{simple_cnn_forward.1} parent=71 // pred_fallthru
          _
      $region72: #{simple_cnn_forward.1} parent=5 // pred_fallthru
        _
    $region6: #{simple_cnn_forward.1} parent=1 // loop_footer
      %s24 = sadd.s32 1, %s20
    $region7: #{simple_cnn_forward.1} parent=1 // loop_footer_branch
      %19 = sbr.rel target = $region3
    $region8: #{simple_cnn_forward.1} parent=1 // loop_exit
      _
    %4840 = vsyncpa [#allocation3], 1
    %s4841 = scalar_lea.sflag [#allocation3], 1
    %4842 = vsyncpa %s4841, 1

</llo_original>
